<compile_context>
chip_gen: v7x
topology: tpu7x:2x2x1
jax: 0.10.0
libtpu: 0.0.40
codegen_flags: <defaults>
</compile_context>

<pallas_src>
import jax
import jax.numpy as jnp
from jax.experimental import pallas as pl
from jax.experimental.pallas import tpu as pltpu


def _lstm_gates(pre, c, H):
    """pre: (rows, 4H) pre-activations in PyTorch gate order [i, f, g, o]."""
    i = jax.nn.sigmoid(pre[:, 0 * H:1 * H])
    f = jax.nn.sigmoid(pre[:, 1 * H:2 * H])
    g = jnp.tanh(pre[:, 2 * H:3 * H])
    o = jax.nn.sigmoid(pre[:, 3 * H:4 * H])
    c_new = f * c + i * g
    h_new = o * jnp.tanh(c_new)
    return h_new, c_new


def _full_spec(arr):
    """Whole-array block, identical for every grid step."""
    nd = arr.ndim
    return pl.BlockSpec(arr.shape, lambda i, _nd=nd: (0,) * _nd)


def hierarchical_decoder_forward(z, params, *, hidden_dim, num_subsequences,
                                 output_dim):
    B, _ = z.shape
    H = hidden_dim
    S = num_subsequences
    T = output_dim      # decoder rolls out `output_dim` steps per subsequence
    O = output_dim
    SB = S * B
    P = max(128, ((O + 127) // 128) * 128)   # lane-dense padded output width

    (wc_t, bc,
     c_whh0_t, c_b0, c_w1_t, c_b1,
     d_wih0_t, d_whh0_t, d_b0, d_w1_t, d_b1,
     wout_t, bout) = params

    # Zero-pad output_fc so the final matmul result and HBM store are unmasked
    # (last dim 128); the wrapper slices the O real columns back out.
    wout_pad = jnp.zeros((H, P), jnp.float32).at[:, :O].set(wout_t)
    bout_pad = jnp.zeros((1, P), jnp.float32).at[:, :O].set(bout)

    def fused_kernel(z_ref, wc_ref, bc_ref,
                     c_whh0_ref, c_b0_ref, c_w1_ref, c_b1_ref,
                     d_wih0_ref, d_whh0_ref, d_b0_ref, d_w1_ref, d_b1_ref,
                     wout_ref, bout_ref,
                     out_ref,
                     cond_buf, hdec_buf):
        # ---------------- conductor: fc + 2-layer LSTM over S steps ----------
        h_init = jnp.tanh(
            jnp.dot(z_ref[...], wc_ref[...],
                    preferred_element_type=jnp.float32) + bc_ref[...])
        h0, h1 = h_init, h_init
        c0 = jnp.zeros((B, H), jnp.float32)
        c1 = jnp.zeros((B, H), jnp.float32)
        c_whh0 = c_whh0_ref[...]
        c_w1 = c_w1_ref[...]
        c_wih1 = c_w1[:H, :]        # (H, 4H) layer-1 input weight
        c_whh1 = c_w1[H:, :]        # (H, 4H) layer-1 recurrent weight
        cb0 = c_b0_ref[...]
        cb1 = c_b1_ref[...]
        for s in range(S):
            # layer-0 input is all-zeros -> only recurrent term + biases remain
            pre0 = jnp.dot(h0, c_whh0, preferred_element_type=jnp.float32) + cb0
            h0, c0 = _lstm_gates(pre0, c0, H)
            pre1 = (jnp.dot(h0, c_wih1, preferred_element_type=jnp.float32)
                    + jnp.dot(h1, c_whh1, preferred_element_type=jnp.float32)
                    + cb1)
            h1, c1 = _lstm_gates(pre1, c1, H)
            cond_buf[s * B:(s + 1) * B, :] = h1          # rows = s*B + b

        # ------------- decoder: S rollouts folded into the batch -------------
        x = cond_buf[...]                                # (S*B, H) constant input
        x0 = jnp.dot(x, d_wih0_ref[...],
                     preferred_element_type=jnp.float32) + d_b0_ref[...]
        h0 = jnp.zeros((SB, H), jnp.float32)
        h1 = jnp.zeros((SB, H), jnp.float32)
        c0 = jnp.zeros((SB, H), jnp.float32)
        c1 = jnp.zeros((SB, H), jnp.float32)
        d_whh0 = d_whh0_ref[...]
        d_w1 = d_w1_ref[...]
        d_wih1 = d_w1[:H, :]
        d_whh1 = d_w1[H:, :]
        db1 = d_b1_ref[...]
        for t in range(T):
            pre0 = x0 + jnp.dot(h0, d_whh0, preferred_element_type=jnp.float32)
            h0, c0 = _lstm_gates(pre0, c0, H)
            pre1 = (jnp.dot(h0, d_wih1, preferred_element_type=jnp.float32)
                    + jnp.dot(h1, d_whh1, preferred_element_type=jnp.float32)
                    + db1)
            h1, c1 = _lstm_gates(pre1, c1, H)
            hdec_buf[t * SB:(t + 1) * SB, :] = h1        # rows = t*S*B + s*B + b

        # -------- output_fc once over the whole slab, lane-dense store -------
        out_ref[...] = (jnp.dot(hdec_buf[...], wout_ref[...],
                                preferred_element_type=jnp.float32)
                        + bout_ref[...])                 # (T*S*B, P)

    inputs = (z, wc_t, bc, c_whh0_t, c_b0, c_w1_t, c_b1,
              d_wih0_t, d_whh0_t, d_b0, d_w1_t, d_b1, wout_pad, bout_pad)

    out_pad = pl.pallas_call(
        fused_kernel,
        out_shape=jax.ShapeDtypeStruct((T * SB, P), jnp.float32),
        grid=(1,),
        in_specs=[_full_spec(a) for a in inputs],
        out_specs=pl.BlockSpec((T * SB, P), lambda i: (0, 0)),
        scratch_shapes=[pltpu.VMEM((SB, H), jnp.float32),       # conductor outs
                        pltpu.VMEM((T * SB, H), jnp.float32)],  # decoder h1 slab
        compiler_params=pltpu.CompilerParams(
            dimension_semantics=("arbitrary",)),
    )(*inputs)

    # (T*S*B, P) -> (B, S*T, O)   == torch.cat(outputs, dim=1)
    out = out_pad[:, :O].reshape(T, S, B, O)
    return jnp.transpose(out, (2, 1, 0, 3)).reshape(B, S * T, O)


def init_params(key, *, input_dim, hidden_dim, latent_dim, output_dim):
    """Deterministic PyTorch-default-style init (uniform(-1/sqrt(fan), +))."""
    assert input_dim == 0, "module is only shape-consistent for input_dim == 0"
    H = hidden_dim
    ks = jax.random.split(key, 19)

    def u(k, shape, bound):
        return jax.random.uniform(k, shape, jnp.float32, -bound, bound)

    kfc = 1.0 / float(latent_dim) ** 0.5
    kH = 1.0 / float(H) ** 0.5

    wc = u(ks[0], (H, latent_dim), kfc)            # conductor_fc.weight
    bc = u(ks[1], (H,), kfc)                       # conductor_fc.bias

    c_whh0 = u(ks[2], (4 * H, H), kH)              # conductor LSTM l0 (W_ih unused: zero input)
    c_bih0 = u(ks[3], (4 * H,), kH)
    c_bhh0 = u(ks[4], (4 * H,), kH)
    c_wih1 = u(ks[5], (4 * H, H), kH)              # conductor LSTM l1
    c_whh1 = u(ks[6], (4 * H, H), kH)
    c_bih1 = u(ks[7], (4 * H,), kH)
    c_bhh1 = u(ks[8], (4 * H,), kH)

    d_wih0 = u(ks[9], (4 * H, input_dim + H), kH)  # decoder LSTM l0
    d_whh0 = u(ks[10], (4 * H, H), kH)
    d_bih0 = u(ks[11], (4 * H,), kH)
    d_bhh0 = u(ks[12], (4 * H,), kH)
    d_wih1 = u(ks[13], (4 * H, H), kH)             # decoder LSTM l1
    d_whh1 = u(ks[14], (4 * H, H), kH)
    d_bih1 = u(ks[15], (4 * H,), kH)
    d_bhh1 = u(ks[16], (4 * H,), kH)

    wout = u(ks[17], (output_dim, H), kH)          # output_fc.weight
    bout = u(ks[18], (output_dim,), kH)            # output_fc.bias

    return (
        wc.T, bc.reshape(1, H),
        c_whh0.T, (c_bih0 + c_bhh0).reshape(1, 4 * H),
        jnp.concatenate([c_wih1.T, c_whh1.T], axis=0),   # (2H, 4H) stacked layer-1
        (c_bih1 + c_bhh1).reshape(1, 4 * H),
        d_wih0.T, d_whh0.T, (d_bih0 + d_bhh0).reshape(1, 4 * H),
        jnp.concatenate([d_wih1.T, d_whh1.T], axis=0),   # (2H, 4H) stacked layer-1
        (d_bih1 + d_bhh1).reshape(1, 4 * H),
        wout.T, bout.reshape(1, output_dim),
    )


def reference_forward(z, params, *, hidden_dim, num_subsequences, output_dim):
    """Pure-JAX reference (same math, no Pallas) for correctness checking."""
    H = hidden_dim
    (wc_t, bc, c_whh0_t, c_b0, c_w1_t, c_b1,
     d_wih0_t, d_whh0_t, d_b0, d_w1_t, d_b1, wout_t, bout) = params
    B = z.shape[0]

    c_wih1_t, c_whh1_t = c_w1_t[:H], c_w1_t[H:]
    d_wih1_t, d_whh1_t = d_w1_t[:H], d_w1_t[H:]

    def cell(pre, c):
        i = jax.nn.sigmoid(pre[:, :H])
        f = jax.nn.sigmoid(pre[:, H:2 * H])
        g = jnp.tanh(pre[:, 2 * H:3 * H])
        o = jax.nn.sigmoid(pre[:, 3 * H:])
        c = f * c + i * g
        return o * jnp.tanh(c), c

    h_init = jnp.tanh(z @ wc_t + bc)
    h0, h1 = h_init, h_init
    c0 = c1 = jnp.zeros((B, H), jnp.float32)
    cond = []
    for _ in range(num_subsequences):
        h0, c0 = cell(h0 @ c_whh0_t + c_b0, c0)
        h1, c1 = cell(h0 @ c_wih1_t + h1 @ c_whh1_t + c_b1, c1)
        cond.append(h1)

    outs = []
    for i in range(num_subsequences):
        x0 = cond[i] @ d_wih0_t + d_b0
        h0 = h1 = jnp.zeros((B, H), jnp.float32)
        c0 = c1 = jnp.zeros((B, H), jnp.float32)
        for _ in range(output_dim):
            h0, c0 = cell(x0 + h0 @ d_whh0_t, c0)
            h1, c1 = cell(h0 @ d_wih1_t + h1 @ d_whh1_t + d_b1, c1)
            outs.append(h1 @ wout_t + bout)
    return jnp.stack(outs, axis=1)   # (B, S*T, O)


if __name__ == "__main__":
    INPUT_DIM = 0      # must be 0 for the module's shapes to line up
    HIDDEN_DIM = 32
    LATENT_DIM = 16
    NUM_SUBSEQ = 4
    OUTPUT_DIM = 8
    B = 2

    key = jax.random.PRNGKey(0)
    kz, kp = jax.random.split(key)
    z = jax.random.normal(kz, (B, LATENT_DIM), jnp.float32)
    params = init_params(kp, input_dim=INPUT_DIM, hidden_dim=HIDDEN_DIM,
                         latent_dim=LATENT_DIM, output_dim=OUTPUT_DIM)

    out = hierarchical_decoder_forward(
        z, params, hidden_dim=HIDDEN_DIM, num_subsequences=NUM_SUBSEQ,
        output_dim=OUTPUT_DIM)
    out = jax.block_until_ready(out)

    assert out.shape == (B, NUM_SUBSEQ * OUTPUT_DIM, OUTPUT_DIM), out.shape

    ref = reference_forward(
        z, params, hidden_dim=HIDDEN_DIM, num_subsequences=NUM_SUBSEQ,
        output_dim=OUTPUT_DIM)
    assert jnp.allclose(out, ref, rtol=1e-4, atol=1e-4), \
        float(jnp.max(jnp.abs(out - ref)))

    print("KERNEL_OK")
</pallas_src>

<mosaic_0001>
module attributes {stable_mosaic.version = 11 : i64} {
  func.func @fused_kernel(%arg0: i32, %arg1: memref<2x16xf32, #tpu.memory_space<vmem>>, %arg2: memref<16x32xf32, #tpu.memory_space<vmem>>, %arg3: memref<1x32xf32, #tpu.memory_space<vmem>>, %arg4: memref<32x128xf32, #tpu.memory_space<vmem>>, %arg5: memref<1x128xf32, #tpu.memory_space<vmem>>, %arg6: memref<64x128xf32, #tpu.memory_space<vmem>>, %arg7: memref<1x128xf32, #tpu.memory_space<vmem>>, %arg8: memref<32x128xf32, #tpu.memory_space<vmem>>, %arg9: memref<32x128xf32, #tpu.memory_space<vmem>>, %arg10: memref<1x128xf32, #tpu.memory_space<vmem>>, %arg11: memref<64x128xf32, #tpu.memory_space<vmem>>, %arg12: memref<1x128xf32, #tpu.memory_space<vmem>>, %arg13: memref<32x128xf32, #tpu.memory_space<vmem>>, %arg14: memref<1x128xf32, #tpu.memory_space<vmem>>, %arg15: memref<64x128xf32, #tpu.memory_space<vmem>>, %arg16: memref<8x32xf32, #tpu.memory_space<vmem>>, %arg17: memref<64x32xf32, #tpu.memory_space<vmem>>) attributes {dimension_semantics = [#tpu.dimension_semantics<arbitrary>], iteration_bounds = array<i64: 1>, scalar_prefetch = 0 : i64, scratch_operands = 2 : i64, tpu.core_type = #tpu.core_type<tc>, window_params = [{pipeline_mode = #tpu.pipeline_mode<synchronous>, transform_indices = @transform_0, window_bounds = array<i64: 2, 16>}, {pipeline_mode = #tpu.pipeline_mode<synchronous>, transform_indices = @transform_1, window_bounds = array<i64: 16, 32>}, {pipeline_mode = #tpu.pipeline_mode<synchronous>, transform_indices = @transform_2, window_bounds = array<i64: 1, 32>}, {pipeline_mode = #tpu.pipeline_mode<synchronous>, transform_indices = @transform_3, window_bounds = array<i64: 32, 128>}, {pipeline_mode = #tpu.pipeline_mode<synchronous>, transform_indices = @transform_4, window_bounds = array<i64: 1, 128>}, {pipeline_mode = #tpu.pipeline_mode<synchronous>, transform_indices = @transform_5, window_bounds = array<i64: 64, 128>}, {pipeline_mode = #tpu.pipeline_mode<synchronous>, transform_indices = @transform_6, window_bounds = array<i64: 1, 128>}, {pipeline_mode = #tpu.pipeline_mode<synchronous>, transform_indices = @transform_7, window_bounds = array<i64: 32, 128>}, {pipeline_mode = #tpu.pipeline_mode<synchronous>, transform_indices = @transform_8, window_bounds = array<i64: 32, 128>}, {pipeline_mode = #tpu.pipeline_mode<synchronous>, transform_indices = @transform_9, window_bounds = array<i64: 1, 128>}, {pipeline_mode = #tpu.pipeline_mode<synchronous>, transform_indices = @transform_10, window_bounds = array<i64: 64, 128>}, {pipeline_mode = #tpu.pipeline_mode<synchronous>, transform_indices = @transform_11, window_bounds = array<i64: 1, 128>}, {pipeline_mode = #tpu.pipeline_mode<synchronous>, transform_indices = @transform_12, window_bounds = array<i64: 32, 128>}, {pipeline_mode = #tpu.pipeline_mode<synchronous>, transform_indices = @transform_13, window_bounds = array<i64: 1, 128>}, {pipeline_mode = #tpu.pipeline_mode<synchronous>, transform_indices = @transform_14, window_bounds = array<i64: 64, 128>}]} {
    %c0 = arith.constant 0 : index
    %c0_0 = arith.constant 0 : index
    %0 = vector.load %arg1[%c0, %c0_0] : memref<2x16xf32, #tpu.memory_space<vmem>>, vector<2x16xf32>
    %c0_1 = arith.constant 0 : index
    %c0_2 = arith.constant 0 : index
    %1 = vector.load %arg2[%c0_1, %c0_2] : memref<16x32xf32, #tpu.memory_space<vmem>>, vector<16x32xf32>
    %cst = arith.constant dense<0.000000e+00> : vector<2x32xf32>
    %2 = tpu.matmul %0, %1, %cst {dimension_numbers = #tpu.dot_dimension_numbers<[1], [0], [0], [1], [0, 0, 1, 1], [], []>} : vector<2x16xf32>, vector<16x32xf32>, vector<2x32xf32> -> vector<2x32xf32>
    %c0_3 = arith.constant 0 : index
    %c0_4 = arith.constant 0 : index
    %3 = vector.load %arg3[%c0_3, %c0_4] : memref<1x32xf32, #tpu.memory_space<vmem>>, vector<1x32xf32>
    %4 = vector.broadcast %3 : vector<1x32xf32> to vector<2x32xf32>
    %5 = arith.addf %2, %4 : vector<2x32xf32>
    %6 = math.tanh %5 : vector<2x32xf32>
    %cst_5 = arith.constant 0.000000e+00 : f32
    %7 = vector.broadcast %cst_5 : f32 to vector<2x32xf32>
    %cst_6 = arith.constant 0.000000e+00 : f32
    %8 = vector.broadcast %cst_6 : f32 to vector<2x32xf32>
    %c0_7 = arith.constant 0 : index
    %c0_8 = arith.constant 0 : index
    %9 = vector.load %arg4[%c0_7, %c0_8] : memref<32x128xf32, #tpu.memory_space<vmem>>, vector<32x128xf32>
    %c0_9 = arith.constant 0 : index
    %c0_10 = arith.constant 0 : index
    %10 = vector.load %arg6[%c0_9, %c0_10] : memref<64x128xf32, #tpu.memory_space<vmem>>, vector<64x128xf32>
    %11 = vector.extract_strided_slice %10 {offsets = [0, 0], sizes = [32, 128], strides = [1, 1]} : vector<64x128xf32> to vector<32x128xf32>
    %12 = vector.extract_strided_slice %10 {offsets = [32, 0], sizes = [32, 128], strides = [1, 1]} : vector<64x128xf32> to vector<32x128xf32>
    %c0_11 = arith.constant 0 : index
    %c0_12 = arith.constant 0 : index
    %13 = vector.load %arg5[%c0_11, %c0_12] : memref<1x128xf32, #tpu.memory_space<vmem>>, vector<1x128xf32>
    %c0_13 = arith.constant 0 : index
    %c0_14 = arith.constant 0 : index
    %14 = vector.load %arg7[%c0_13, %c0_14] : memref<1x128xf32, #tpu.memory_space<vmem>>, vector<1x128xf32>
    %cst_15 = arith.constant dense<0.000000e+00> : vector<2x128xf32>
    %15 = tpu.matmul %6, %9, %cst_15 {dimension_numbers = #tpu.dot_dimension_numbers<[1], [0], [0], [1], [0, 0, 1, 1], [], []>} : vector<2x32xf32>, vector<32x128xf32>, vector<2x128xf32> -> vector<2x128xf32>
    %16 = vector.broadcast %13 : vector<1x128xf32> to vector<2x128xf32>
    %17 = arith.addf %15, %16 : vector<2x128xf32>
    %18 = vector.extract_strided_slice %17 {offsets = [0, 0], sizes = [2, 32], strides = [1, 1]} : vector<2x128xf32> to vector<2x32xf32>
    %19 = arith.negf %18 : vector<2x32xf32>
    %20 = math.exp %19 : vector<2x32xf32>
    %cst_16 = arith.constant 1.000000e+00 : f32
    %21 = vector.broadcast %cst_16 : f32 to vector<2x32xf32>
    %22 = arith.addf %21, %20 : vector<2x32xf32>
    %23 = arith.divf %21, %22 : vector<2x32xf32>
    %24 = vector.extract_strided_slice %17 {offsets = [0, 32], sizes = [2, 32], strides = [1, 1]} : vector<2x128xf32> to vector<2x32xf32>
    %25 = arith.negf %24 : vector<2x32xf32>
    %26 = math.exp %25 : vector<2x32xf32>
    %cst_17 = arith.constant 1.000000e+00 : f32
    %27 = vector.broadcast %cst_17 : f32 to vector<2x32xf32>
    %28 = arith.addf %27, %26 : vector<2x32xf32>
    %29 = arith.divf %27, %28 : vector<2x32xf32>
    %30 = vector.extract_strided_slice %17 {offsets = [0, 64], sizes = [2, 32], strides = [1, 1]} : vector<2x128xf32> to vector<2x32xf32>
    %31 = math.tanh %30 : vector<2x32xf32>
    %32 = vector.extract_strided_slice %17 {offsets = [0, 96], sizes = [2, 32], strides = [1, 1]} : vector<2x128xf32> to vector<2x32xf32>
    %33 = arith.negf %32 : vector<2x32xf32>
    %34 = math.exp %33 : vector<2x32xf32>
    %cst_18 = arith.constant 1.000000e+00 : f32
    %35 = vector.broadcast %cst_18 : f32 to vector<2x32xf32>
    %36 = arith.addf %35, %34 : vector<2x32xf32>
    %37 = arith.divf %35, %36 : vector<2x32xf32>
    %38 = arith.mulf %29, %7 : vector<2x32xf32>
    %39 = arith.mulf %23, %31 : vector<2x32xf32>
    %40 = arith.addf %38, %39 : vector<2x32xf32>
    %41 = math.tanh %40 : vector<2x32xf32>
    %42 = arith.mulf %37, %41 : vector<2x32xf32>
    %cst_19 = arith.constant dense<0.000000e+00> : vector<2x128xf32>
    %43 = tpu.matmul %42, %11, %cst_19 {dimension_numbers = #tpu.dot_dimension_numbers<[1], [0], [0], [1], [0, 0, 1, 1], [], []>} : vector<2x32xf32>, vector<32x128xf32>, vector<2x128xf32> -> vector<2x128xf32>
    %cst_20 = arith.constant dense<0.000000e+00> : vector<2x128xf32>
    %44 = tpu.matmul %6, %12, %cst_20 {dimension_numbers = #tpu.dot_dimension_numbers<[1], [0], [0], [1], [0, 0, 1, 1], [], []>} : vector<2x32xf32>, vector<32x128xf32>, vector<2x128xf32> -> vector<2x128xf32>
    %45 = arith.addf %43, %44 : vector<2x128xf32>
    %46 = vector.broadcast %14 : vector<1x128xf32> to vector<2x128xf32>
    %47 = arith.addf %45, %46 : vector<2x128xf32>
    %48 = vector.extract_strided_slice %47 {offsets = [0, 0], sizes = [2, 32], strides = [1, 1]} : vector<2x128xf32> to vector<2x32xf32>
    %49 = arith.negf %48 : vector<2x32xf32>
    %50 = math.exp %49 : vector<2x32xf32>
    %cst_21 = arith.constant 1.000000e+00 : f32
    %51 = vector.broadcast %cst_21 : f32 to vector<2x32xf32>
    %52 = arith.addf %51, %50 : vector<2x32xf32>
    %53 = arith.divf %51, %52 : vector<2x32xf32>
    %54 = vector.extract_strided_slice %47 {offsets = [0, 32], sizes = [2, 32], strides = [1, 1]} : vector<2x128xf32> to vector<2x32xf32>
    %55 = arith.negf %54 : vector<2x32xf32>
    %56 = math.exp %55 : vector<2x32xf32>
    %cst_22 = arith.constant 1.000000e+00 : f32
    %57 = vector.broadcast %cst_22 : f32 to vector<2x32xf32>
    %58 = arith.addf %57, %56 : vector<2x32xf32>
    %59 = arith.divf %57, %58 : vector<2x32xf32>
    %60 = vector.extract_strided_slice %47 {offsets = [0, 64], sizes = [2, 32], strides = [1, 1]} : vector<2x128xf32> to vector<2x32xf32>
    %61 = math.tanh %60 : vector<2x32xf32>
    %62 = vector.extract_strided_slice %47 {offsets = [0, 96], sizes = [2, 32], strides = [1, 1]} : vector<2x128xf32> to vector<2x32xf32>
    %63 = arith.negf %62 : vector<2x32xf32>
    %64 = math.exp %63 : vector<2x32xf32>
    %cst_23 = arith.constant 1.000000e+00 : f32
    %65 = vector.broadcast %cst_23 : f32 to vector<2x32xf32>
    %66 = arith.addf %65, %64 : vector<2x32xf32>
    %67 = arith.divf %65, %66 : vector<2x32xf32>
    %68 = arith.mulf %59, %8 : vector<2x32xf32>
    %69 = arith.mulf %53, %61 : vector<2x32xf32>
    %70 = arith.addf %68, %69 : vector<2x32xf32>
    %71 = math.tanh %70 : vector<2x32xf32>
    %72 = arith.mulf %67, %71 : vector<2x32xf32>
    %c0_24 = arith.constant 0 : index
    %c0_25 = arith.constant 0 : index
    %73 = vector.load %arg16[%c0_24, %c0_25] : memref<8x32xf32, #tpu.memory_space<vmem>>, vector<2x32xf32>
    tpu.vector_store %arg16[%c0_24, %c0_25], %72 {strides = array<i32>} : memref<8x32xf32, #tpu.memory_space<vmem>>, vector<2x32xf32>,
    %cst_26 = arith.constant dense<0.000000e+00> : vector<2x128xf32>
    %74 = tpu.matmul %42, %9, %cst_26 {dimension_numbers = #tpu.dot_dimension_numbers<[1], [0], [0], [1], [0, 0, 1, 1], [], []>} : vector<2x32xf32>, vector<32x128xf32>, vector<2x128xf32> -> vector<2x128xf32>
    %75 = vector.broadcast %13 : vector<1x128xf32> to vector<2x128xf32>
    %76 = arith.addf %74, %75 : vector<2x128xf32>
    %77 = vector.extract_strided_slice %76 {offsets = [0, 0], sizes = [2, 32], strides = [1, 1]} : vector<2x128xf32> to vector<2x32xf32>
    %78 = arith.negf %77 : vector<2x32xf32>
    %79 = math.exp %78 : vector<2x32xf32>
    %cst_27 = arith.constant 1.000000e+00 : f32
    %80 = vector.broadcast %cst_27 : f32 to vector<2x32xf32>
    %81 = arith.addf %80, %79 : vector<2x32xf32>
    %82 = arith.divf %80, %81 : vector<2x32xf32>
    %83 = vector.extract_strided_slice %76 {offsets = [0, 32], sizes = [2, 32], strides = [1, 1]} : vector<2x128xf32> to vector<2x32xf32>
    %84 = arith.negf %83 : vector<2x32xf32>
    %85 = math.exp %84 : vector<2x32xf32>
    %cst_28 = arith.constant 1.000000e+00 : f32
    %86 = vector.broadcast %cst_28 : f32 to vector<2x32xf32>
    %87 = arith.addf %86, %85 : vector<2x32xf32>
    %88 = arith.divf %86, %87 : vector<2x32xf32>
    %89 = vector.extract_strided_slice %76 {offsets = [0, 64], sizes = [2, 32], strides = [1, 1]} : vector<2x128xf32> to vector<2x32xf32>
    %90 = math.tanh %89 : vector<2x32xf32>
    %91 = vector.extract_strided_slice %76 {offsets = [0, 96], sizes = [2, 32], strides = [1, 1]} : vector<2x128xf32> to vector<2x32xf32>
    %92 = arith.negf %91 : vector<2x32xf32>
    %93 = math.exp %92 : vector<2x32xf32>
    %cst_29 = arith.constant 1.000000e+00 : f32
    %94 = vector.broadcast %cst_29 : f32 to vector<2x32xf32>
    %95 = arith.addf %94, %93 : vector<2x32xf32>
    %96 = arith.divf %94, %95 : vector<2x32xf32>
    %97 = arith.mulf %88, %40 : vector<2x32xf32>
    %98 = arith.mulf %82, %90 : vector<2x32xf32>
    %99 = arith.addf %97, %98 : vector<2x32xf32>
    %100 = math.tanh %99 : vector<2x32xf32>
    %101 = arith.mulf %96, %100 : vector<2x32xf32>
    %cst_30 = arith.constant dense<0.000000e+00> : vector<2x128xf32>
    %102 = tpu.matmul %101, %11, %cst_30 {dimension_numbers = #tpu.dot_dimension_numbers<[1], [0], [0], [1], [0, 0, 1, 1], [], []>} : vector<2x32xf32>, vector<32x128xf32>, vector<2x128xf32> -> vector<2x128xf32>
    %cst_31 = arith.constant dense<0.000000e+00> : vector<2x128xf32>
    %103 = tpu.matmul %72, %12, %cst_31 {dimension_numbers = #tpu.dot_dimension_numbers<[1], [0], [0], [1], [0, 0, 1, 1], [], []>} : vector<2x32xf32>, vector<32x128xf32>, vector<2x128xf32> -> vector<2x128xf32>
    %104 = arith.addf %102, %103 : vector<2x128xf32>
    %105 = vector.broadcast %14 : vector<1x128xf32> to vector<2x128xf32>
    %106 = arith.addf %104, %105 : vector<2x128xf32>
    %107 = vector.extract_strided_slice %106 {offsets = [0, 0], sizes = [2, 32], strides = [1, 1]} : vector<2x128xf32> to vector<2x32xf32>
    %108 = arith.negf %107 : vector<2x32xf32>
    %109 = math.exp %108 : vector<2x32xf32>
    %cst_32 = arith.constant 1.000000e+00 : f32
    %110 = vector.broadcast %cst_32 : f32 to vector<2x32xf32>
    %111 = arith.addf %110, %109 : vector<2x32xf32>
    %112 = arith.divf %110, %111 : vector<2x32xf32>
    %113 = vector.extract_strided_slice %106 {offsets = [0, 32], sizes = [2, 32], strides = [1, 1]} : vector<2x128xf32> to vector<2x32xf32>
    %114 = arith.negf %113 : vector<2x32xf32>
    %115 = math.exp %114 : vector<2x32xf32>
    %cst_33 = arith.constant 1.000000e+00 : f32
    %116 = vector.broadcast %cst_33 : f32 to vector<2x32xf32>
    %117 = arith.addf %116, %115 : vector<2x32xf32>
    %118 = arith.divf %116, %117 : vector<2x32xf32>
    %119 = vector.extract_strided_slice %106 {offsets = [0, 64], sizes = [2, 32], strides = [1, 1]} : vector<2x128xf32> to vector<2x32xf32>
    %120 = math.tanh %119 : vector<2x32xf32>
    %121 = vector.extract_strided_slice %106 {offsets = [0, 96], sizes = [2, 32], strides = [1, 1]} : vector<2x128xf32> to vector<2x32xf32>
    %122 = arith.negf %121 : vector<2x32xf32>
    %123 = math.exp %122 : vector<2x32xf32>
    %cst_34 = arith.constant 1.000000e+00 : f32
    %124 = vector.broadcast %cst_34 : f32 to vector<2x32xf32>
    %125 = arith.addf %124, %123 : vector<2x32xf32>
    %126 = arith.divf %124, %125 : vector<2x32xf32>
    %127 = arith.mulf %118, %70 : vector<2x32xf32>
    %128 = arith.mulf %112, %120 : vector<2x32xf32>
    %129 = arith.addf %127, %128 : vector<2x32xf32>
    %130 = math.tanh %129 : vector<2x32xf32>
    %131 = arith.mulf %126, %130 : vector<2x32xf32>
    %c2 = arith.constant 2 : index
    %c0_35 = arith.constant 0 : index
    %132 = vector.load %arg16[%c2, %c0_35] : memref<8x32xf32, #tpu.memory_space<vmem>>, vector<2x32xf32>
    tpu.vector_store %arg16[%c2, %c0_35], %131 {strides = array<i32>} : memref<8x32xf32, #tpu.memory_space<vmem>>, vector<2x32xf32>,
    %cst_36 = arith.constant dense<0.000000e+00> : vector<2x128xf32>
    %133 = tpu.matmul %101, %9, %cst_36 {dimension_numbers = #tpu.dot_dimension_numbers<[1], [0], [0], [1], [0, 0, 1, 1], [], []>} : vector<2x32xf32>, vector<32x128xf32>, vector<2x128xf32> -> vector<2x128xf32>
    %134 = vector.broadcast %13 : vector<1x128xf32> to vector<2x128xf32>
    %135 = arith.addf %133, %134 : vector<2x128xf32>
    %136 = vector.extract_strided_slice %135 {offsets = [0, 0], sizes = [2, 32], strides = [1, 1]} : vector<2x128xf32> to vector<2x32xf32>
    %137 = arith.negf %136 : vector<2x32xf32>
    %138 = math.exp %137 : vector<2x32xf32>
    %cst_37 = arith.constant 1.000000e+00 : f32
    %139 = vector.broadcast %cst_37 : f32 to vector<2x32xf32>
    %140 = arith.addf %139, %138 : vector<2x32xf32>
    %141 = arith.divf %139, %140 : vector<2x32xf32>
    %142 = vector.extract_strided_slice %135 {offsets = [0, 32], sizes = [2, 32], strides = [1, 1]} : vector<2x128xf32> to vector<2x32xf32>
    %143 = arith.negf %142 : vector<2x32xf32>
    %144 = math.exp %143 : vector<2x32xf32>
    %cst_38 = arith.constant 1.000000e+00 : f32
    %145 = vector.broadcast %cst_38 : f32 to vector<2x32xf32>
    %146 = arith.addf %145, %144 : vector<2x32xf32>
    %147 = arith.divf %145, %146 : vector<2x32xf32>
    %148 = vector.extract_strided_slice %135 {offsets = [0, 64], sizes = [2, 32], strides = [1, 1]} : vector<2x128xf32> to vector<2x32xf32>
    %149 = math.tanh %148 : vector<2x32xf32>
    %150 = vector.extract_strided_slice %135 {offsets = [0, 96], sizes = [2, 32], strides = [1, 1]} : vector<2x128xf32> to vector<2x32xf32>
    %151 = arith.negf %150 : vector<2x32xf32>
    %152 = math.exp %151 : vector<2x32xf32>
    %cst_39 = arith.constant 1.000000e+00 : f32
    %153 = vector.broadcast %cst_39 : f32 to vector<2x32xf32>
    %154 = arith.addf %153, %152 : vector<2x32xf32>
    %155 = arith.divf %153, %154 : vector<2x32xf32>
    %156 = arith.mulf %147, %99 : vector<2x32xf32>
    %157 = arith.mulf %141, %149 : vector<2x32xf32>
    %158 = arith.addf %156, %157 : vector<2x32xf32>
    %159 = math.tanh %158 : vector<2x32xf32>
    %160 = arith.mulf %155, %159 : vector<2x32xf32>
    %cst_40 = arith.constant dense<0.000000e+00> : vector<2x128xf32>
    %161 = tpu.matmul %160, %11, %cst_40 {dimension_numbers = #tpu.dot_dimension_numbers<[1], [0], [0], [1], [0, 0, 1, 1], [], []>} : vector<2x32xf32>, vector<32x128xf32>, vector<2x128xf32> -> vector<2x128xf32>
    %cst_41 = arith.constant dense<0.000000e+00> : vector<2x128xf32>
    %162 = tpu.matmul %131, %12, %cst_41 {dimension_numbers = #tpu.dot_dimension_numbers<[1], [0], [0], [1], [0, 0, 1, 1], [], []>} : vector<2x32xf32>, vector<32x128xf32>, vector<2x128xf32> -> vector<2x128xf32>
    %163 = arith.addf %161, %162 : vector<2x128xf32>
    %164 = vector.broadcast %14 : vector<1x128xf32> to vector<2x128xf32>
    %165 = arith.addf %163, %164 : vector<2x128xf32>
    %166 = vector.extract_strided_slice %165 {offsets = [0, 0], sizes = [2, 32], strides = [1, 1]} : vector<2x128xf32> to vector<2x32xf32>
    %167 = arith.negf %166 : vector<2x32xf32>
    %168 = math.exp %167 : vector<2x32xf32>
    %cst_42 = arith.constant 1.000000e+00 : f32
    %169 = vector.broadcast %cst_42 : f32 to vector<2x32xf32>
    %170 = arith.addf %169, %168 : vector<2x32xf32>
    %171 = arith.divf %169, %170 : vector<2x32xf32>
    %172 = vector.extract_strided_slice %165 {offsets = [0, 32], sizes = [2, 32], strides = [1, 1]} : vector<2x128xf32> to vector<2x32xf32>
    %173 = arith.negf %172 : vector<2x32xf32>
    %174 = math.exp %173 : vector<2x32xf32>
    %cst_43 = arith.constant 1.000000e+00 : f32
    %175 = vector.broadcast %cst_43 : f32 to vector<2x32xf32>
    %176 = arith.addf %175, %174 : vector<2x32xf32>
    %177 = arith.divf %175, %176 : vector<2x32xf32>
    %178 = vector.extract_strided_slice %165 {offsets = [0, 64], sizes = [2, 32], strides = [1, 1]} : vector<2x128xf32> to vector<2x32xf32>
    %179 = math.tanh %178 : vector<2x32xf32>
    %180 = vector.extract_strided_slice %165 {offsets = [0, 96], sizes = [2, 32], strides = [1, 1]} : vector<2x128xf32> to vector<2x32xf32>
    %181 = arith.negf %180 : vector<2x32xf32>
    %182 = math.exp %181 : vector<2x32xf32>
    %cst_44 = arith.constant 1.000000e+00 : f32
    %183 = vector.broadcast %cst_44 : f32 to vector<2x32xf32>
    %184 = arith.addf %183, %182 : vector<2x32xf32>
    %185 = arith.divf %183, %184 : vector<2x32xf32>
    %186 = arith.mulf %177, %129 : vector<2x32xf32>
    %187 = arith.mulf %171, %179 : vector<2x32xf32>
    %188 = arith.addf %186, %187 : vector<2x32xf32>
    %189 = math.tanh %188 : vector<2x32xf32>
    %190 = arith.mulf %185, %189 : vector<2x32xf32>
    %c4 = arith.constant 4 : index
    %c0_45 = arith.constant 0 : index
    %191 = vector.load %arg16[%c4, %c0_45] : memref<8x32xf32, #tpu.memory_space<vmem>>, vector<2x32xf32>
    tpu.vector_store %arg16[%c4, %c0_45], %190 {strides = array<i32>} : memref<8x32xf32, #tpu.memory_space<vmem>>, vector<2x32xf32>,
    %cst_46 = arith.constant dense<0.000000e+00> : vector<2x128xf32>
    %192 = tpu.matmul %160, %9, %cst_46 {dimension_numbers = #tpu.dot_dimension_numbers<[1], [0], [0], [1], [0, 0, 1, 1], [], []>} : vector<2x32xf32>, vector<32x128xf32>, vector<2x128xf32> -> vector<2x128xf32>
    %193 = vector.broadcast %13 : vector<1x128xf32> to vector<2x128xf32>
    %194 = arith.addf %192, %193 : vector<2x128xf32>
    %195 = vector.extract_strided_slice %194 {offsets = [0, 0], sizes = [2, 32], strides = [1, 1]} : vector<2x128xf32> to vector<2x32xf32>
    %196 = arith.negf %195 : vector<2x32xf32>
    %197 = math.exp %196 : vector<2x32xf32>
    %cst_47 = arith.constant 1.000000e+00 : f32
    %198 = vector.broadcast %cst_47 : f32 to vector<2x32xf32>
    %199 = arith.addf %198, %197 : vector<2x32xf32>
    %200 = arith.divf %198, %199 : vector<2x32xf32>
    %201 = vector.extract_strided_slice %194 {offsets = [0, 32], sizes = [2, 32], strides = [1, 1]} : vector<2x128xf32> to vector<2x32xf32>
    %202 = arith.negf %201 : vector<2x32xf32>
    %203 = math.exp %202 : vector<2x32xf32>
    %cst_48 = arith.constant 1.000000e+00 : f32
    %204 = vector.broadcast %cst_48 : f32 to vector<2x32xf32>
    %205 = arith.addf %204, %203 : vector<2x32xf32>
    %206 = arith.divf %204, %205 : vector<2x32xf32>
    %207 = vector.extract_strided_slice %194 {offsets = [0, 64], sizes = [2, 32], strides = [1, 1]} : vector<2x128xf32> to vector<2x32xf32>
    %208 = math.tanh %207 : vector<2x32xf32>
    %209 = vector.extract_strided_slice %194 {offsets = [0, 96], sizes = [2, 32], strides = [1, 1]} : vector<2x128xf32> to vector<2x32xf32>
    %210 = arith.negf %209 : vector<2x32xf32>
    %211 = math.exp %210 : vector<2x32xf32>
    %cst_49 = arith.constant 1.000000e+00 : f32
    %212 = vector.broadcast %cst_49 : f32 to vector<2x32xf32>
    %213 = arith.addf %212, %211 : vector<2x32xf32>
    %214 = arith.divf %212, %213 : vector<2x32xf32>
    %215 = arith.mulf %206, %158 : vector<2x32xf32>
    %216 = arith.mulf %200, %208 : vector<2x32xf32>
    %217 = arith.addf %215, %216 : vector<2x32xf32>
    %218 = math.tanh %217 : vector<2x32xf32>
    %219 = arith.mulf %214, %218 : vector<2x32xf32>
    %cst_50 = arith.constant dense<0.000000e+00> : vector<2x128xf32>
    %220 = tpu.matmul %219, %11, %cst_50 {dimension_numbers = #tpu.dot_dimension_numbers<[1], [0], [0], [1], [0, 0, 1, 1], [], []>} : vector<2x32xf32>, vector<32x128xf32>, vector<2x128xf32> -> vector<2x128xf32>
    %cst_51 = arith.constant dense<0.000000e+00> : vector<2x128xf32>
    %221 = tpu.matmul %190, %12, %cst_51 {dimension_numbers = #tpu.dot_dimension_numbers<[1], [0], [0], [1], [0, 0, 1, 1], [], []>} : vector<2x32xf32>, vector<32x128xf32>, vector<2x128xf32> -> vector<2x128xf32>
    %222 = arith.addf %220, %221 : vector<2x128xf32>
    %223 = vector.broadcast %14 : vector<1x128xf32> to vector<2x128xf32>
    %224 = arith.addf %222, %223 : vector<2x128xf32>
    %225 = vector.extract_strided_slice %224 {offsets = [0, 0], sizes = [2, 32], strides = [1, 1]} : vector<2x128xf32> to vector<2x32xf32>
    %226 = arith.negf %225 : vector<2x32xf32>
    %227 = math.exp %226 : vector<2x32xf32>
    %cst_52 = arith.constant 1.000000e+00 : f32
    %228 = vector.broadcast %cst_52 : f32 to vector<2x32xf32>
    %229 = arith.addf %228, %227 : vector<2x32xf32>
    %230 = arith.divf %228, %229 : vector<2x32xf32>
    %231 = vector.extract_strided_slice %224 {offsets = [0, 32], sizes = [2, 32], strides = [1, 1]} : vector<2x128xf32> to vector<2x32xf32>
    %232 = arith.negf %231 : vector<2x32xf32>
    %233 = math.exp %232 : vector<2x32xf32>
    %cst_53 = arith.constant 1.000000e+00 : f32
    %234 = vector.broadcast %cst_53 : f32 to vector<2x32xf32>
    %235 = arith.addf %234, %233 : vector<2x32xf32>
    %236 = arith.divf %234, %235 : vector<2x32xf32>
    %237 = vector.extract_strided_slice %224 {offsets = [0, 64], sizes = [2, 32], strides = [1, 1]} : vector<2x128xf32> to vector<2x32xf32>
    %238 = math.tanh %237 : vector<2x32xf32>
    %239 = vector.extract_strided_slice %224 {offsets = [0, 96], sizes = [2, 32], strides = [1, 1]} : vector<2x128xf32> to vector<2x32xf32>
    %240 = arith.negf %239 : vector<2x32xf32>
    %241 = math.exp %240 : vector<2x32xf32>
    %cst_54 = arith.constant 1.000000e+00 : f32
    %242 = vector.broadcast %cst_54 : f32 to vector<2x32xf32>
    %243 = arith.addf %242, %241 : vector<2x32xf32>
    %244 = arith.divf %242, %243 : vector<2x32xf32>
    %245 = arith.mulf %236, %188 : vector<2x32xf32>
    %246 = arith.mulf %230, %238 : vector<2x32xf32>
    %247 = arith.addf %245, %246 : vector<2x32xf32>
    %248 = math.tanh %247 : vector<2x32xf32>
    %249 = arith.mulf %244, %248 : vector<2x32xf32>
    %c6 = arith.constant 6 : index
    %c0_55 = arith.constant 0 : index
    %250 = vector.load %arg16[%c6, %c0_55] : memref<8x32xf32, #tpu.memory_space<vmem>>, vector<2x32xf32>
    tpu.vector_store %arg16[%c6, %c0_55], %249 {strides = array<i32>} : memref<8x32xf32, #tpu.memory_space<vmem>>, vector<2x32xf32>,
    %c0_56 = arith.constant 0 : index
    %c0_57 = arith.constant 0 : index
    %251 = vector.load %arg16[%c0_56, %c0_57] : memref<8x32xf32, #tpu.memory_space<vmem>>, vector<8x32xf32>
    %c0_58 = arith.constant 0 : index
    %c0_59 = arith.constant 0 : index
    %252 = vector.load %arg8[%c0_58, %c0_59] : memref<32x128xf32, #tpu.memory_space<vmem>>, vector<32x128xf32>
    %cst_60 = arith.constant dense<0.000000e+00> : vector<8x128xf32>
    %253 = tpu.matmul %251, %252, %cst_60 {dimension_numbers = #tpu.dot_dimension_numbers<[1], [0], [0], [1], [0, 0, 1, 1], [], []>} : vector<8x32xf32>, vector<32x128xf32>, vector<8x128xf32> -> vector<8x128xf32>
    %c0_61 = arith.constant 0 : index
    %c0_62 = arith.constant 0 : index
    %254 = vector.load %arg10[%c0_61, %c0_62] : memref<1x128xf32, #tpu.memory_space<vmem>>, vector<1x128xf32>
    %255 = vector.broadcast %254 : vector<1x128xf32> to vector<8x128xf32>
    %256 = arith.addf %253, %255 : vector<8x128xf32>
    %cst_63 = arith.constant 0.000000e+00 : f32
    %257 = vector.broadcast %cst_63 : f32 to vector<8x32xf32>
    %cst_64 = arith.constant 0.000000e+00 : f32
    %258 = vector.broadcast %cst_64 : f32 to vector<8x32xf32>
    %cst_65 = arith.constant 0.000000e+00 : f32
    %259 = vector.broadcast %cst_65 : f32 to vector<8x32xf32>
    %cst_66 = arith.constant 0.000000e+00 : f32
    %260 = vector.broadcast %cst_66 : f32 to vector<8x32xf32>
    %c0_67 = arith.constant 0 : index
    %c0_68 = arith.constant 0 : index
    %261 = vector.load %arg9[%c0_67, %c0_68] : memref<32x128xf32, #tpu.memory_space<vmem>>, vector<32x128xf32>
    %c0_69 = arith.constant 0 : index
    %c0_70 = arith.constant 0 : index
    %262 = vector.load %arg11[%c0_69, %c0_70] : memref<64x128xf32, #tpu.memory_space<vmem>>, vector<64x128xf32>
    %263 = vector.extract_strided_slice %262 {offsets = [0, 0], sizes = [32, 128], strides = [1, 1]} : vector<64x128xf32> to vector<32x128xf32>
    %264 = vector.extract_strided_slice %262 {offsets = [32, 0], sizes = [32, 128], strides = [1, 1]} : vector<64x128xf32> to vector<32x128xf32>
    %c0_71 = arith.constant 0 : index
    %c0_72 = arith.constant 0 : index
    %265 = vector.load %arg12[%c0_71, %c0_72] : memref<1x128xf32, #tpu.memory_space<vmem>>, vector<1x128xf32>
    %cst_73 = arith.constant dense<0.000000e+00> : vector<8x128xf32>
    %266 = tpu.matmul %257, %261, %cst_73 {dimension_numbers = #tpu.dot_dimension_numbers<[1], [0], [0], [1], [0, 0, 1, 1], [], []>} : vector<8x32xf32>, vector<32x128xf32>, vector<8x128xf32> -> vector<8x128xf32>
    %267 = arith.addf %256, %266 : vector<8x128xf32>
    %268 = vector.extract_strided_slice %267 {offsets = [0, 0], sizes = [8, 32], strides = [1, 1]} : vector<8x128xf32> to vector<8x32xf32>
    %269 = arith.negf %268 : vector<8x32xf32>
    %270 = math.exp %269 : vector<8x32xf32>
    %cst_74 = arith.constant 1.000000e+00 : f32
    %271 = vector.broadcast %cst_74 : f32 to vector<8x32xf32>
    %272 = arith.addf %271, %270 : vector<8x32xf32>
    %273 = arith.divf %271, %272 : vector<8x32xf32>
    %274 = vector.extract_strided_slice %267 {offsets = [0, 32], sizes = [8, 32], strides = [1, 1]} : vector<8x128xf32> to vector<8x32xf32>
    %275 = arith.negf %274 : vector<8x32xf32>
    %276 = math.exp %275 : vector<8x32xf32>
    %cst_75 = arith.constant 1.000000e+00 : f32
    %277 = vector.broadcast %cst_75 : f32 to vector<8x32xf32>
    %278 = arith.addf %277, %276 : vector<8x32xf32>
    %279 = arith.divf %277, %278 : vector<8x32xf32>
    %280 = vector.extract_strided_slice %267 {offsets = [0, 64], sizes = [8, 32], strides = [1, 1]} : vector<8x128xf32> to vector<8x32xf32>
    %281 = math.tanh %280 : vector<8x32xf32>
    %282 = vector.extract_strided_slice %267 {offsets = [0, 96], sizes = [8, 32], strides = [1, 1]} : vector<8x128xf32> to vector<8x32xf32>
    %283 = arith.negf %282 : vector<8x32xf32>
    %284 = math.exp %283 : vector<8x32xf32>
    %cst_76 = arith.constant 1.000000e+00 : f32
    %285 = vector.broadcast %cst_76 : f32 to vector<8x32xf32>
    %286 = arith.addf %285, %284 : vector<8x32xf32>
    %287 = arith.divf %285, %286 : vector<8x32xf32>
    %288 = arith.mulf %279, %259 : vector<8x32xf32>
    %289 = arith.mulf %273, %281 : vector<8x32xf32>
    %290 = arith.addf %288, %289 : vector<8x32xf32>
    %291 = math.tanh %290 : vector<8x32xf32>
    %292 = arith.mulf %287, %291 : vector<8x32xf32>
    %cst_77 = arith.constant dense<0.000000e+00> : vector<8x128xf32>
    %293 = tpu.matmul %292, %263, %cst_77 {dimension_numbers = #tpu.dot_dimension_numbers<[1], [0], [0], [1], [0, 0, 1, 1], [], []>} : vector<8x32xf32>, vector<32x128xf32>, vector<8x128xf32> -> vector<8x128xf32>
    %cst_78 = arith.constant dense<0.000000e+00> : vector<8x128xf32>
    %294 = tpu.matmul %258, %264, %cst_78 {dimension_numbers = #tpu.dot_dimension_numbers<[1], [0], [0], [1], [0, 0, 1, 1], [], []>} : vector<8x32xf32>, vector<32x128xf32>, vector<8x128xf32> -> vector<8x128xf32>
    %295 = arith.addf %293, %294 : vector<8x128xf32>
    %296 = vector.broadcast %265 : vector<1x128xf32> to vector<8x128xf32>
    %297 = arith.addf %295, %296 : vector<8x128xf32>
    %298 = vector.extract_strided_slice %297 {offsets = [0, 0], sizes = [8, 32], strides = [1, 1]} : vector<8x128xf32> to vector<8x32xf32>
    %299 = arith.negf %298 : vector<8x32xf32>
    %300 = math.exp %299 : vector<8x32xf32>
    %cst_79 = arith.constant 1.000000e+00 : f32
    %301 = vector.broadcast %cst_79 : f32 to vector<8x32xf32>
    %302 = arith.addf %301, %300 : vector<8x32xf32>
    %303 = arith.divf %301, %302 : vector<8x32xf32>
    %304 = vector.extract_strided_slice %297 {offsets = [0, 32], sizes = [8, 32], strides = [1, 1]} : vector<8x128xf32> to vector<8x32xf32>
    %305 = arith.negf %304 : vector<8x32xf32>
    %306 = math.exp %305 : vector<8x32xf32>
    %cst_80 = arith.constant 1.000000e+00 : f32
    %307 = vector.broadcast %cst_80 : f32 to vector<8x32xf32>
    %308 = arith.addf %307, %306 : vector<8x32xf32>
    %309 = arith.divf %307, %308 : vector<8x32xf32>
    %310 = vector.extract_strided_slice %297 {offsets = [0, 64], sizes = [8, 32], strides = [1, 1]} : vector<8x128xf32> to vector<8x32xf32>
    %311 = math.tanh %310 : vector<8x32xf32>
    %312 = vector.extract_strided_slice %297 {offsets = [0, 96], sizes = [8, 32], strides = [1, 1]} : vector<8x128xf32> to vector<8x32xf32>
    %313 = arith.negf %312 : vector<8x32xf32>
    %314 = math.exp %313 : vector<8x32xf32>
    %cst_81 = arith.constant 1.000000e+00 : f32
    %315 = vector.broadcast %cst_81 : f32 to vector<8x32xf32>
    %316 = arith.addf %315, %314 : vector<8x32xf32>
    %317 = arith.divf %315, %316 : vector<8x32xf32>
    %318 = arith.mulf %309, %260 : vector<8x32xf32>
    %319 = arith.mulf %303, %311 : vector<8x32xf32>
    %320 = arith.addf %318, %319 : vector<8x32xf32>
    %321 = math.tanh %320 : vector<8x32xf32>
    %322 = arith.mulf %317, %321 : vector<8x32xf32>
    %c0_82 = arith.constant 0 : index
    %c0_83 = arith.constant 0 : index
    %323 = vector.load %arg17[%c0_82, %c0_83] : memref<64x32xf32, #tpu.memory_space<vmem>>, vector<8x32xf32>
    tpu.vector_store %arg17[%c0_82, %c0_83], %322 {strides = array<i32>} : memref<64x32xf32, #tpu.memory_space<vmem>>, vector<8x32xf32>,
    %cst_84 = arith.constant dense<0.000000e+00> : vector<8x128xf32>
    %324 = tpu.matmul %292, %261, %cst_84 {dimension_numbers = #tpu.dot_dimension_numbers<[1], [0], [0], [1], [0, 0, 1, 1], [], []>} : vector<8x32xf32>, vector<32x128xf32>, vector<8x128xf32> -> vector<8x128xf32>
    %325 = arith.addf %256, %324 : vector<8x128xf32>
    %326 = vector.extract_strided_slice %325 {offsets = [0, 0], sizes = [8, 32], strides = [1, 1]} : vector<8x128xf32> to vector<8x32xf32>
    %327 = arith.negf %326 : vector<8x32xf32>
    %328 = math.exp %327 : vector<8x32xf32>
    %cst_85 = arith.constant 1.000000e+00 : f32
    %329 = vector.broadcast %cst_85 : f32 to vector<8x32xf32>
    %330 = arith.addf %329, %328 : vector<8x32xf32>
    %331 = arith.divf %329, %330 : vector<8x32xf32>
    %332 = vector.extract_strided_slice %325 {offsets = [0, 32], sizes = [8, 32], strides = [1, 1]} : vector<8x128xf32> to vector<8x32xf32>
    %333 = arith.negf %332 : vector<8x32xf32>
    %334 = math.exp %333 : vector<8x32xf32>
    %cst_86 = arith.constant 1.000000e+00 : f32
    %335 = vector.broadcast %cst_86 : f32 to vector<8x32xf32>
    %336 = arith.addf %335, %334 : vector<8x32xf32>
    %337 = arith.divf %335, %336 : vector<8x32xf32>
    %338 = vector.extract_strided_slice %325 {offsets = [0, 64], sizes = [8, 32], strides = [1, 1]} : vector<8x128xf32> to vector<8x32xf32>
    %339 = math.tanh %338 : vector<8x32xf32>
    %340 = vector.extract_strided_slice %325 {offsets = [0, 96], sizes = [8, 32], strides = [1, 1]} : vector<8x128xf32> to vector<8x32xf32>
    %341 = arith.negf %340 : vector<8x32xf32>
    %342 = math.exp %341 : vector<8x32xf32>
    %cst_87 = arith.constant 1.000000e+00 : f32
    %343 = vector.broadcast %cst_87 : f32 to vector<8x32xf32>
    %344 = arith.addf %343, %342 : vector<8x32xf32>
    %345 = arith.divf %343, %344 : vector<8x32xf32>
    %346 = arith.mulf %337, %290 : vector<8x32xf32>
    %347 = arith.mulf %331, %339 : vector<8x32xf32>
    %348 = arith.addf %346, %347 : vector<8x32xf32>
    %349 = math.tanh %348 : vector<8x32xf32>
    %350 = arith.mulf %345, %349 : vector<8x32xf32>
    %cst_88 = arith.constant dense<0.000000e+00> : vector<8x128xf32>
    %351 = tpu.matmul %350, %263, %cst_88 {dimension_numbers = #tpu.dot_dimension_numbers<[1], [0], [0], [1], [0, 0, 1, 1], [], []>} : vector<8x32xf32>, vector<32x128xf32>, vector<8x128xf32> -> vector<8x128xf32>
    %cst_89 = arith.constant dense<0.000000e+00> : vector<8x128xf32>
    %352 = tpu.matmul %322, %264, %cst_89 {dimension_numbers = #tpu.dot_dimension_numbers<[1], [0], [0], [1], [0, 0, 1, 1], [], []>} : vector<8x32xf32>, vector<32x128xf32>, vector<8x128xf32> -> vector<8x128xf32>
    %353 = arith.addf %351, %352 : vector<8x128xf32>
    %354 = vector.broadcast %265 : vector<1x128xf32> to vector<8x128xf32>
    %355 = arith.addf %353, %354 : vector<8x128xf32>
    %356 = vector.extract_strided_slice %355 {offsets = [0, 0], sizes = [8, 32], strides = [1, 1]} : vector<8x128xf32> to vector<8x32xf32>
    %357 = arith.negf %356 : vector<8x32xf32>
    %358 = math.exp %357 : vector<8x32xf32>
    %cst_90 = arith.constant 1.000000e+00 : f32
    %359 = vector.broadcast %cst_90 : f32 to vector<8x32xf32>
    %360 = arith.addf %359, %358 : vector<8x32xf32>
    %361 = arith.divf %359, %360 : vector<8x32xf32>
    %362 = vector.extract_strided_slice %355 {offsets = [0, 32], sizes = [8, 32], strides = [1, 1]} : vector<8x128xf32> to vector<8x32xf32>
    %363 = arith.negf %362 : vector<8x32xf32>
    %364 = math.exp %363 : vector<8x32xf32>
    %cst_91 = arith.constant 1.000000e+00 : f32
    %365 = vector.broadcast %cst_91 : f32 to vector<8x32xf32>
    %366 = arith.addf %365, %364 : vector<8x32xf32>
    %367 = arith.divf %365, %366 : vector<8x32xf32>
    %368 = vector.extract_strided_slice %355 {offsets = [0, 64], sizes = [8, 32], strides = [1, 1]} : vector<8x128xf32> to vector<8x32xf32>
    %369 = math.tanh %368 : vector<8x32xf32>
    %370 = vector.extract_strided_slice %355 {offsets = [0, 96], sizes = [8, 32], strides = [1, 1]} : vector<8x128xf32> to vector<8x32xf32>
    %371 = arith.negf %370 : vector<8x32xf32>
    %372 = math.exp %371 : vector<8x32xf32>
    %cst_92 = arith.constant 1.000000e+00 : f32
    %373 = vector.broadcast %cst_92 : f32 to vector<8x32xf32>
    %374 = arith.addf %373, %372 : vector<8x32xf32>
    %375 = arith.divf %373, %374 : vector<8x32xf32>
    %376 = arith.mulf %367, %320 : vector<8x32xf32>
    %377 = arith.mulf %361, %369 : vector<8x32xf32>
    %378 = arith.addf %376, %377 : vector<8x32xf32>
    %379 = math.tanh %378 : vector<8x32xf32>
    %380 = arith.mulf %375, %379 : vector<8x32xf32>
    %c8 = arith.constant 8 : index
    %c0_93 = arith.constant 0 : index
    %381 = vector.load %arg17[%c8, %c0_93] : memref<64x32xf32, #tpu.memory_space<vmem>>, vector<8x32xf32>
    tpu.vector_store %arg17[%c8, %c0_93], %380 {strides = array<i32>} : memref<64x32xf32, #tpu.memory_space<vmem>>, vector<8x32xf32>,
    %cst_94 = arith.constant dense<0.000000e+00> : vector<8x128xf32>
    %382 = tpu.matmul %350, %261, %cst_94 {dimension_numbers = #tpu.dot_dimension_numbers<[1], [0], [0], [1], [0, 0, 1, 1], [], []>} : vector<8x32xf32>, vector<32x128xf32>, vector<8x128xf32> -> vector<8x128xf32>
    %383 = arith.addf %256, %382 : vector<8x128xf32>
    %384 = vector.extract_strided_slice %383 {offsets = [0, 0], sizes = [8, 32], strides = [1, 1]} : vector<8x128xf32> to vector<8x32xf32>
    %385 = arith.negf %384 : vector<8x32xf32>
    %386 = math.exp %385 : vector<8x32xf32>
    %cst_95 = arith.constant 1.000000e+00 : f32
    %387 = vector.broadcast %cst_95 : f32 to vector<8x32xf32>
    %388 = arith.addf %387, %386 : vector<8x32xf32>
    %389 = arith.divf %387, %388 : vector<8x32xf32>
    %390 = vector.extract_strided_slice %383 {offsets = [0, 32], sizes = [8, 32], strides = [1, 1]} : vector<8x128xf32> to vector<8x32xf32>
    %391 = arith.negf %390 : vector<8x32xf32>
    %392 = math.exp %391 : vector<8x32xf32>
    %cst_96 = arith.constant 1.000000e+00 : f32
    %393 = vector.broadcast %cst_96 : f32 to vector<8x32xf32>
    %394 = arith.addf %393, %392 : vector<8x32xf32>
    %395 = arith.divf %393, %394 : vector<8x32xf32>
    %396 = vector.extract_strided_slice %383 {offsets = [0, 64], sizes = [8, 32], strides = [1, 1]} : vector<8x128xf32> to vector<8x32xf32>
    %397 = math.tanh %396 : vector<8x32xf32>
    %398 = vector.extract_strided_slice %383 {offsets = [0, 96], sizes = [8, 32], strides = [1, 1]} : vector<8x128xf32> to vector<8x32xf32>
    %399 = arith.negf %398 : vector<8x32xf32>
    %400 = math.exp %399 : vector<8x32xf32>
    %cst_97 = arith.constant 1.000000e+00 : f32
    %401 = vector.broadcast %cst_97 : f32 to vector<8x32xf32>
    %402 = arith.addf %401, %400 : vector<8x32xf32>
    %403 = arith.divf %401, %402 : vector<8x32xf32>
    %404 = arith.mulf %395, %348 : vector<8x32xf32>
    %405 = arith.mulf %389, %397 : vector<8x32xf32>
    %406 = arith.addf %404, %405 : vector<8x32xf32>
    %407 = math.tanh %406 : vector<8x32xf32>
    %408 = arith.mulf %403, %407 : vector<8x32xf32>
    %cst_98 = arith.constant dense<0.000000e+00> : vector<8x128xf32>
    %409 = tpu.matmul %408, %263, %cst_98 {dimension_numbers = #tpu.dot_dimension_numbers<[1], [0], [0], [1], [0, 0, 1, 1], [], []>} : vector<8x32xf32>, vector<32x128xf32>, vector<8x128xf32> -> vector<8x128xf32>
    %cst_99 = arith.constant dense<0.000000e+00> : vector<8x128xf32>
    %410 = tpu.matmul %380, %264, %cst_99 {dimension_numbers = #tpu.dot_dimension_numbers<[1], [0], [0], [1], [0, 0, 1, 1], [], []>} : vector<8x32xf32>, vector<32x128xf32>, vector<8x128xf32> -> vector<8x128xf32>
    %411 = arith.addf %409, %410 : vector<8x128xf32>
    %412 = vector.broadcast %265 : vector<1x128xf32> to vector<8x128xf32>
    %413 = arith.addf %411, %412 : vector<8x128xf32>
    %414 = vector.extract_strided_slice %413 {offsets = [0, 0], sizes = [8, 32], strides = [1, 1]} : vector<8x128xf32> to vector<8x32xf32>
    %415 = arith.negf %414 : vector<8x32xf32>
    %416 = math.exp %415 : vector<8x32xf32>
    %cst_100 = arith.constant 1.000000e+00 : f32
    %417 = vector.broadcast %cst_100 : f32 to vector<8x32xf32>
    %418 = arith.addf %417, %416 : vector<8x32xf32>
    %419 = arith.divf %417, %418 : vector<8x32xf32>
    %420 = vector.extract_strided_slice %413 {offsets = [0, 32], sizes = [8, 32], strides = [1, 1]} : vector<8x128xf32> to vector<8x32xf32>
    %421 = arith.negf %420 : vector<8x32xf32>
    %422 = math.exp %421 : vector<8x32xf32>
    %cst_101 = arith.constant 1.000000e+00 : f32
    %423 = vector.broadcast %cst_101 : f32 to vector<8x32xf32>
    %424 = arith.addf %423, %422 : vector<8x32xf32>
    %425 = arith.divf %423, %424 : vector<8x32xf32>
    %426 = vector.extract_strided_slice %413 {offsets = [0, 64], sizes = [8, 32], strides = [1, 1]} : vector<8x128xf32> to vector<8x32xf32>
    %427 = math.tanh %426 : vector<8x32xf32>
    %428 = vector.extract_strided_slice %413 {offsets = [0, 96], sizes = [8, 32], strides = [1, 1]} : vector<8x128xf32> to vector<8x32xf32>
    %429 = arith.negf %428 : vector<8x32xf32>
    %430 = math.exp %429 : vector<8x32xf32>
    %cst_102 = arith.constant 1.000000e+00 : f32
    %431 = vector.broadcast %cst_102 : f32 to vector<8x32xf32>
    %432 = arith.addf %431, %430 : vector<8x32xf32>
    %433 = arith.divf %431, %432 : vector<8x32xf32>
    %434 = arith.mulf %425, %378 : vector<8x32xf32>
    %435 = arith.mulf %419, %427 : vector<8x32xf32>
    %436 = arith.addf %434, %435 : vector<8x32xf32>
    %437 = math.tanh %436 : vector<8x32xf32>
    %438 = arith.mulf %433, %437 : vector<8x32xf32>
    %c16 = arith.constant 16 : index
    %c0_103 = arith.constant 0 : index
    %439 = vector.load %arg17[%c16, %c0_103] : memref<64x32xf32, #tpu.memory_space<vmem>>, vector<8x32xf32>
    tpu.vector_store %arg17[%c16, %c0_103], %438 {strides = array<i32>} : memref<64x32xf32, #tpu.memory_space<vmem>>, vector<8x32xf32>,
    %cst_104 = arith.constant dense<0.000000e+00> : vector<8x128xf32>
    %440 = tpu.matmul %408, %261, %cst_104 {dimension_numbers = #tpu.dot_dimension_numbers<[1], [0], [0], [1], [0, 0, 1, 1], [], []>} : vector<8x32xf32>, vector<32x128xf32>, vector<8x128xf32> -> vector<8x128xf32>
    %441 = arith.addf %256, %440 : vector<8x128xf32>
    %442 = vector.extract_strided_slice %441 {offsets = [0, 0], sizes = [8, 32], strides = [1, 1]} : vector<8x128xf32> to vector<8x32xf32>
    %443 = arith.negf %442 : vector<8x32xf32>
    %444 = math.exp %443 : vector<8x32xf32>
    %cst_105 = arith.constant 1.000000e+00 : f32
    %445 = vector.broadcast %cst_105 : f32 to vector<8x32xf32>
    %446 = arith.addf %445, %444 : vector<8x32xf32>
    %447 = arith.divf %445, %446 : vector<8x32xf32>
    %448 = vector.extract_strided_slice %441 {offsets = [0, 32], sizes = [8, 32], strides = [1, 1]} : vector<8x128xf32> to vector<8x32xf32>
    %449 = arith.negf %448 : vector<8x32xf32>
    %450 = math.exp %449 : vector<8x32xf32>
    %cst_106 = arith.constant 1.000000e+00 : f32
    %451 = vector.broadcast %cst_106 : f32 to vector<8x32xf32>
    %452 = arith.addf %451, %450 : vector<8x32xf32>
    %453 = arith.divf %451, %452 : vector<8x32xf32>
    %454 = vector.extract_strided_slice %441 {offsets = [0, 64], sizes = [8, 32], strides = [1, 1]} : vector<8x128xf32> to vector<8x32xf32>
    %455 = math.tanh %454 : vector<8x32xf32>
    %456 = vector.extract_strided_slice %441 {offsets = [0, 96], sizes = [8, 32], strides = [1, 1]} : vector<8x128xf32> to vector<8x32xf32>
    %457 = arith.negf %456 : vector<8x32xf32>
    %458 = math.exp %457 : vector<8x32xf32>
    %cst_107 = arith.constant 1.000000e+00 : f32
    %459 = vector.broadcast %cst_107 : f32 to vector<8x32xf32>
    %460 = arith.addf %459, %458 : vector<8x32xf32>
    %461 = arith.divf %459, %460 : vector<8x32xf32>
    %462 = arith.mulf %453, %406 : vector<8x32xf32>
    %463 = arith.mulf %447, %455 : vector<8x32xf32>
    %464 = arith.addf %462, %463 : vector<8x32xf32>
    %465 = math.tanh %464 : vector<8x32xf32>
    %466 = arith.mulf %461, %465 : vector<8x32xf32>
    %cst_108 = arith.constant dense<0.000000e+00> : vector<8x128xf32>
    %467 = tpu.matmul %466, %263, %cst_108 {dimension_numbers = #tpu.dot_dimension_numbers<[1], [0], [0], [1], [0, 0, 1, 1], [], []>} : vector<8x32xf32>, vector<32x128xf32>, vector<8x128xf32> -> vector<8x128xf32>
    %cst_109 = arith.constant dense<0.000000e+00> : vector<8x128xf32>
    %468 = tpu.matmul %438, %264, %cst_109 {dimension_numbers = #tpu.dot_dimension_numbers<[1], [0], [0], [1], [0, 0, 1, 1], [], []>} : vector<8x32xf32>, vector<32x128xf32>, vector<8x128xf32> -> vector<8x128xf32>
    %469 = arith.addf %467, %468 : vector<8x128xf32>
    %470 = vector.broadcast %265 : vector<1x128xf32> to vector<8x128xf32>
    %471 = arith.addf %469, %470 : vector<8x128xf32>
    %472 = vector.extract_strided_slice %471 {offsets = [0, 0], sizes = [8, 32], strides = [1, 1]} : vector<8x128xf32> to vector<8x32xf32>
    %473 = arith.negf %472 : vector<8x32xf32>
    %474 = math.exp %473 : vector<8x32xf32>
    %cst_110 = arith.constant 1.000000e+00 : f32
    %475 = vector.broadcast %cst_110 : f32 to vector<8x32xf32>
    %476 = arith.addf %475, %474 : vector<8x32xf32>
    %477 = arith.divf %475, %476 : vector<8x32xf32>
    %478 = vector.extract_strided_slice %471 {offsets = [0, 32], sizes = [8, 32], strides = [1, 1]} : vector<8x128xf32> to vector<8x32xf32>
    %479 = arith.negf %478 : vector<8x32xf32>
    %480 = math.exp %479 : vector<8x32xf32>
    %cst_111 = arith.constant 1.000000e+00 : f32
    %481 = vector.broadcast %cst_111 : f32 to vector<8x32xf32>
    %482 = arith.addf %481, %480 : vector<8x32xf32>
    %483 = arith.divf %481, %482 : vector<8x32xf32>
    %484 = vector.extract_strided_slice %471 {offsets = [0, 64], sizes = [8, 32], strides = [1, 1]} : vector<8x128xf32> to vector<8x32xf32>
    %485 = math.tanh %484 : vector<8x32xf32>
    %486 = vector.extract_strided_slice %471 {offsets = [0, 96], sizes = [8, 32], strides = [1, 1]} : vector<8x128xf32> to vector<8x32xf32>
    %487 = arith.negf %486 : vector<8x32xf32>
    %488 = math.exp %487 : vector<8x32xf32>
    %cst_112 = arith.constant 1.000000e+00 : f32
    %489 = vector.broadcast %cst_112 : f32 to vector<8x32xf32>
    %490 = arith.addf %489, %488 : vector<8x32xf32>
    %491 = arith.divf %489, %490 : vector<8x32xf32>
    %492 = arith.mulf %483, %436 : vector<8x32xf32>
    %493 = arith.mulf %477, %485 : vector<8x32xf32>
    %494 = arith.addf %492, %493 : vector<8x32xf32>
    %495 = math.tanh %494 : vector<8x32xf32>
    %496 = arith.mulf %491, %495 : vector<8x32xf32>
    %c24 = arith.constant 24 : index
    %c0_113 = arith.constant 0 : index
    %497 = vector.load %arg17[%c24, %c0_113] : memref<64x32xf32, #tpu.memory_space<vmem>>, vector<8x32xf32>
    tpu.vector_store %arg17[%c24, %c0_113], %496 {strides = array<i32>} : memref<64x32xf32, #tpu.memory_space<vmem>>, vector<8x32xf32>,
    %cst_114 = arith.constant dense<0.000000e+00> : vector<8x128xf32>
    %498 = tpu.matmul %466, %261, %cst_114 {dimension_numbers = #tpu.dot_dimension_numbers<[1], [0], [0], [1], [0, 0, 1, 1], [], []>} : vector<8x32xf32>, vector<32x128xf32>, vector<8x128xf32> -> vector<8x128xf32>
    %499 = arith.addf %256, %498 : vector<8x128xf32>
    %500 = vector.extract_strided_slice %499 {offsets = [0, 0], sizes = [8, 32], strides = [1, 1]} : vector<8x128xf32> to vector<8x32xf32>
    %501 = arith.negf %500 : vector<8x32xf32>
    %502 = math.exp %501 : vector<8x32xf32>
    %cst_115 = arith.constant 1.000000e+00 : f32
    %503 = vector.broadcast %cst_115 : f32 to vector<8x32xf32>
    %504 = arith.addf %503, %502 : vector<8x32xf32>
    %505 = arith.divf %503, %504 : vector<8x32xf32>
    %506 = vector.extract_strided_slice %499 {offsets = [0, 32], sizes = [8, 32], strides = [1, 1]} : vector<8x128xf32> to vector<8x32xf32>
    %507 = arith.negf %506 : vector<8x32xf32>
    %508 = math.exp %507 : vector<8x32xf32>
    %cst_116 = arith.constant 1.000000e+00 : f32
    %509 = vector.broadcast %cst_116 : f32 to vector<8x32xf32>
    %510 = arith.addf %509, %508 : vector<8x32xf32>
    %511 = arith.divf %509, %510 : vector<8x32xf32>
    %512 = vector.extract_strided_slice %499 {offsets = [0, 64], sizes = [8, 32], strides = [1, 1]} : vector<8x128xf32> to vector<8x32xf32>
    %513 = math.tanh %512 : vector<8x32xf32>
    %514 = vector.extract_strided_slice %499 {offsets = [0, 96], sizes = [8, 32], strides = [1, 1]} : vector<8x128xf32> to vector<8x32xf32>
    %515 = arith.negf %514 : vector<8x32xf32>
    %516 = math.exp %515 : vector<8x32xf32>
    %cst_117 = arith.constant 1.000000e+00 : f32
    %517 = vector.broadcast %cst_117 : f32 to vector<8x32xf32>
    %518 = arith.addf %517, %516 : vector<8x32xf32>
    %519 = arith.divf %517, %518 : vector<8x32xf32>
    %520 = arith.mulf %511, %464 : vector<8x32xf32>
    %521 = arith.mulf %505, %513 : vector<8x32xf32>
    %522 = arith.addf %520, %521 : vector<8x32xf32>
    %523 = math.tanh %522 : vector<8x32xf32>
    %524 = arith.mulf %519, %523 : vector<8x32xf32>
    %cst_118 = arith.constant dense<0.000000e+00> : vector<8x128xf32>
    %525 = tpu.matmul %524, %263, %cst_118 {dimension_numbers = #tpu.dot_dimension_numbers<[1], [0], [0], [1], [0, 0, 1, 1], [], []>} : vector<8x32xf32>, vector<32x128xf32>, vector<8x128xf32> -> vector<8x128xf32>
    %cst_119 = arith.constant dense<0.000000e+00> : vector<8x128xf32>
    %526 = tpu.matmul %496, %264, %cst_119 {dimension_numbers = #tpu.dot_dimension_numbers<[1], [0], [0], [1], [0, 0, 1, 1], [], []>} : vector<8x32xf32>, vector<32x128xf32>, vector<8x128xf32> -> vector<8x128xf32>
    %527 = arith.addf %525, %526 : vector<8x128xf32>
    %528 = vector.broadcast %265 : vector<1x128xf32> to vector<8x128xf32>
    %529 = arith.addf %527, %528 : vector<8x128xf32>
    %530 = vector.extract_strided_slice %529 {offsets = [0, 0], sizes = [8, 32], strides = [1, 1]} : vector<8x128xf32> to vector<8x32xf32>
    %531 = arith.negf %530 : vector<8x32xf32>
    %532 = math.exp %531 : vector<8x32xf32>
    %cst_120 = arith.constant 1.000000e+00 : f32
    %533 = vector.broadcast %cst_120 : f32 to vector<8x32xf32>
    %534 = arith.addf %533, %532 : vector<8x32xf32>
    %535 = arith.divf %533, %534 : vector<8x32xf32>
    %536 = vector.extract_strided_slice %529 {offsets = [0, 32], sizes = [8, 32], strides = [1, 1]} : vector<8x128xf32> to vector<8x32xf32>
    %537 = arith.negf %536 : vector<8x32xf32>
    %538 = math.exp %537 : vector<8x32xf32>
    %cst_121 = arith.constant 1.000000e+00 : f32
    %539 = vector.broadcast %cst_121 : f32 to vector<8x32xf32>
    %540 = arith.addf %539, %538 : vector<8x32xf32>
    %541 = arith.divf %539, %540 : vector<8x32xf32>
    %542 = vector.extract_strided_slice %529 {offsets = [0, 64], sizes = [8, 32], strides = [1, 1]} : vector<8x128xf32> to vector<8x32xf32>
    %543 = math.tanh %542 : vector<8x32xf32>
    %544 = vector.extract_strided_slice %529 {offsets = [0, 96], sizes = [8, 32], strides = [1, 1]} : vector<8x128xf32> to vector<8x32xf32>
    %545 = arith.negf %544 : vector<8x32xf32>
    %546 = math.exp %545 : vector<8x32xf32>
    %cst_122 = arith.constant 1.000000e+00 : f32
    %547 = vector.broadcast %cst_122 : f32 to vector<8x32xf32>
    %548 = arith.addf %547, %546 : vector<8x32xf32>
    %549 = arith.divf %547, %548 : vector<8x32xf32>
    %550 = arith.mulf %541, %494 : vector<8x32xf32>
    %551 = arith.mulf %535, %543 : vector<8x32xf32>
    %552 = arith.addf %550, %551 : vector<8x32xf32>
    %553 = math.tanh %552 : vector<8x32xf32>
    %554 = arith.mulf %549, %553 : vector<8x32xf32>
    %c32 = arith.constant 32 : index
    %c0_123 = arith.constant 0 : index
    %555 = vector.load %arg17[%c32, %c0_123] : memref<64x32xf32, #tpu.memory_space<vmem>>, vector<8x32xf32>
    tpu.vector_store %arg17[%c32, %c0_123], %554 {strides = array<i32>} : memref<64x32xf32, #tpu.memory_space<vmem>>, vector<8x32xf32>,
    %cst_124 = arith.constant dense<0.000000e+00> : vector<8x128xf32>
    %556 = tpu.matmul %524, %261, %cst_124 {dimension_numbers = #tpu.dot_dimension_numbers<[1], [0], [0], [1], [0, 0, 1, 1], [], []>} : vector<8x32xf32>, vector<32x128xf32>, vector<8x128xf32> -> vector<8x128xf32>
    %557 = arith.addf %256, %556 : vector<8x128xf32>
    %558 = vector.extract_strided_slice %557 {offsets = [0, 0], sizes = [8, 32], strides = [1, 1]} : vector<8x128xf32> to vector<8x32xf32>
    %559 = arith.negf %558 : vector<8x32xf32>
    %560 = math.exp %559 : vector<8x32xf32>
    %cst_125 = arith.constant 1.000000e+00 : f32
    %561 = vector.broadcast %cst_125 : f32 to vector<8x32xf32>
    %562 = arith.addf %561, %560 : vector<8x32xf32>
    %563 = arith.divf %561, %562 : vector<8x32xf32>
    %564 = vector.extract_strided_slice %557 {offsets = [0, 32], sizes = [8, 32], strides = [1, 1]} : vector<8x128xf32> to vector<8x32xf32>
    %565 = arith.negf %564 : vector<8x32xf32>
    %566 = math.exp %565 : vector<8x32xf32>
    %cst_126 = arith.constant 1.000000e+00 : f32
    %567 = vector.broadcast %cst_126 : f32 to vector<8x32xf32>
    %568 = arith.addf %567, %566 : vector<8x32xf32>
    %569 = arith.divf %567, %568 : vector<8x32xf32>
    %570 = vector.extract_strided_slice %557 {offsets = [0, 64], sizes = [8, 32], strides = [1, 1]} : vector<8x128xf32> to vector<8x32xf32>
    %571 = math.tanh %570 : vector<8x32xf32>
    %572 = vector.extract_strided_slice %557 {offsets = [0, 96], sizes = [8, 32], strides = [1, 1]} : vector<8x128xf32> to vector<8x32xf32>
    %573 = arith.negf %572 : vector<8x32xf32>
    %574 = math.exp %573 : vector<8x32xf32>
    %cst_127 = arith.constant 1.000000e+00 : f32
    %575 = vector.broadcast %cst_127 : f32 to vector<8x32xf32>
    %576 = arith.addf %575, %574 : vector<8x32xf32>
    %577 = arith.divf %575, %576 : vector<8x32xf32>
    %578 = arith.mulf %569, %522 : vector<8x32xf32>
    %579 = arith.mulf %563, %571 : vector<8x32xf32>
    %580 = arith.addf %578, %579 : vector<8x32xf32>
    %581 = math.tanh %580 : vector<8x32xf32>
    %582 = arith.mulf %577, %581 : vector<8x32xf32>
    %cst_128 = arith.constant dense<0.000000e+00> : vector<8x128xf32>
    %583 = tpu.matmul %582, %263, %cst_128 {dimension_numbers = #tpu.dot_dimension_numbers<[1], [0], [0], [1], [0, 0, 1, 1], [], []>} : vector<8x32xf32>, vector<32x128xf32>, vector<8x128xf32> -> vector<8x128xf32>
    %cst_129 = arith.constant dense<0.000000e+00> : vector<8x128xf32>
    %584 = tpu.matmul %554, %264, %cst_129 {dimension_numbers = #tpu.dot_dimension_numbers<[1], [0], [0], [1], [0, 0, 1, 1], [], []>} : vector<8x32xf32>, vector<32x128xf32>, vector<8x128xf32> -> vector<8x128xf32>
    %585 = arith.addf %583, %584 : vector<8x128xf32>
    %586 = vector.broadcast %265 : vector<1x128xf32> to vector<8x128xf32>
    %587 = arith.addf %585, %586 : vector<8x128xf32>
    %588 = vector.extract_strided_slice %587 {offsets = [0, 0], sizes = [8, 32], strides = [1, 1]} : vector<8x128xf32> to vector<8x32xf32>
    %589 = arith.negf %588 : vector<8x32xf32>
    %590 = math.exp %589 : vector<8x32xf32>
    %cst_130 = arith.constant 1.000000e+00 : f32
    %591 = vector.broadcast %cst_130 : f32 to vector<8x32xf32>
    %592 = arith.addf %591, %590 : vector<8x32xf32>
    %593 = arith.divf %591, %592 : vector<8x32xf32>
    %594 = vector.extract_strided_slice %587 {offsets = [0, 32], sizes = [8, 32], strides = [1, 1]} : vector<8x128xf32> to vector<8x32xf32>
    %595 = arith.negf %594 : vector<8x32xf32>
    %596 = math.exp %595 : vector<8x32xf32>
    %cst_131 = arith.constant 1.000000e+00 : f32
    %597 = vector.broadcast %cst_131 : f32 to vector<8x32xf32>
    %598 = arith.addf %597, %596 : vector<8x32xf32>
    %599 = arith.divf %597, %598 : vector<8x32xf32>
    %600 = vector.extract_strided_slice %587 {offsets = [0, 64], sizes = [8, 32], strides = [1, 1]} : vector<8x128xf32> to vector<8x32xf32>
    %601 = math.tanh %600 : vector<8x32xf32>
    %602 = vector.extract_strided_slice %587 {offsets = [0, 96], sizes = [8, 32], strides = [1, 1]} : vector<8x128xf32> to vector<8x32xf32>
    %603 = arith.negf %602 : vector<8x32xf32>
    %604 = math.exp %603 : vector<8x32xf32>
    %cst_132 = arith.constant 1.000000e+00 : f32
    %605 = vector.broadcast %cst_132 : f32 to vector<8x32xf32>
    %606 = arith.addf %605, %604 : vector<8x32xf32>
    %607 = arith.divf %605, %606 : vector<8x32xf32>
    %608 = arith.mulf %599, %552 : vector<8x32xf32>
    %609 = arith.mulf %593, %601 : vector<8x32xf32>
    %610 = arith.addf %608, %609 : vector<8x32xf32>
    %611 = math.tanh %610 : vector<8x32xf32>
    %612 = arith.mulf %607, %611 : vector<8x32xf32>
    %c40 = arith.constant 40 : index
    %c0_133 = arith.constant 0 : index
    %613 = vector.load %arg17[%c40, %c0_133] : memref<64x32xf32, #tpu.memory_space<vmem>>, vector<8x32xf32>
    tpu.vector_store %arg17[%c40, %c0_133], %612 {strides = array<i32>} : memref<64x32xf32, #tpu.memory_space<vmem>>, vector<8x32xf32>,
    %cst_134 = arith.constant dense<0.000000e+00> : vector<8x128xf32>
    %614 = tpu.matmul %582, %261, %cst_134 {dimension_numbers = #tpu.dot_dimension_numbers<[1], [0], [0], [1], [0, 0, 1, 1], [], []>} : vector<8x32xf32>, vector<32x128xf32>, vector<8x128xf32> -> vector<8x128xf32>
    %615 = arith.addf %256, %614 : vector<8x128xf32>
    %616 = vector.extract_strided_slice %615 {offsets = [0, 0], sizes = [8, 32], strides = [1, 1]} : vector<8x128xf32> to vector<8x32xf32>
    %617 = arith.negf %616 : vector<8x32xf32>
    %618 = math.exp %617 : vector<8x32xf32>
    %cst_135 = arith.constant 1.000000e+00 : f32
    %619 = vector.broadcast %cst_135 : f32 to vector<8x32xf32>
    %620 = arith.addf %619, %618 : vector<8x32xf32>
    %621 = arith.divf %619, %620 : vector<8x32xf32>
    %622 = vector.extract_strided_slice %615 {offsets = [0, 32], sizes = [8, 32], strides = [1, 1]} : vector<8x128xf32> to vector<8x32xf32>
    %623 = arith.negf %622 : vector<8x32xf32>
    %624 = math.exp %623 : vector<8x32xf32>
    %cst_136 = arith.constant 1.000000e+00 : f32
    %625 = vector.broadcast %cst_136 : f32 to vector<8x32xf32>
    %626 = arith.addf %625, %624 : vector<8x32xf32>
    %627 = arith.divf %625, %626 : vector<8x32xf32>
    %628 = vector.extract_strided_slice %615 {offsets = [0, 64], sizes = [8, 32], strides = [1, 1]} : vector<8x128xf32> to vector<8x32xf32>
    %629 = math.tanh %628 : vector<8x32xf32>
    %630 = vector.extract_strided_slice %615 {offsets = [0, 96], sizes = [8, 32], strides = [1, 1]} : vector<8x128xf32> to vector<8x32xf32>
    %631 = arith.negf %630 : vector<8x32xf32>
    %632 = math.exp %631 : vector<8x32xf32>
    %cst_137 = arith.constant 1.000000e+00 : f32
    %633 = vector.broadcast %cst_137 : f32 to vector<8x32xf32>
    %634 = arith.addf %633, %632 : vector<8x32xf32>
    %635 = arith.divf %633, %634 : vector<8x32xf32>
    %636 = arith.mulf %627, %580 : vector<8x32xf32>
    %637 = arith.mulf %621, %629 : vector<8x32xf32>
    %638 = arith.addf %636, %637 : vector<8x32xf32>
    %639 = math.tanh %638 : vector<8x32xf32>
    %640 = arith.mulf %635, %639 : vector<8x32xf32>
    %cst_138 = arith.constant dense<0.000000e+00> : vector<8x128xf32>
    %641 = tpu.matmul %640, %263, %cst_138 {dimension_numbers = #tpu.dot_dimension_numbers<[1], [0], [0], [1], [0, 0, 1, 1], [], []>} : vector<8x32xf32>, vector<32x128xf32>, vector<8x128xf32> -> vector<8x128xf32>
    %cst_139 = arith.constant dense<0.000000e+00> : vector<8x128xf32>
    %642 = tpu.matmul %612, %264, %cst_139 {dimension_numbers = #tpu.dot_dimension_numbers<[1], [0], [0], [1], [0, 0, 1, 1], [], []>} : vector<8x32xf32>, vector<32x128xf32>, vector<8x128xf32> -> vector<8x128xf32>
    %643 = arith.addf %641, %642 : vector<8x128xf32>
    %644 = vector.broadcast %265 : vector<1x128xf32> to vector<8x128xf32>
    %645 = arith.addf %643, %644 : vector<8x128xf32>
    %646 = vector.extract_strided_slice %645 {offsets = [0, 0], sizes = [8, 32], strides = [1, 1]} : vector<8x128xf32> to vector<8x32xf32>
    %647 = arith.negf %646 : vector<8x32xf32>
    %648 = math.exp %647 : vector<8x32xf32>
    %cst_140 = arith.constant 1.000000e+00 : f32
    %649 = vector.broadcast %cst_140 : f32 to vector<8x32xf32>
    %650 = arith.addf %649, %648 : vector<8x32xf32>
    %651 = arith.divf %649, %650 : vector<8x32xf32>
    %652 = vector.extract_strided_slice %645 {offsets = [0, 32], sizes = [8, 32], strides = [1, 1]} : vector<8x128xf32> to vector<8x32xf32>
    %653 = arith.negf %652 : vector<8x32xf32>
    %654 = math.exp %653 : vector<8x32xf32>
    %cst_141 = arith.constant 1.000000e+00 : f32
    %655 = vector.broadcast %cst_141 : f32 to vector<8x32xf32>
    %656 = arith.addf %655, %654 : vector<8x32xf32>
    %657 = arith.divf %655, %656 : vector<8x32xf32>
    %658 = vector.extract_strided_slice %645 {offsets = [0, 64], sizes = [8, 32], strides = [1, 1]} : vector<8x128xf32> to vector<8x32xf32>
    %659 = math.tanh %658 : vector<8x32xf32>
    %660 = vector.extract_strided_slice %645 {offsets = [0, 96], sizes = [8, 32], strides = [1, 1]} : vector<8x128xf32> to vector<8x32xf32>
    %661 = arith.negf %660 : vector<8x32xf32>
    %662 = math.exp %661 : vector<8x32xf32>
    %cst_142 = arith.constant 1.000000e+00 : f32
    %663 = vector.broadcast %cst_142 : f32 to vector<8x32xf32>
    %664 = arith.addf %663, %662 : vector<8x32xf32>
    %665 = arith.divf %663, %664 : vector<8x32xf32>
    %666 = arith.mulf %657, %610 : vector<8x32xf32>
    %667 = arith.mulf %651, %659 : vector<8x32xf32>
    %668 = arith.addf %666, %667 : vector<8x32xf32>
    %669 = math.tanh %668 : vector<8x32xf32>
    %670 = arith.mulf %665, %669 : vector<8x32xf32>
    %c48 = arith.constant 48 : index
    %c0_143 = arith.constant 0 : index
    %671 = vector.load %arg17[%c48, %c0_143] : memref<64x32xf32, #tpu.memory_space<vmem>>, vector<8x32xf32>
    tpu.vector_store %arg17[%c48, %c0_143], %670 {strides = array<i32>} : memref<64x32xf32, #tpu.memory_space<vmem>>, vector<8x32xf32>,
    %cst_144 = arith.constant dense<0.000000e+00> : vector<8x128xf32>
    %672 = tpu.matmul %640, %261, %cst_144 {dimension_numbers = #tpu.dot_dimension_numbers<[1], [0], [0], [1], [0, 0, 1, 1], [], []>} : vector<8x32xf32>, vector<32x128xf32>, vector<8x128xf32> -> vector<8x128xf32>
    %673 = arith.addf %256, %672 : vector<8x128xf32>
    %674 = vector.extract_strided_slice %673 {offsets = [0, 0], sizes = [8, 32], strides = [1, 1]} : vector<8x128xf32> to vector<8x32xf32>
    %675 = arith.negf %674 : vector<8x32xf32>
    %676 = math.exp %675 : vector<8x32xf32>
    %cst_145 = arith.constant 1.000000e+00 : f32
    %677 = vector.broadcast %cst_145 : f32 to vector<8x32xf32>
    %678 = arith.addf %677, %676 : vector<8x32xf32>
    %679 = arith.divf %677, %678 : vector<8x32xf32>
    %680 = vector.extract_strided_slice %673 {offsets = [0, 32], sizes = [8, 32], strides = [1, 1]} : vector<8x128xf32> to vector<8x32xf32>
    %681 = arith.negf %680 : vector<8x32xf32>
    %682 = math.exp %681 : vector<8x32xf32>
    %cst_146 = arith.constant 1.000000e+00 : f32
    %683 = vector.broadcast %cst_146 : f32 to vector<8x32xf32>
    %684 = arith.addf %683, %682 : vector<8x32xf32>
    %685 = arith.divf %683, %684 : vector<8x32xf32>
    %686 = vector.extract_strided_slice %673 {offsets = [0, 64], sizes = [8, 32], strides = [1, 1]} : vector<8x128xf32> to vector<8x32xf32>
    %687 = math.tanh %686 : vector<8x32xf32>
    %688 = vector.extract_strided_slice %673 {offsets = [0, 96], sizes = [8, 32], strides = [1, 1]} : vector<8x128xf32> to vector<8x32xf32>
    %689 = arith.negf %688 : vector<8x32xf32>
    %690 = math.exp %689 : vector<8x32xf32>
    %cst_147 = arith.constant 1.000000e+00 : f32
    %691 = vector.broadcast %cst_147 : f32 to vector<8x32xf32>
    %692 = arith.addf %691, %690 : vector<8x32xf32>
    %693 = arith.divf %691, %692 : vector<8x32xf32>
    %694 = arith.mulf %685, %638 : vector<8x32xf32>
    %695 = arith.mulf %679, %687 : vector<8x32xf32>
    %696 = arith.addf %694, %695 : vector<8x32xf32>
    %697 = math.tanh %696 : vector<8x32xf32>
    %698 = arith.mulf %693, %697 : vector<8x32xf32>
    %cst_148 = arith.constant dense<0.000000e+00> : vector<8x128xf32>
    %699 = tpu.matmul %698, %263, %cst_148 {dimension_numbers = #tpu.dot_dimension_numbers<[1], [0], [0], [1], [0, 0, 1, 1], [], []>} : vector<8x32xf32>, vector<32x128xf32>, vector<8x128xf32> -> vector<8x128xf32>
    %cst_149 = arith.constant dense<0.000000e+00> : vector<8x128xf32>
    %700 = tpu.matmul %670, %264, %cst_149 {dimension_numbers = #tpu.dot_dimension_numbers<[1], [0], [0], [1], [0, 0, 1, 1], [], []>} : vector<8x32xf32>, vector<32x128xf32>, vector<8x128xf32> -> vector<8x128xf32>
    %701 = arith.addf %699, %700 : vector<8x128xf32>
    %702 = vector.broadcast %265 : vector<1x128xf32> to vector<8x128xf32>
    %703 = arith.addf %701, %702 : vector<8x128xf32>
    %704 = vector.extract_strided_slice %703 {offsets = [0, 0], sizes = [8, 32], strides = [1, 1]} : vector<8x128xf32> to vector<8x32xf32>
    %705 = arith.negf %704 : vector<8x32xf32>
    %706 = math.exp %705 : vector<8x32xf32>
    %cst_150 = arith.constant 1.000000e+00 : f32
    %707 = vector.broadcast %cst_150 : f32 to vector<8x32xf32>
    %708 = arith.addf %707, %706 : vector<8x32xf32>
    %709 = arith.divf %707, %708 : vector<8x32xf32>
    %710 = vector.extract_strided_slice %703 {offsets = [0, 32], sizes = [8, 32], strides = [1, 1]} : vector<8x128xf32> to vector<8x32xf32>
    %711 = arith.negf %710 : vector<8x32xf32>
    %712 = math.exp %711 : vector<8x32xf32>
    %cst_151 = arith.constant 1.000000e+00 : f32
    %713 = vector.broadcast %cst_151 : f32 to vector<8x32xf32>
    %714 = arith.addf %713, %712 : vector<8x32xf32>
    %715 = arith.divf %713, %714 : vector<8x32xf32>
    %716 = vector.extract_strided_slice %703 {offsets = [0, 64], sizes = [8, 32], strides = [1, 1]} : vector<8x128xf32> to vector<8x32xf32>
    %717 = math.tanh %716 : vector<8x32xf32>
    %718 = vector.extract_strided_slice %703 {offsets = [0, 96], sizes = [8, 32], strides = [1, 1]} : vector<8x128xf32> to vector<8x32xf32>
    %719 = arith.negf %718 : vector<8x32xf32>
    %720 = math.exp %719 : vector<8x32xf32>
    %cst_152 = arith.constant 1.000000e+00 : f32
    %721 = vector.broadcast %cst_152 : f32 to vector<8x32xf32>
    %722 = arith.addf %721, %720 : vector<8x32xf32>
    %723 = arith.divf %721, %722 : vector<8x32xf32>
    %724 = arith.mulf %715, %668 : vector<8x32xf32>
    %725 = arith.mulf %709, %717 : vector<8x32xf32>
    %726 = arith.addf %724, %725 : vector<8x32xf32>
    %727 = math.tanh %726 : vector<8x32xf32>
    %728 = arith.mulf %723, %727 : vector<8x32xf32>
    %c56 = arith.constant 56 : index
    %c0_153 = arith.constant 0 : index
    %729 = vector.load %arg17[%c56, %c0_153] : memref<64x32xf32, #tpu.memory_space<vmem>>, vector<8x32xf32>
    tpu.vector_store %arg17[%c56, %c0_153], %728 {strides = array<i32>} : memref<64x32xf32, #tpu.memory_space<vmem>>, vector<8x32xf32>,
    %c0_154 = arith.constant 0 : index
    %c0_155 = arith.constant 0 : index
    %730 = vector.load %arg17[%c0_154, %c0_155] : memref<64x32xf32, #tpu.memory_space<vmem>>, vector<64x32xf32>
    %c0_156 = arith.constant 0 : index
    %c0_157 = arith.constant 0 : index
    %731 = vector.load %arg13[%c0_156, %c0_157] : memref<32x128xf32, #tpu.memory_space<vmem>>, vector<32x128xf32>
    %cst_158 = arith.constant dense<0.000000e+00> : vector<64x128xf32>
    %732 = tpu.matmul %730, %731, %cst_158 {dimension_numbers = #tpu.dot_dimension_numbers<[1], [0], [0], [1], [0, 0, 1, 1], [], []>} : vector<64x32xf32>, vector<32x128xf32>, vector<64x128xf32> -> vector<64x128xf32>
    %c0_159 = arith.constant 0 : index
    %c0_160 = arith.constant 0 : index
    %733 = vector.load %arg14[%c0_159, %c0_160] : memref<1x128xf32, #tpu.memory_space<vmem>>, vector<1x128xf32>
    %734 = vector.broadcast %733 : vector<1x128xf32> to vector<64x128xf32>
    %735 = arith.addf %732, %734 : vector<64x128xf32>
    %c0_161 = arith.constant 0 : index
    %c0_162 = arith.constant 0 : index
    %736 = vector.load %arg15[%c0_161, %c0_162] : memref<64x128xf32, #tpu.memory_space<vmem>>, vector<64x128xf32>
    tpu.vector_store %arg15[%c0_161, %c0_162], %735 {strides = array<i32>} : memref<64x128xf32, #tpu.memory_space<vmem>>, vector<64x128xf32>,
    return
  }
  func.func @transform_0(%arg0: i32) -> (i32, i32) {
    %c0_i32 = arith.constant 0 : i32
    %c0_i32_0 = arith.constant 0 : i32
    %c0_i32_1 = arith.constant 0 : i32
    return %c0_i32, %c0_i32_0 : i32, i32
  }
  func.func @transform_1(%arg0: i32) -> (i32, i32) {
    %c0_i32 = arith.constant 0 : i32
    %c0_i32_0 = arith.constant 0 : i32
    %c0_i32_1 = arith.constant 0 : i32
    return %c0_i32, %c0_i32_0 : i32, i32
  }
  func.func @transform_2(%arg0: i32) -> (i32, i32) {
    %c0_i32 = arith.constant 0 : i32
    %c0_i32_0 = arith.constant 0 : i32
    %c0_i32_1 = arith.constant 0 : i32
    return %c0_i32, %c0_i32_0 : i32, i32
  }
  func.func @transform_3(%arg0: i32) -> (i32, i32) {
    %c0_i32 = arith.constant 0 : i32
    %c0_i32_0 = arith.constant 0 : i32
    %c0_i32_1 = arith.constant 0 : i32
    return %c0_i32, %c0_i32_0 : i32, i32
  }
  func.func @transform_4(%arg0: i32) -> (i32, i32) {
    %c0_i32 = arith.constant 0 : i32
    %c0_i32_0 = arith.constant 0 : i32
    %c0_i32_1 = arith.constant 0 : i32
    return %c0_i32, %c0_i32_0 : i32, i32
  }
  func.func @transform_5(%arg0: i32) -> (i32, i32) {
    %c0_i32 = arith.constant 0 : i32
    %c0_i32_0 = arith.constant 0 : i32
    %c0_i32_1 = arith.constant 0 : i32
    return %c0_i32, %c0_i32_0 : i32, i32
  }
  func.func @transform_6(%arg0: i32) -> (i32, i32) {
    %c0_i32 = arith.constant 0 : i32
    %c0_i32_0 = arith.constant 0 : i32
    %c0_i32_1 = arith.constant 0 : i32
    return %c0_i32, %c0_i32_0 : i32, i32
  }
  func.func @transform_7(%arg0: i32) -> (i32, i32) {
    %c0_i32 = arith.constant 0 : i32
    %c0_i32_0 = arith.constant 0 : i32
    %c0_i32_1 = arith.constant 0 : i32
    return %c0_i32, %c0_i32_0 : i32, i32
  }
  func.func @transform_8(%arg0: i32) -> (i32, i32) {
    %c0_i32 = arith.constant 0 : i32
    %c0_i32_0 = arith.constant 0 : i32
    %c0_i32_1 = arith.constant 0 : i32
    return %c0_i32, %c0_i32_0 : i32, i32
  }
  func.func @transform_9(%arg0: i32) -> (i32, i32) {
    %c0_i32 = arith.constant 0 : i32
    %c0_i32_0 = arith.constant 0 : i32
    %c0_i32_1 = arith.constant 0 : i32
    return %c0_i32, %c0_i32_0 : i32, i32
  }
  func.func @transform_10(%arg0: i32) -> (i32, i32) {
    %c0_i32 = arith.constant 0 : i32
    %c0_i32_0 = arith.constant 0 : i32
    %c0_i32_1 = arith.constant 0 : i32
    return %c0_i32, %c0_i32_0 : i32, i32
  }
  func.func @transform_11(%arg0: i32) -> (i32, i32) {
    %c0_i32 = arith.constant 0 : i32
    %c0_i32_0 = arith.constant 0 : i32
    %c0_i32_1 = arith.constant 0 : i32
    return %c0_i32, %c0_i32_0 : i32, i32
  }
  func.func @transform_12(%arg0: i32) -> (i32, i32) {
    %c0_i32 = arith.constant 0 : i32
    %c0_i32_0 = arith.constant 0 : i32
    %c0_i32_1 = arith.constant 0 : i32
    return %c0_i32, %c0_i32_0 : i32, i32
  }
  func.func @transform_13(%arg0: i32) -> (i32, i32) {
    %c0_i32 = arith.constant 0 : i32
    %c0_i32_0 = arith.constant 0 : i32
    %c0_i32_1 = arith.constant 0 : i32
    return %c0_i32, %c0_i32_0 : i32, i32
  }
  func.func @transform_14(%arg0: i32) -> (i32, i32) {
    %c0_i32 = arith.constant 0 : i32
    %c0_i32_0 = arith.constant 0 : i32
    %c0_i32_1 = arith.constant 0 : i32
    return %c0_i32, %c0_i32_0 : i32, i32
  }
}

</mosaic_0001>

<llo_original>
// kernel: tpu_custom_call.1
$region0: #{tpu_custom_call.1}
  #allocation0 [shape = 'u32[]', space=smem, size = 0x4, offset = 0x4, fixed_abs, tag = 'smem constant byte address 0x4 - core index']
  #allocation1 [shape = 'u32[144,128]{1,0:T(1,128)}', space=vmem, size = 0x12000, scoped, tag = 'internal scratch']
  #allocation2 [shape = 'f32[8,32]{1,0:T(8,128)}', space=vmem, size = 0x1000, scoped, tag = 'scratch operand']
  #allocation3 [shape = 'f32[64,32]{1,0:T(8,128)}', space=vmem, size = 0x8000, scoped, tag = 'scratch operand']
  %s0 = inlined_call_operand.hbm [shape: f32[2,16], index: 0, kind: input, shape index: {}]
  %s1 = inlined_call_operand.hbm [shape: f32[16,32], index: 1, kind: input, shape index: {}]
  %s2 = inlined_call_operand.vmem [shape: f32[1,32], index: 2, kind: input, shape index: {}]
  %s3 = inlined_call_operand.hbm [shape: f32[32,128], index: 3, kind: input, shape index: {}]
  %s4 = inlined_call_operand.vmem [shape: f32[1,128], index: 4, kind: input, shape index: {}]
  %s5 = inlined_call_operand.hbm [shape: f32[64,128], index: 5, kind: input, shape index: {}]
  %s6 = inlined_call_operand.vmem [shape: f32[1,128], index: 6, kind: input, shape index: {}]
  %s7 = inlined_call_operand.hbm [shape: f32[32,128], index: 7, kind: input, shape index: {}]
  %s8 = inlined_call_operand.hbm [shape: f32[32,128], index: 8, kind: input, shape index: {}]
  %s9 = inlined_call_operand.vmem [shape: f32[1,128], index: 9, kind: input, shape index: {}]
  %s10 = inlined_call_operand.hbm [shape: f32[64,128], index: 10, kind: input, shape index: {}]
  %s11 = inlined_call_operand.vmem [shape: f32[1,128], index: 11, kind: input, shape index: {}]
  %s12 = inlined_call_operand.vmem [shape: f32[32,128], index: 12, kind: input, shape index: {}]
  %s13 = inlined_call_operand.vmem [shape: f32[1,128], index: 13, kind: input, shape index: {}]
  %s14 = inlined_call_operand.hbm [shape: f32[64,128], index: 14, kind: output, shape index: {}]
  %s15 = sld [smem:[#allocation0]]
  $region94: #{tpu_custom_call.1} parent=0
    _
  %s17 = ssub.s32 1, %s15
  %s18 = scalar_select 0, %s17, %s15
  $region1: #{tpu_custom_call.1} parent=0
    #allocation4 [shape = 'u8[1024]{0}', space=vmem, size = 0x400, scoped, tag = 'input window, operand 0, single buffered']
    #allocation5 [shape = 's32[1]{0}', space=sflag, size = 0x4, scoped, tag = 'scoped memory for tpu_custom_call.1']
    #allocation6 [shape = 's32[1]{0}', space=sflag, size = 0x4, scoped, tag = 'scoped memory for tpu_custom_call.1']
    #allocation7 [shape = 'u8[8192]{0}', space=vmem, size = 0x2000, scoped, tag = 'input window, operand 1, single buffered']
    #allocation8 [shape = 's32[1]{0}', space=sflag, size = 0x4, scoped, tag = 'scoped memory for tpu_custom_call.1']
    #allocation9 [shape = 'u8[16384]{0}', space=vmem, size = 0x4000, scoped, tag = 'input window, operand 3, single buffered']
    #allocation10 [shape = 'u8[32768]{0}', space=vmem, size = 0x8000, scoped, tag = 'input window, operand 5, single buffered']
    #allocation11 [shape = 's32[1]{0}', space=sflag, size = 0x4, scoped, tag = 'scoped memory for tpu_custom_call.1']
    #allocation12 [shape = 'u8[16384]{0}', space=vmem, size = 0x4000, scoped, tag = 'input window, operand 7, single buffered']
    #allocation13 [shape = 'u8[16384]{0}', space=vmem, size = 0x4000, scoped, tag = 'input window, operand 8, single buffered']
    #allocation14 [shape = 's32[1]{0}', space=sflag, size = 0x4, scoped, tag = 'scoped memory for tpu_custom_call.1']
    #allocation15 [shape = 'u8[32768]{0}', space=vmem, size = 0x8000, scoped, tag = 'input window, operand 10, single buffered']
    #allocation16 [shape = 'u8[32768]{0}', space=vmem, size = 0x8000, scoped, tag = 'output window, operand 0, single buffered']
    %19 = vsyncpa [#allocation5], 0
    %20 = vsyncpa [#allocation8], 0
    %21 = vsyncpa [#allocation11], 0
    %22 = vsyncpa [#allocation14], 0
    %23 = vsyncpa [#allocation6], 0
    // Predicated region
    $region2: #{tpu_custom_call.1} parent=1 // pred_check
      _
    $region3: #{tpu_custom_call.1} parent=1 // pred_check_branch
      %25 = sbr.rel (0) target = $region5
    $region4: #{tpu_custom_call.1} parent=1 // pred_region
      %s27 = ssub.s32 32, 32
      %28 = vsyncadd [#allocation5], %s27
      %s30 = sshll.u32 [#allocation4], 4
      %s31 = int_to_ptr.vmem [resolvable:$true] %s30
      %33 = dma.hbm_to_vmem [thread:$0]  %s0, 32, %s31, [#allocation5]
    $region5: #{tpu_custom_call.1} parent=1 // pred_fallthru
      _
    // Predicated region
    $region6: #{tpu_custom_call.1} parent=1 // pred_check
      _
    $region7: #{tpu_custom_call.1} parent=1 // pred_check_branch
      %35 = sbr.rel (0) target = $region9
    $region8: #{tpu_custom_call.1} parent=1 // pred_region
      %s37 = ssub.s32 256, 256
      %38 = vsyncadd [#allocation8], %s37
      %s39 = sshll.u32 [#allocation7], 4
      %s40 = int_to_ptr.vmem [resolvable:$true] %s39
      %45 = dma.hbm_to_vmem [thread:$0]  %s1, 256, %s40, [#allocation8], 128, 128, 8
    $region9: #{tpu_custom_call.1} parent=1 // pred_fallthru
      _
    // Predicated region
    $region10: #{tpu_custom_call.1} parent=1 // pred_check
      _
    $region11: #{tpu_custom_call.1} parent=1 // pred_check_branch
      %47 = sbr.rel (0) target = $region13
    $region12: #{tpu_custom_call.1} parent=1 // pred_region
      _
    $region13: #{tpu_custom_call.1} parent=1 // pred_fallthru
      _
    // Predicated region
    $region14: #{tpu_custom_call.1} parent=1 // pred_check
      _
    $region15: #{tpu_custom_call.1} parent=1 // pred_check_branch
      %49 = sbr.rel (0) target = $region17
    $region16: #{tpu_custom_call.1} parent=1 // pred_region
      %s51 = ssub.s32 512, 512
      %52 = vsyncadd [#allocation8], %s51
      %s53 = sshll.u32 [#allocation9], 4
      %s54 = int_to_ptr.vmem [resolvable:$true] %s53
      %59 = dma.hbm_to_vmem [thread:$0]  %s3, 512, %s54, [#allocation8], 128, 128, 8
    $region17: #{tpu_custom_call.1} parent=1 // pred_fallthru
      _
    // Predicated region
    $region18: #{tpu_custom_call.1} parent=1 // pred_check
      _
    $region19: #{tpu_custom_call.1} parent=1 // pred_check_branch
      %61 = sbr.rel (0) target = $region21
    $region20: #{tpu_custom_call.1} parent=1 // pred_region
      _
    $region21: #{tpu_custom_call.1} parent=1 // pred_fallthru
      _
    // Predicated region
    $region22: #{tpu_custom_call.1} parent=1 // pred_check
      _
    $region23: #{tpu_custom_call.1} parent=1 // pred_check_branch
      %63 = sbr.rel (0) target = $region25
    $region24: #{tpu_custom_call.1} parent=1 // pred_region
      %s65 = ssub.s32 1024, 1024
      %66 = vsyncadd [#allocation11], %s65
      %s67 = sshll.u32 [#allocation10], 4
      %s68 = int_to_ptr.vmem [resolvable:$true] %s67
      %73 = dma.hbm_to_vmem [thread:$0]  %s5, 1024, %s68, [#allocation11], 128, 128, 8
    $region25: #{tpu_custom_call.1} parent=1 // pred_fallthru
      _
    // Predicated region
    $region26: #{tpu_custom_call.1} parent=1 // pred_check
      _
    $region27: #{tpu_custom_call.1} parent=1 // pred_check_branch
      %75 = sbr.rel (0) target = $region29
    $region28: #{tpu_custom_call.1} parent=1 // pred_region
      _
    $region29: #{tpu_custom_call.1} parent=1 // pred_fallthru
      _
    // Predicated region
    $region30: #{tpu_custom_call.1} parent=1 // pred_check
      _
    $region31: #{tpu_custom_call.1} parent=1 // pred_check_branch
      %77 = sbr.rel (0) target = $region33
    $region32: #{tpu_custom_call.1} parent=1 // pred_region
      %s79 = ssub.s32 512, 512
      %80 = vsyncadd [#allocation11], %s79
      %s81 = sshll.u32 [#allocation12], 4
      %s82 = int_to_ptr.vmem [resolvable:$true] %s81
      %87 = dma.hbm_to_vmem [thread:$0]  %s7, 512, %s82, [#allocation11], 128, 128, 8
    $region33: #{tpu_custom_call.1} parent=1 // pred_fallthru
      _
    // Predicated region
    $region34: #{tpu_custom_call.1} parent=1 // pred_check
      _
    $region35: #{tpu_custom_call.1} parent=1 // pred_check_branch
      %89 = sbr.rel (0) target = $region37
    $region36: #{tpu_custom_call.1} parent=1 // pred_region
      %s91 = ssub.s32 512, 512
      %92 = vsyncadd [#allocation14], %s91
      %s93 = sshll.u32 [#allocation13], 4
      %s94 = int_to_ptr.vmem [resolvable:$true] %s93
      %99 = dma.hbm_to_vmem [thread:$0]  %s8, 512, %s94, [#allocation14], 128, 128, 8
    $region37: #{tpu_custom_call.1} parent=1 // pred_fallthru
      _
    // Predicated region
    $region38: #{tpu_custom_call.1} parent=1 // pred_check
      _
    $region39: #{tpu_custom_call.1} parent=1 // pred_check_branch
      %101 = sbr.rel (0) target = $region41
    $region40: #{tpu_custom_call.1} parent=1 // pred_region
      _
    $region41: #{tpu_custom_call.1} parent=1 // pred_fallthru
      _
    // Predicated region
    $region42: #{tpu_custom_call.1} parent=1 // pred_check
      _
    $region43: #{tpu_custom_call.1} parent=1 // pred_check_branch
      %103 = sbr.rel (0) target = $region45
    $region44: #{tpu_custom_call.1} parent=1 // pred_region
      %s105 = ssub.s32 1024, 1024
      %106 = vsyncadd [#allocation14], %s105
      %s107 = sshll.u32 [#allocation15], 4
      %s108 = int_to_ptr.vmem [resolvable:$true] %s107
      %113 = dma.hbm_to_vmem [thread:$0]  %s10, 1024, %s108, [#allocation14], 128, 128, 8
    $region45: #{tpu_custom_call.1} parent=1 // pred_fallthru
      _
    // Predicated region
    $region46: #{tpu_custom_call.1} parent=1 // pred_check
      _
    $region47: #{tpu_custom_call.1} parent=1 // pred_check_branch
      %115 = sbr.rel (0) target = $region49
    $region48: #{tpu_custom_call.1} parent=1 // pred_region
      _
    $region49: #{tpu_custom_call.1} parent=1 // pred_fallthru
      _
    // Predicated region
    $region50: #{tpu_custom_call.1} parent=1 // pred_check
      _
    $region51: #{tpu_custom_call.1} parent=1 // pred_check_branch
      %117 = sbr.rel (0) target = $region53
    $region52: #{tpu_custom_call.1} parent=1 // pred_region
      _
    $region53: #{tpu_custom_call.1} parent=1 // pred_fallthru
      _
    // Predicated region
    $region54: #{tpu_custom_call.1} parent=1 // pred_check
      _
    $region55: #{tpu_custom_call.1} parent=1 // pred_check_branch
      %119 = sbr.rel (0) target = $region57
    $region56: #{tpu_custom_call.1} parent=1 // pred_region
      _
    $region57: #{tpu_custom_call.1} parent=1 // pred_fallthru
      _
    // Predicated region
    $region58: #{tpu_custom_call.1} parent=1 // pred_check
      _
    $region59: #{tpu_custom_call.1} parent=1 // pred_check_branch
      %121 = sbr.rel (0) target = $region61
    $region60: #{tpu_custom_call.1} parent=1 // pred_region
      %122 = dma.done [#allocation5], 32
    $region61: #{tpu_custom_call.1} parent=1 // pred_fallthru
      _
    // Predicated region
    $region62: #{tpu_custom_call.1} parent=1 // pred_check
      _
    $region63: #{tpu_custom_call.1} parent=1 // pred_check_branch
      %124 = sbr.rel (0) target = $region65
    $region64: #{tpu_custom_call.1} parent=1 // pred_region
      %125 = dma.done [#allocation8], 256
    $region65: #{tpu_custom_call.1} parent=1 // pred_fallthru
      _
    // Predicated region
    $region66: #{tpu_custom_call.1} parent=1 // pred_check
      _
    $region67: #{tpu_custom_call.1} parent=1 // pred_check_branch
      %127 = sbr.rel (0) target = $region69
    $region68: #{tpu_custom_call.1} parent=1 // pred_region
      %128 = dma.done [#allocation8], 512
    $region69: #{tpu_custom_call.1} parent=1 // pred_fallthru
      _
    // Predicated region
    $region70: #{tpu_custom_call.1} parent=1 // pred_check
      _
    $region71: #{tpu_custom_call.1} parent=1 // pred_check_branch
      %130 = sbr.rel (0) target = $region73
    $region72: #{tpu_custom_call.1} parent=1 // pred_region
      %131 = dma.done [#allocation11], 1024
    $region73: #{tpu_custom_call.1} parent=1 // pred_fallthru
      _
    // Predicated region
    $region74: #{tpu_custom_call.1} parent=1 // pred_check
      _
    $region75: #{tpu_custom_call.1} parent=1 // pred_check_branch
      %133 = sbr.rel (0) target = $region77
    $region76: #{tpu_custom_call.1} parent=1 // pred_region
      %134 = dma.done [#allocation11], 512
    $region77: #{tpu_custom_call.1} parent=1 // pred_fallthru
      _
    // Predicated region
    $region78: #{tpu_custom_call.1} parent=1 // pred_check
      _
    $region79: #{tpu_custom_call.1} parent=1 // pred_check_branch
      %136 = sbr.rel (0) target = $region81
    $region80: #{tpu_custom_call.1} parent=1 // pred_region
      %137 = dma.done [#allocation14], 512
    $region81: #{tpu_custom_call.1} parent=1 // pred_fallthru
      _
    // Predicated region
    $region82: #{tpu_custom_call.1} parent=1 // pred_check
      _
    $region83: #{tpu_custom_call.1} parent=1 // pred_check_branch
      %139 = sbr.rel (0) target = $region85
    $region84: #{tpu_custom_call.1} parent=1 // pred_region
      %140 = dma.done [#allocation14], 1024
    $region85: #{tpu_custom_call.1} parent=1 // pred_fallthru
      _
    %v141 = vld [vmem:[#allocation4] sm:$0x3]
    %v142 = vld [vmem:[#allocation7] sm:$0xff]
    %v143 = vld [vmem:[#allocation7 + $0x8] sm:$0xff]
    %v144 = vld [vmem:[%s2] sm:$0x1]
    %v146 = vlaneseq
    %v147 = vshrl.u32 %v146, 7
    %v148 = vsub.s32 0, %v147
    %v149 = vrot.slane %v144, %v148
    %vm151 = vcmask 130048
    %v153 = vsel %vm151, %v141, 0
    %155 = vmatprep.subr.mxu0 0.0
    %156 = vmatpush1.msra.mxu0 %v142
    %157 = vmatprep.subr.mxu0 0.0
    %158 = vmatpush1.msra.mxu0 %v143
    %159 = vmatprep.subr.mxu0 0.0
    %160 = vmatpush1.msra.mxu0 0.0
    %161 = vmatprep.subr.mxu0 0.0
    %162 = vmatpush1.msra.mxu0 0.0
    %163 = vmatprep.subr.mxu0 0.0
    %164 = vmatpush1.msra.mxu0 0.0
    %165 = vmatprep.subr.mxu0 0.0
    %166 = vmatpush1.msra.mxu0 0.0
    %167 = vmatprep.subr.mxu0 0.0
    %168 = vmatpush1.msra.mxu0 0.0
    %169 = vmatprep.subr.mxu0 0.0
    %170 = vmatpush1.msra.mxu0 0.0
    %171 = vmatprep.subr.mxu0 0.0
    %172 = vmatpush1.msra.mxu0 0.0
    %173 = vmatprep.subr.mxu0 0.0
    %174 = vmatpush1.msra.mxu0 0.0
    %175 = vmatprep.subr.mxu0 0.0
    %176 = vmatpush1.msra.mxu0 0.0
    %177 = vmatprep.subr.mxu0 0.0
    %178 = vmatpush1.msra.mxu0 0.0
    %179 = vmatprep.subr.mxu0 0.0
    %180 = vmatpush1.msra.mxu0 0.0
    %181 = vmatprep.subr.mxu0 0.0
    %182 = vmatpush1.msra.mxu0 0.0
    %183 = vmatprep.subr.mxu0 0.0
    %184 = vmatpush1.msra.mxu0 0.0
    %185 = vmatprep.subr.mxu0 0.0
    %186 = vmatpush1.msra.mxu0 0.0
    %187 = vmatprep.subr.mxu0 0.0
    %188 = vmatpush1.msra.mxu0 0.0
    %189 = vmatprep.subr.mxu0 0.0
    %190 = vmatpush1.msra.mxu0 0.0
    %191 = vmatprep.subr.mxu0 0.0
    %192 = vmatpush1.msra.mxu0 0.0
    %193 = vmatprep.subr.mxu0 0.0
    %194 = vmatpush1.msra.mxu0 0.0
    %195 = vmatprep.subr.mxu0 0.0
    %196 = vmatpush1.msra.mxu0 0.0
    %197 = vmatprep.subr.mxu0 0.0
    %198 = vmatpush1.msra.mxu0 0.0
    %199 = vmatprep.subr.mxu0 0.0
    %200 = vmatpush1.msra.mxu0 0.0
    %201 = vmatprep.subr.mxu0 0.0
    %202 = vmatpush1.msra.mxu0 0.0
    %203 = vmatprep.subr.mxu0 0.0
    %204 = vmatpush1.msra.mxu0 0.0
    %205 = vmatprep.subr.mxu0 0.0
    %206 = vmatpush1.msra.mxu0 0.0
    %207 = vmatprep.subr.mxu0 0.0
    %208 = vmatpush1.msra.mxu0 0.0
    %209 = vmatprep.subr.mxu0 0.0
    %210 = vmatpush1.msra.mxu0 0.0
    %211 = vmatprep.subr.mxu0 0.0
    %212 = vmatpush1.msra.mxu0 0.0
    %213 = vmatprep.subr.mxu0 0.0
    %214 = vmatpush1.msra.mxu0 0.0
    %215 = vmatprep.subr.mxu0 0.0
    %216 = vmatpush1.msra.mxu0 0.0
    %217 = vmatprep.subr.mxu0 0.0
    %218 = vmatpush1.msra.mxu0 0.0
    %219 = vmatprep.mubr.f32.mxu0 0.0
    %220 = vmatmul.mubr.f32.gmra.mrb[0].mxu0 %v153
    %v221 = vpop.f32.mrb[0].mxu0
    %v222 = vadd.f32 %v149, %v221
    %v223 = vpop.f32.mrb[0].mxu0
    %224 = vdwg.mxu0
    %v225 = vtanh.pop %v222
    %v226 = vld [vmem:[#allocation9] sm:$0xff]
    %v227 = vld [vmem:[#allocation9 + $0x8] sm:$0xff]
    %v228 = vld [vmem:[#allocation9 + $0x10] sm:$0xff]
    %v229 = vld [vmem:[#allocation9 + $0x18] sm:$0xff]
    %v230 = vld [vmem:[#allocation10] sm:$0xff]
    %v231 = vld [vmem:[#allocation10 + $0x8] sm:$0xff]
    %v232 = vld [vmem:[#allocation10 + $0x10] sm:$0xff]
    %v233 = vld [vmem:[#allocation10 + $0x18] sm:$0xff]
    %v234 = vld [vmem:[#allocation10 + $0x20] sm:$0xff]
    %v235 = vld [vmem:[#allocation10 + $0x28] sm:$0xff]
    %v236 = vld [vmem:[#allocation10 + $0x30] sm:$0xff]
    %v237 = vld [vmem:[#allocation10 + $0x38] sm:$0xff]
    %v238 = vld [vmem:[%s4] sm:$0x1]
    %v239 = vld [vmem:[%s6] sm:$0x1]
    %v241 = vlaneseq
    %v242 = vshrl.u32 %v241, 7
    %v243 = vsub.s32 0, %v242
    %v244 = vrot.slane %v238, %v243
    %vm246 = vcmask 261120
    %v248 = vsel %vm246, %v225, 0
    %250 = vmatprep.subr.mxu0 0.0
    %251 = vmatpush1.msra.mxu0 %v226
    %252 = vmatprep.subr.mxu0 0.0
    %253 = vmatpush1.msra.mxu0 %v227
    %254 = vmatprep.subr.mxu0 0.0
    %255 = vmatpush1.msra.mxu0 %v228
    %256 = vmatprep.subr.mxu0 0.0
    %257 = vmatpush1.msra.mxu0 %v229
    %258 = vmatprep.subr.mxu0 0.0
    %259 = vmatpush1.msra.mxu0 0.0
    %260 = vmatprep.subr.mxu0 0.0
    %261 = vmatpush1.msra.mxu0 0.0
    %262 = vmatprep.subr.mxu0 0.0
    %263 = vmatpush1.msra.mxu0 0.0
    %264 = vmatprep.subr.mxu0 0.0
    %265 = vmatpush1.msra.mxu0 0.0
    %266 = vmatprep.subr.mxu0 0.0
    %267 = vmatpush1.msra.mxu0 0.0
    %268 = vmatprep.subr.mxu0 0.0
    %269 = vmatpush1.msra.mxu0 0.0
    %270 = vmatprep.subr.mxu0 0.0
    %271 = vmatpush1.msra.mxu0 0.0
    %272 = vmatprep.subr.mxu0 0.0
    %273 = vmatpush1.msra.mxu0 0.0
    %274 = vmatprep.subr.mxu0 0.0
    %275 = vmatpush1.msra.mxu0 0.0
    %276 = vmatprep.subr.mxu0 0.0
    %277 = vmatpush1.msra.mxu0 0.0
    %278 = vmatprep.subr.mxu0 0.0
    %279 = vmatpush1.msra.mxu0 0.0
    %280 = vmatprep.subr.mxu0 0.0
    %281 = vmatpush1.msra.mxu0 0.0
    %282 = vmatprep.subr.mxu0 0.0
    %283 = vmatpush1.msra.mxu0 0.0
    %284 = vmatprep.subr.mxu0 0.0
    %285 = vmatpush1.msra.mxu0 0.0
    %286 = vmatprep.subr.mxu0 0.0
    %287 = vmatpush1.msra.mxu0 0.0
    %288 = vmatprep.subr.mxu0 0.0
    %289 = vmatpush1.msra.mxu0 0.0
    %290 = vmatprep.subr.mxu0 0.0
    %291 = vmatpush1.msra.mxu0 0.0
    %292 = vmatprep.subr.mxu0 0.0
    %293 = vmatpush1.msra.mxu0 0.0
    %294 = vmatprep.subr.mxu0 0.0
    %295 = vmatpush1.msra.mxu0 0.0
    %296 = vmatprep.subr.mxu0 0.0
    %297 = vmatpush1.msra.mxu0 0.0
    %298 = vmatprep.subr.mxu0 0.0
    %299 = vmatpush1.msra.mxu0 0.0
    %300 = vmatprep.subr.mxu0 0.0
    %301 = vmatpush1.msra.mxu0 0.0
    %302 = vmatprep.subr.mxu0 0.0
    %303 = vmatpush1.msra.mxu0 0.0
    %304 = vmatprep.subr.mxu0 0.0
    %305 = vmatpush1.msra.mxu0 0.0
    %306 = vmatprep.subr.mxu0 0.0
    %307 = vmatpush1.msra.mxu0 0.0
    %308 = vmatprep.subr.mxu0 0.0
    %309 = vmatpush1.msra.mxu0 0.0
    %310 = vmatprep.subr.mxu0 0.0
    %311 = vmatpush1.msra.mxu0 0.0
    %312 = vmatprep.subr.mxu0 0.0
    %313 = vmatpush1.msra.mxu0 0.0
    %314 = vmatprep.mubr.f32.mxu0 0.0
    %315 = vmatmul.mubr.f32.gmra.mrb[0].mxu0 %v248
    %v316 = vpop.f32.mrb[0].mxu0
    %v317 = vadd.f32 %v244, %v316
    %v318 = vpop.f32.mrb[0].mxu0
    %319 = vdwg.mxu0
    %v320 = vxor.u32 %v317, 2147483648
    %v321 = vmul.f32 %v320, 1.442695
    %v322 = vpow.pop %v321
    %v323 = vadd.f32 %v322, 1.0
    %v324 = vrcp.pop %v323
    %v325 = vmul.f32 1.0, %v324
    %v326 = vtanh.pop %v317
    %v327 = vmul.f32 %v325, 0.0
    %329 = vrot.lane.b32.xlu0 %v326, 64
    %v330 = vpop.permute.xlu0 %329
    %v332 = vmul.f32 %v325, %v330
    %334 = vrot.lane.b32.xlu0 %v332, 32
    %v335 = vpop.permute.xlu0 %334
    %v337 = vadd.f32 %v327, %v335
    %v338 = vtanh.pop %v337
    %340 = vrot.lane.b32.xlu0 %v338, 64
    %v341 = vpop.permute.xlu0 %340
    %v343 = vmul.f32 %v325, %v341
    %344 = vmatprep.subr.mxu0 0.0
    %345 = vmatpush1.msra.mxu0 %v234
    %346 = vmatprep.subr.mxu0 0.0
    %347 = vmatpush1.msra.mxu0 %v235
    %348 = vmatprep.subr.mxu0 0.0
    %349 = vmatpush1.msra.mxu0 %v236
    %350 = vmatprep.subr.mxu0 0.0
    %351 = vmatpush1.msra.mxu0 %v237
    %352 = vmatprep.subr.mxu0 0.0
    %353 = vmatpush1.msra.mxu0 0.0
    %354 = vmatprep.subr.mxu0 0.0
    %355 = vmatpush1.msra.mxu0 0.0
    %356 = vmatprep.subr.mxu0 0.0
    %357 = vmatpush1.msra.mxu0 0.0
    %358 = vmatprep.subr.mxu0 0.0
    %359 = vmatpush1.msra.mxu0 0.0
    %360 = vmatprep.subr.mxu0 0.0
    %361 = vmatpush1.msra.mxu0 0.0
    %362 = vmatprep.subr.mxu0 0.0
    %363 = vmatpush1.msra.mxu0 0.0
    %364 = vmatprep.subr.mxu0 0.0
    %365 = vmatpush1.msra.mxu0 0.0
    %366 = vmatprep.subr.mxu0 0.0
    %367 = vmatpush1.msra.mxu0 0.0
    %368 = vmatprep.subr.mxu0 0.0
    %369 = vmatpush1.msra.mxu0 0.0
    %370 = vmatprep.subr.mxu0 0.0
    %371 = vmatpush1.msra.mxu0 0.0
    %372 = vmatprep.subr.mxu0 0.0
    %373 = vmatpush1.msra.mxu0 0.0
    %374 = vmatprep.subr.mxu0 0.0
    %375 = vmatpush1.msra.mxu0 0.0
    %376 = vmatprep.subr.mxu0 0.0
    %377 = vmatpush1.msra.mxu0 0.0
    %378 = vmatprep.subr.mxu0 0.0
    %379 = vmatpush1.msra.mxu0 0.0
    %380 = vmatprep.subr.mxu0 0.0
    %381 = vmatpush1.msra.mxu0 0.0
    %382 = vmatprep.subr.mxu0 0.0
    %383 = vmatpush1.msra.mxu0 0.0
    %384 = vmatprep.subr.mxu0 0.0
    %385 = vmatpush1.msra.mxu0 0.0
    %386 = vmatprep.subr.mxu0 0.0
    %387 = vmatpush1.msra.mxu0 0.0
    %388 = vmatprep.subr.mxu0 0.0
    %389 = vmatpush1.msra.mxu0 0.0
    %390 = vmatprep.subr.mxu0 0.0
    %391 = vmatpush1.msra.mxu0 0.0
    %392 = vmatprep.subr.mxu0 0.0
    %393 = vmatpush1.msra.mxu0 0.0
    %394 = vmatprep.subr.mxu0 0.0
    %395 = vmatpush1.msra.mxu0 0.0
    %396 = vmatprep.subr.mxu0 0.0
    %397 = vmatpush1.msra.mxu0 0.0
    %398 = vmatprep.subr.mxu0 0.0
    %399 = vmatpush1.msra.mxu0 0.0
    %400 = vmatprep.subr.mxu0 0.0
    %401 = vmatpush1.msra.mxu0 0.0
    %402 = vmatprep.subr.mxu0 0.0
    %403 = vmatpush1.msra.mxu0 0.0
    %404 = vmatprep.subr.mxu0 0.0
    %405 = vmatpush1.msra.mxu0 0.0
    %406 = vmatprep.subr.mxu0 0.0
    %407 = vmatpush1.msra.mxu0 0.0
    %408 = vmatprep.mubr.f32.mxu0 0.0
    %409 = vmatmul.mubr.f32.gmra.mrb[0].mxu0 %v248
    %v410 = vpop.f32.mrb[0].mxu0
    %v411 = vadd.f32 0.0, %v410
    %v412 = vpop.f32.mrb[0].mxu0
    %413 = vdwg.mxu0
    %415 = vrot.lane.b32.xlu0 %v343, 32
    %v416 = vpop.permute.xlu0 %415
    %v417 = vsel %vm246, %v416, 0
    %419 = vmatprep.subr.mxu0 0.0
    %420 = vmatpush1.msra.mxu0 %v230
    %421 = vmatprep.subr.mxu0 0.0
    %422 = vmatpush1.msra.mxu0 %v231
    %423 = vmatprep.subr.mxu0 0.0
    %424 = vmatpush1.msra.mxu0 %v232
    %425 = vmatprep.subr.mxu0 0.0
    %426 = vmatpush1.msra.mxu0 %v233
    %427 = vmatprep.subr.mxu0 0.0
    %428 = vmatpush1.msra.mxu0 0.0
    %429 = vmatprep.subr.mxu0 0.0
    %430 = vmatpush1.msra.mxu0 0.0
    %431 = vmatprep.subr.mxu0 0.0
    %432 = vmatpush1.msra.mxu0 0.0
    %433 = vmatprep.subr.mxu0 0.0
    %434 = vmatpush1.msra.mxu0 0.0
    %435 = vmatprep.subr.mxu0 0.0
    %436 = vmatpush1.msra.mxu0 0.0
    %437 = vmatprep.subr.mxu0 0.0
    %438 = vmatpush1.msra.mxu0 0.0
    %439 = vmatprep.subr.mxu0 0.0
    %440 = vmatpush1.msra.mxu0 0.0
    %441 = vmatprep.subr.mxu0 0.0
    %442 = vmatpush1.msra.mxu0 0.0
    %443 = vmatprep.subr.mxu0 0.0
    %444 = vmatpush1.msra.mxu0 0.0
    %445 = vmatprep.subr.mxu0 0.0
    %446 = vmatpush1.msra.mxu0 0.0
    %447 = vmatprep.subr.mxu0 0.0
    %448 = vmatpush1.msra.mxu0 0.0
    %449 = vmatprep.subr.mxu0 0.0
    %450 = vmatpush1.msra.mxu0 0.0
    %451 = vmatprep.subr.mxu0 0.0
    %452 = vmatpush1.msra.mxu0 0.0
    %453 = vmatprep.subr.mxu0 0.0
    %454 = vmatpush1.msra.mxu0 0.0
    %455 = vmatprep.subr.mxu0 0.0
    %456 = vmatpush1.msra.mxu0 0.0
    %457 = vmatprep.subr.mxu0 0.0
    %458 = vmatpush1.msra.mxu0 0.0
    %459 = vmatprep.subr.mxu0 0.0
    %460 = vmatpush1.msra.mxu0 0.0
    %461 = vmatprep.subr.mxu0 0.0
    %462 = vmatpush1.msra.mxu0 0.0
    %463 = vmatprep.subr.mxu0 0.0
    %464 = vmatpush1.msra.mxu0 0.0
    %465 = vmatprep.subr.mxu0 0.0
    %466 = vmatpush1.msra.mxu0 0.0
    %467 = vmatprep.subr.mxu0 0.0
    %468 = vmatpush1.msra.mxu0 0.0
    %469 = vmatprep.subr.mxu0 0.0
    %470 = vmatpush1.msra.mxu0 0.0
    %471 = vmatprep.subr.mxu0 0.0
    %472 = vmatpush1.msra.mxu0 0.0
    %473 = vmatprep.subr.mxu0 0.0
    %474 = vmatpush1.msra.mxu0 0.0
    %475 = vmatprep.subr.mxu0 0.0
    %476 = vmatpush1.msra.mxu0 0.0
    %477 = vmatprep.subr.mxu0 0.0
    %478 = vmatpush1.msra.mxu0 0.0
    %479 = vmatprep.subr.mxu0 0.0
    %480 = vmatpush1.msra.mxu0 0.0
    %481 = vmatprep.subr.mxu0 0.0
    %482 = vmatpush1.msra.mxu0 0.0
    %483 = vmatprep.mubr.f32.mxu0 0.0
    %484 = vmatmul.mubr.f32.gmra.mrb[0].mxu0 %v417
    %v485 = vpop.f32.mrb[0].mxu0
    %v486 = vadd.f32 %v411, %v485
    %v487 = vpop.f32.mrb[0].mxu0
    %488 = vdwg.mxu0
    %v490 = vlaneseq
    %v491 = vshrl.u32 %v490, 7
    %v492 = vsub.s32 0, %v491
    %v493 = vrot.slane %v239, %v492
    %v495 = vadd.f32 %v486, %v493
    %v496 = vxor.u32 %v495, 2147483648
    %v497 = vmul.f32 %v496, 1.442695
    %v498 = vpow.pop %v497
    %v499 = vadd.f32 %v498, 1.0
    %v500 = vrcp.pop %v499
    %v501 = vmul.f32 1.0, %v500
    %v502 = vtanh.pop %v495
    %v503 = vmul.f32 %v501, 0.0
    %505 = vrot.lane.b32.xlu0 %v502, 64
    %v506 = vpop.permute.xlu0 %505
    %v508 = vmul.f32 %v501, %v506
    %510 = vrot.lane.b32.xlu0 %v508, 32
    %v511 = vpop.permute.xlu0 %510
    %v513 = vadd.f32 %v503, %v511
    %v514 = vtanh.pop %v513
    %516 = vrot.lane.b32.xlu0 %v514, 64
    %v517 = vpop.permute.xlu0 %516
    %v519 = vmul.f32 %v501, %v517
    %521 = vrot.lane.b32.xlu0 %v519, 32
    %v522 = vpop.permute.xlu0 %521
    %vm524 = vcmask 254976
    %525 = vst.msk [vmem:[#allocation2] sm:$0x3] %vm524, %v522
    %526 = vmatprep.subr.mxu0 0.0
    %527 = vmatpush1.msra.mxu0 %v226
    %528 = vmatprep.subr.mxu0 0.0
    %529 = vmatpush1.msra.mxu0 %v227
    %530 = vmatprep.subr.mxu0 0.0
    %531 = vmatpush1.msra.mxu0 %v228
    %532 = vmatprep.subr.mxu0 0.0
    %533 = vmatpush1.msra.mxu0 %v229
    %534 = vmatprep.subr.mxu0 0.0
    %535 = vmatpush1.msra.mxu0 0.0
    %536 = vmatprep.subr.mxu0 0.0
    %537 = vmatpush1.msra.mxu0 0.0
    %538 = vmatprep.subr.mxu0 0.0
    %539 = vmatpush1.msra.mxu0 0.0
    %540 = vmatprep.subr.mxu0 0.0
    %541 = vmatpush1.msra.mxu0 0.0
    %542 = vmatprep.subr.mxu0 0.0
    %543 = vmatpush1.msra.mxu0 0.0
    %544 = vmatprep.subr.mxu0 0.0
    %545 = vmatpush1.msra.mxu0 0.0
    %546 = vmatprep.subr.mxu0 0.0
    %547 = vmatpush1.msra.mxu0 0.0
    %548 = vmatprep.subr.mxu0 0.0
    %549 = vmatpush1.msra.mxu0 0.0
    %550 = vmatprep.subr.mxu0 0.0
    %551 = vmatpush1.msra.mxu0 0.0
    %552 = vmatprep.subr.mxu0 0.0
    %553 = vmatpush1.msra.mxu0 0.0
    %554 = vmatprep.subr.mxu0 0.0
    %555 = vmatpush1.msra.mxu0 0.0
    %556 = vmatprep.subr.mxu0 0.0
    %557 = vmatpush1.msra.mxu0 0.0
    %558 = vmatprep.subr.mxu0 0.0
    %559 = vmatpush1.msra.mxu0 0.0
    %560 = vmatprep.subr.mxu0 0.0
    %561 = vmatpush1.msra.mxu0 0.0
    %562 = vmatprep.subr.mxu0 0.0
    %563 = vmatpush1.msra.mxu0 0.0
    %564 = vmatprep.subr.mxu0 0.0
    %565 = vmatpush1.msra.mxu0 0.0
    %566 = vmatprep.subr.mxu0 0.0
    %567 = vmatpush1.msra.mxu0 0.0
    %568 = vmatprep.subr.mxu0 0.0
    %569 = vmatpush1.msra.mxu0 0.0
    %570 = vmatprep.subr.mxu0 0.0
    %571 = vmatpush1.msra.mxu0 0.0
    %572 = vmatprep.subr.mxu0 0.0
    %573 = vmatpush1.msra.mxu0 0.0
    %574 = vmatprep.subr.mxu0 0.0
    %575 = vmatpush1.msra.mxu0 0.0
    %576 = vmatprep.subr.mxu0 0.0
    %577 = vmatpush1.msra.mxu0 0.0
    %578 = vmatprep.subr.mxu0 0.0
    %579 = vmatpush1.msra.mxu0 0.0
    %580 = vmatprep.subr.mxu0 0.0
    %581 = vmatpush1.msra.mxu0 0.0
    %582 = vmatprep.subr.mxu0 0.0
    %583 = vmatpush1.msra.mxu0 0.0
    %584 = vmatprep.subr.mxu0 0.0
    %585 = vmatpush1.msra.mxu0 0.0
    %586 = vmatprep.subr.mxu0 0.0
    %587 = vmatpush1.msra.mxu0 0.0
    %588 = vmatprep.subr.mxu0 0.0
    %589 = vmatpush1.msra.mxu0 0.0
    %590 = vmatprep.mubr.f32.mxu0 0.0
    %591 = vmatmul.mubr.f32.gmra.mrb[0].mxu0 %v417
    %v592 = vpop.f32.mrb[0].mxu0
    %v593 = vadd.f32 %v244, %v592
    %v594 = vpop.f32.mrb[0].mxu0
    %595 = vdwg.mxu0
    %v596 = vxor.u32 %v593, 2147483648
    %v597 = vmul.f32 %v596, 1.442695
    %v598 = vpow.pop %v597
    %v599 = vadd.f32 %v598, 1.0
    %v600 = vrcp.pop %v599
    %v601 = vmul.f32 1.0, %v600
    %v602 = vtanh.pop %v593
    %v603 = vmul.f32 %v601, %v337
    %605 = vrot.lane.b32.xlu0 %v602, 64
    %v606 = vpop.permute.xlu0 %605
    %v608 = vmul.f32 %v601, %v606
    %610 = vrot.lane.b32.xlu0 %v608, 32
    %v611 = vpop.permute.xlu0 %610
    %v613 = vadd.f32 %v603, %v611
    %v614 = vtanh.pop %v613
    %616 = vrot.lane.b32.xlu0 %v614, 64
    %v617 = vpop.permute.xlu0 %616
    %v619 = vmul.f32 %v601, %v617
    %v620 = vsel %vm246, %v522, 0
    %622 = vmatprep.subr.mxu0 0.0
    %623 = vmatpush1.msra.mxu0 %v234
    %624 = vmatprep.subr.mxu0 0.0
    %625 = vmatpush1.msra.mxu0 %v235
    %626 = vmatprep.subr.mxu0 0.0
    %627 = vmatpush1.msra.mxu0 %v236
    %628 = vmatprep.subr.mxu0 0.0
    %629 = vmatpush1.msra.mxu0 %v237
    %630 = vmatprep.subr.mxu0 0.0
    %631 = vmatpush1.msra.mxu0 0.0
    %632 = vmatprep.subr.mxu0 0.0
    %633 = vmatpush1.msra.mxu0 0.0
    %634 = vmatprep.subr.mxu0 0.0
    %635 = vmatpush1.msra.mxu0 0.0
    %636 = vmatprep.subr.mxu0 0.0
    %637 = vmatpush1.msra.mxu0 0.0
    %638 = vmatprep.subr.mxu0 0.0
    %639 = vmatpush1.msra.mxu0 0.0
    %640 = vmatprep.subr.mxu0 0.0
    %641 = vmatpush1.msra.mxu0 0.0
    %642 = vmatprep.subr.mxu0 0.0
    %643 = vmatpush1.msra.mxu0 0.0
    %644 = vmatprep.subr.mxu0 0.0
    %645 = vmatpush1.msra.mxu0 0.0
    %646 = vmatprep.subr.mxu0 0.0
    %647 = vmatpush1.msra.mxu0 0.0
    %648 = vmatprep.subr.mxu0 0.0
    %649 = vmatpush1.msra.mxu0 0.0
    %650 = vmatprep.subr.mxu0 0.0
    %651 = vmatpush1.msra.mxu0 0.0
    %652 = vmatprep.subr.mxu0 0.0
    %653 = vmatpush1.msra.mxu0 0.0
    %654 = vmatprep.subr.mxu0 0.0
    %655 = vmatpush1.msra.mxu0 0.0
    %656 = vmatprep.subr.mxu0 0.0
    %657 = vmatpush1.msra.mxu0 0.0
    %658 = vmatprep.subr.mxu0 0.0
    %659 = vmatpush1.msra.mxu0 0.0
    %660 = vmatprep.subr.mxu0 0.0
    %661 = vmatpush1.msra.mxu0 0.0
    %662 = vmatprep.subr.mxu0 0.0
    %663 = vmatpush1.msra.mxu0 0.0
    %664 = vmatprep.subr.mxu0 0.0
    %665 = vmatpush1.msra.mxu0 0.0
    %666 = vmatprep.subr.mxu0 0.0
    %667 = vmatpush1.msra.mxu0 0.0
    %668 = vmatprep.subr.mxu0 0.0
    %669 = vmatpush1.msra.mxu0 0.0
    %670 = vmatprep.subr.mxu0 0.0
    %671 = vmatpush1.msra.mxu0 0.0
    %672 = vmatprep.subr.mxu0 0.0
    %673 = vmatpush1.msra.mxu0 0.0
    %674 = vmatprep.subr.mxu0 0.0
    %675 = vmatpush1.msra.mxu0 0.0
    %676 = vmatprep.subr.mxu0 0.0
    %677 = vmatpush1.msra.mxu0 0.0
    %678 = vmatprep.subr.mxu0 0.0
    %679 = vmatpush1.msra.mxu0 0.0
    %680 = vmatprep.subr.mxu0 0.0
    %681 = vmatpush1.msra.mxu0 0.0
    %682 = vmatprep.subr.mxu0 0.0
    %683 = vmatpush1.msra.mxu0 0.0
    %684 = vmatprep.subr.mxu0 0.0
    %685 = vmatpush1.msra.mxu0 0.0
    %686 = vmatprep.mubr.f32.mxu0 0.0
    %687 = vmatmul.mubr.f32.gmra.mrb[0].mxu0 %v620
    %v688 = vpop.f32.mrb[0].mxu0
    %v689 = vadd.f32 0.0, %v688
    %v690 = vpop.f32.mrb[0].mxu0
    %691 = vdwg.mxu0
    %693 = vrot.lane.b32.xlu0 %v619, 32
    %v694 = vpop.permute.xlu0 %693
    %v695 = vsel %vm246, %v694, 0
    %697 = vmatprep.subr.mxu0 0.0
    %698 = vmatpush1.msra.mxu0 %v230
    %699 = vmatprep.subr.mxu0 0.0
    %700 = vmatpush1.msra.mxu0 %v231
    %701 = vmatprep.subr.mxu0 0.0
    %702 = vmatpush1.msra.mxu0 %v232
    %703 = vmatprep.subr.mxu0 0.0
    %704 = vmatpush1.msra.mxu0 %v233
    %705 = vmatprep.subr.mxu0 0.0
    %706 = vmatpush1.msra.mxu0 0.0
    %707 = vmatprep.subr.mxu0 0.0
    %708 = vmatpush1.msra.mxu0 0.0
    %709 = vmatprep.subr.mxu0 0.0
    %710 = vmatpush1.msra.mxu0 0.0
    %711 = vmatprep.subr.mxu0 0.0
    %712 = vmatpush1.msra.mxu0 0.0
    %713 = vmatprep.subr.mxu0 0.0
    %714 = vmatpush1.msra.mxu0 0.0
    %715 = vmatprep.subr.mxu0 0.0
    %716 = vmatpush1.msra.mxu0 0.0
    %717 = vmatprep.subr.mxu0 0.0
    %718 = vmatpush1.msra.mxu0 0.0
    %719 = vmatprep.subr.mxu0 0.0
    %720 = vmatpush1.msra.mxu0 0.0
    %721 = vmatprep.subr.mxu0 0.0
    %722 = vmatpush1.msra.mxu0 0.0
    %723 = vmatprep.subr.mxu0 0.0
    %724 = vmatpush1.msra.mxu0 0.0
    %725 = vmatprep.subr.mxu0 0.0
    %726 = vmatpush1.msra.mxu0 0.0
    %727 = vmatprep.subr.mxu0 0.0
    %728 = vmatpush1.msra.mxu0 0.0
    %729 = vmatprep.subr.mxu0 0.0
    %730 = vmatpush1.msra.mxu0 0.0
    %731 = vmatprep.subr.mxu0 0.0
    %732 = vmatpush1.msra.mxu0 0.0
    %733 = vmatprep.subr.mxu0 0.0
    %734 = vmatpush1.msra.mxu0 0.0
    %735 = vmatprep.subr.mxu0 0.0
    %736 = vmatpush1.msra.mxu0 0.0
    %737 = vmatprep.subr.mxu0 0.0
    %738 = vmatpush1.msra.mxu0 0.0
    %739 = vmatprep.subr.mxu0 0.0
    %740 = vmatpush1.msra.mxu0 0.0
    %741 = vmatprep.subr.mxu0 0.0
    %742 = vmatpush1.msra.mxu0 0.0
    %743 = vmatprep.subr.mxu0 0.0
    %744 = vmatpush1.msra.mxu0 0.0
    %745 = vmatprep.subr.mxu0 0.0
    %746 = vmatpush1.msra.mxu0 0.0
    %747 = vmatprep.subr.mxu0 0.0
    %748 = vmatpush1.msra.mxu0 0.0
    %749 = vmatprep.subr.mxu0 0.0
    %750 = vmatpush1.msra.mxu0 0.0
    %751 = vmatprep.subr.mxu0 0.0
    %752 = vmatpush1.msra.mxu0 0.0
    %753 = vmatprep.subr.mxu0 0.0
    %754 = vmatpush1.msra.mxu0 0.0
    %755 = vmatprep.subr.mxu0 0.0
    %756 = vmatpush1.msra.mxu0 0.0
    %757 = vmatprep.subr.mxu0 0.0
    %758 = vmatpush1.msra.mxu0 0.0
    %759 = vmatprep.subr.mxu0 0.0
    %760 = vmatpush1.msra.mxu0 0.0
    %761 = vmatprep.mubr.f32.mxu0 0.0
    %762 = vmatmul.mubr.f32.gmra.mrb[0].mxu0 %v695
    %v763 = vpop.f32.mrb[0].mxu0
    %v764 = vadd.f32 %v689, %v763
    %v765 = vpop.f32.mrb[0].mxu0
    %766 = vdwg.mxu0
    %v767 = vadd.f32 %v764, %v493
    %v768 = vxor.u32 %v767, 2147483648
    %v769 = vmul.f32 %v768, 1.442695
    %v770 = vpow.pop %v769
    %v771 = vadd.f32 %v770, 1.0
    %v772 = vrcp.pop %v771
    %v773 = vmul.f32 1.0, %v772
    %v774 = vtanh.pop %v767
    %v775 = vmul.f32 %v773, %v513
    %777 = vrot.lane.b32.xlu0 %v774, 64
    %v778 = vpop.permute.xlu0 %777
    %v780 = vmul.f32 %v773, %v778
    %782 = vrot.lane.b32.xlu0 %v780, 32
    %v783 = vpop.permute.xlu0 %782
    %v785 = vadd.f32 %v775, %v783
    %v786 = vtanh.pop %v785
    %788 = vrot.lane.b32.xlu0 %v786, 64
    %v789 = vpop.permute.xlu0 %788
    %v791 = vmul.f32 %v773, %v789
    %793 = vrot.lane.b32.xlu0 %v791, 32
    %v794 = vpop.permute.xlu0 %793
    %796 = vst.msk [vmem:[#allocation2 + $0x2] sm:$0x3] %vm524, %v794
    %797 = vmatprep.subr.mxu0 0.0
    %798 = vmatpush1.msra.mxu0 %v226
    %799 = vmatprep.subr.mxu0 0.0
    %800 = vmatpush1.msra.mxu0 %v227
    %801 = vmatprep.subr.mxu0 0.0
    %802 = vmatpush1.msra.mxu0 %v228
    %803 = vmatprep.subr.mxu0 0.0
    %804 = vmatpush1.msra.mxu0 %v229
    %805 = vmatprep.subr.mxu0 0.0
    %806 = vmatpush1.msra.mxu0 0.0
    %807 = vmatprep.subr.mxu0 0.0
    %808 = vmatpush1.msra.mxu0 0.0
    %809 = vmatprep.subr.mxu0 0.0
    %810 = vmatpush1.msra.mxu0 0.0
    %811 = vmatprep.subr.mxu0 0.0
    %812 = vmatpush1.msra.mxu0 0.0
    %813 = vmatprep.subr.mxu0 0.0
    %814 = vmatpush1.msra.mxu0 0.0
    %815 = vmatprep.subr.mxu0 0.0
    %816 = vmatpush1.msra.mxu0 0.0
    %817 = vmatprep.subr.mxu0 0.0
    %818 = vmatpush1.msra.mxu0 0.0
    %819 = vmatprep.subr.mxu0 0.0
    %820 = vmatpush1.msra.mxu0 0.0
    %821 = vmatprep.subr.mxu0 0.0
    %822 = vmatpush1.msra.mxu0 0.0
    %823 = vmatprep.subr.mxu0 0.0
    %824 = vmatpush1.msra.mxu0 0.0
    %825 = vmatprep.subr.mxu0 0.0
    %826 = vmatpush1.msra.mxu0 0.0
    %827 = vmatprep.subr.mxu0 0.0
    %828 = vmatpush1.msra.mxu0 0.0
    %829 = vmatprep.subr.mxu0 0.0
    %830 = vmatpush1.msra.mxu0 0.0
    %831 = vmatprep.subr.mxu0 0.0
    %832 = vmatpush1.msra.mxu0 0.0
    %833 = vmatprep.subr.mxu0 0.0
    %834 = vmatpush1.msra.mxu0 0.0
    %835 = vmatprep.subr.mxu0 0.0
    %836 = vmatpush1.msra.mxu0 0.0
    %837 = vmatprep.subr.mxu0 0.0
    %838 = vmatpush1.msra.mxu0 0.0
    %839 = vmatprep.subr.mxu0 0.0
    %840 = vmatpush1.msra.mxu0 0.0
    %841 = vmatprep.subr.mxu0 0.0
    %842 = vmatpush1.msra.mxu0 0.0
    %843 = vmatprep.subr.mxu0 0.0
    %844 = vmatpush1.msra.mxu0 0.0
    %845 = vmatprep.subr.mxu0 0.0
    %846 = vmatpush1.msra.mxu0 0.0
    %847 = vmatprep.subr.mxu0 0.0
    %848 = vmatpush1.msra.mxu0 0.0
    %849 = vmatprep.subr.mxu0 0.0
    %850 = vmatpush1.msra.mxu0 0.0
    %851 = vmatprep.subr.mxu0 0.0
    %852 = vmatpush1.msra.mxu0 0.0
    %853 = vmatprep.subr.mxu0 0.0
    %854 = vmatpush1.msra.mxu0 0.0
    %855 = vmatprep.subr.mxu0 0.0
    %856 = vmatpush1.msra.mxu0 0.0
    %857 = vmatprep.subr.mxu0 0.0
    %858 = vmatpush1.msra.mxu0 0.0
    %859 = vmatprep.subr.mxu0 0.0
    %860 = vmatpush1.msra.mxu0 0.0
    %861 = vmatprep.mubr.f32.mxu0 0.0
    %862 = vmatmul.mubr.f32.gmra.mrb[0].mxu0 %v695
    %v863 = vpop.f32.mrb[0].mxu0
    %v864 = vadd.f32 %v244, %v863
    %v865 = vpop.f32.mrb[0].mxu0
    %866 = vdwg.mxu0
    %v867 = vxor.u32 %v864, 2147483648
    %v868 = vmul.f32 %v867, 1.442695
    %v869 = vpow.pop %v868
    %v870 = vadd.f32 %v869, 1.0
    %v871 = vrcp.pop %v870
    %v872 = vmul.f32 1.0, %v871
    %v873 = vtanh.pop %v864
    %v874 = vmul.f32 %v872, %v613
    %876 = vrot.lane.b32.xlu0 %v873, 64
    %v877 = vpop.permute.xlu0 %876
    %v879 = vmul.f32 %v872, %v877
    %881 = vrot.lane.b32.xlu0 %v879, 32
    %v882 = vpop.permute.xlu0 %881
    %v884 = vadd.f32 %v874, %v882
    %v885 = vtanh.pop %v884
    %887 = vrot.lane.b32.xlu0 %v885, 64
    %v888 = vpop.permute.xlu0 %887
    %v890 = vmul.f32 %v872, %v888
    %v891 = vsel %vm246, %v794, 0
    %893 = vmatprep.subr.mxu0 0.0
    %894 = vmatpush1.msra.mxu0 %v234
    %895 = vmatprep.subr.mxu0 0.0
    %896 = vmatpush1.msra.mxu0 %v235
    %897 = vmatprep.subr.mxu0 0.0
    %898 = vmatpush1.msra.mxu0 %v236
    %899 = vmatprep.subr.mxu0 0.0
    %900 = vmatpush1.msra.mxu0 %v237
    %901 = vmatprep.subr.mxu0 0.0
    %902 = vmatpush1.msra.mxu0 0.0
    %903 = vmatprep.subr.mxu0 0.0
    %904 = vmatpush1.msra.mxu0 0.0
    %905 = vmatprep.subr.mxu0 0.0
    %906 = vmatpush1.msra.mxu0 0.0
    %907 = vmatprep.subr.mxu0 0.0
    %908 = vmatpush1.msra.mxu0 0.0
    %909 = vmatprep.subr.mxu0 0.0
    %910 = vmatpush1.msra.mxu0 0.0
    %911 = vmatprep.subr.mxu0 0.0
    %912 = vmatpush1.msra.mxu0 0.0
    %913 = vmatprep.subr.mxu0 0.0
    %914 = vmatpush1.msra.mxu0 0.0
    %915 = vmatprep.subr.mxu0 0.0
    %916 = vmatpush1.msra.mxu0 0.0
    %917 = vmatprep.subr.mxu0 0.0
    %918 = vmatpush1.msra.mxu0 0.0
    %919 = vmatprep.subr.mxu0 0.0
    %920 = vmatpush1.msra.mxu0 0.0
    %921 = vmatprep.subr.mxu0 0.0
    %922 = vmatpush1.msra.mxu0 0.0
    %923 = vmatprep.subr.mxu0 0.0
    %924 = vmatpush1.msra.mxu0 0.0
    %925 = vmatprep.subr.mxu0 0.0
    %926 = vmatpush1.msra.mxu0 0.0
    %927 = vmatprep.subr.mxu0 0.0
    %928 = vmatpush1.msra.mxu0 0.0
    %929 = vmatprep.subr.mxu0 0.0
    %930 = vmatpush1.msra.mxu0 0.0
    %931 = vmatprep.subr.mxu0 0.0
    %932 = vmatpush1.msra.mxu0 0.0
    %933 = vmatprep.subr.mxu0 0.0
    %934 = vmatpush1.msra.mxu0 0.0
    %935 = vmatprep.subr.mxu0 0.0
    %936 = vmatpush1.msra.mxu0 0.0
    %937 = vmatprep.subr.mxu0 0.0
    %938 = vmatpush1.msra.mxu0 0.0
    %939 = vmatprep.subr.mxu0 0.0
    %940 = vmatpush1.msra.mxu0 0.0
    %941 = vmatprep.subr.mxu0 0.0
    %942 = vmatpush1.msra.mxu0 0.0
    %943 = vmatprep.subr.mxu0 0.0
    %944 = vmatpush1.msra.mxu0 0.0
    %945 = vmatprep.subr.mxu0 0.0
    %946 = vmatpush1.msra.mxu0 0.0
    %947 = vmatprep.subr.mxu0 0.0
    %948 = vmatpush1.msra.mxu0 0.0
    %949 = vmatprep.subr.mxu0 0.0
    %950 = vmatpush1.msra.mxu0 0.0
    %951 = vmatprep.subr.mxu0 0.0
    %952 = vmatpush1.msra.mxu0 0.0
    %953 = vmatprep.subr.mxu0 0.0
    %954 = vmatpush1.msra.mxu0 0.0
    %955 = vmatprep.subr.mxu0 0.0
    %956 = vmatpush1.msra.mxu0 0.0
    %957 = vmatprep.mubr.f32.mxu0 0.0
    %958 = vmatmul.mubr.f32.gmra.mrb[0].mxu0 %v891
    %v959 = vpop.f32.mrb[0].mxu0
    %v960 = vadd.f32 0.0, %v959
    %v961 = vpop.f32.mrb[0].mxu0
    %962 = vdwg.mxu0
    %964 = vrot.lane.b32.xlu0 %v890, 32
    %v965 = vpop.permute.xlu0 %964
    %v966 = vsel %vm246, %v965, 0
    %968 = vmatprep.subr.mxu0 0.0
    %969 = vmatpush1.msra.mxu0 %v230
    %970 = vmatprep.subr.mxu0 0.0
    %971 = vmatpush1.msra.mxu0 %v231
    %972 = vmatprep.subr.mxu0 0.0
    %973 = vmatpush1.msra.mxu0 %v232
    %974 = vmatprep.subr.mxu0 0.0
    %975 = vmatpush1.msra.mxu0 %v233
    %976 = vmatprep.subr.mxu0 0.0
    %977 = vmatpush1.msra.mxu0 0.0
    %978 = vmatprep.subr.mxu0 0.0
    %979 = vmatpush1.msra.mxu0 0.0
    %980 = vmatprep.subr.mxu0 0.0
    %981 = vmatpush1.msra.mxu0 0.0
    %982 = vmatprep.subr.mxu0 0.0
    %983 = vmatpush1.msra.mxu0 0.0
    %984 = vmatprep.subr.mxu0 0.0
    %985 = vmatpush1.msra.mxu0 0.0
    %986 = vmatprep.subr.mxu0 0.0
    %987 = vmatpush1.msra.mxu0 0.0
    %988 = vmatprep.subr.mxu0 0.0
    %989 = vmatpush1.msra.mxu0 0.0
    %990 = vmatprep.subr.mxu0 0.0
    %991 = vmatpush1.msra.mxu0 0.0
    %992 = vmatprep.subr.mxu0 0.0
    %993 = vmatpush1.msra.mxu0 0.0
    %994 = vmatprep.subr.mxu0 0.0
    %995 = vmatpush1.msra.mxu0 0.0
    %996 = vmatprep.subr.mxu0 0.0
    %997 = vmatpush1.msra.mxu0 0.0
    %998 = vmatprep.subr.mxu0 0.0
    %999 = vmatpush1.msra.mxu0 0.0
    %1000 = vmatprep.subr.mxu0 0.0
    %1001 = vmatpush1.msra.mxu0 0.0
    %1002 = vmatprep.subr.mxu0 0.0
    %1003 = vmatpush1.msra.mxu0 0.0
    %1004 = vmatprep.subr.mxu0 0.0
    %1005 = vmatpush1.msra.mxu0 0.0
    %1006 = vmatprep.subr.mxu0 0.0
    %1007 = vmatpush1.msra.mxu0 0.0
    %1008 = vmatprep.subr.mxu0 0.0
    %1009 = vmatpush1.msra.mxu0 0.0
    %1010 = vmatprep.subr.mxu0 0.0
    %1011 = vmatpush1.msra.mxu0 0.0
    %1012 = vmatprep.subr.mxu0 0.0
    %1013 = vmatpush1.msra.mxu0 0.0
    %1014 = vmatprep.subr.mxu0 0.0
    %1015 = vmatpush1.msra.mxu0 0.0
    %1016 = vmatprep.subr.mxu0 0.0
    %1017 = vmatpush1.msra.mxu0 0.0
    %1018 = vmatprep.subr.mxu0 0.0
    %1019 = vmatpush1.msra.mxu0 0.0
    %1020 = vmatprep.subr.mxu0 0.0
    %1021 = vmatpush1.msra.mxu0 0.0
    %1022 = vmatprep.subr.mxu0 0.0
    %1023 = vmatpush1.msra.mxu0 0.0
    %1024 = vmatprep.subr.mxu0 0.0
    %1025 = vmatpush1.msra.mxu0 0.0
    %1026 = vmatprep.subr.mxu0 0.0
    %1027 = vmatpush1.msra.mxu0 0.0
    %1028 = vmatprep.subr.mxu0 0.0
    %1029 = vmatpush1.msra.mxu0 0.0
    %1030 = vmatprep.subr.mxu0 0.0
    %1031 = vmatpush1.msra.mxu0 0.0
    %1032 = vmatprep.mubr.f32.mxu0 0.0
    %1033 = vmatmul.mubr.f32.gmra.mrb[0].mxu0 %v966
    %v1034 = vpop.f32.mrb[0].mxu0
    %v1035 = vadd.f32 %v960, %v1034
    %v1036 = vpop.f32.mrb[0].mxu0
    %1037 = vdwg.mxu0
    %v1038 = vadd.f32 %v1035, %v493
    %v1039 = vxor.u32 %v1038, 2147483648
    %v1040 = vmul.f32 %v1039, 1.442695
    %v1041 = vpow.pop %v1040
    %v1042 = vadd.f32 %v1041, 1.0
    %v1043 = vrcp.pop %v1042
    %v1044 = vmul.f32 1.0, %v1043
    %v1045 = vtanh.pop %v1038
    %v1046 = vmul.f32 %v1044, %v785
    %1048 = vrot.lane.b32.xlu0 %v1045, 64
    %v1049 = vpop.permute.xlu0 %1048
    %v1051 = vmul.f32 %v1044, %v1049
    %1053 = vrot.lane.b32.xlu0 %v1051, 32
    %v1054 = vpop.permute.xlu0 %1053
    %v1056 = vadd.f32 %v1046, %v1054
    %v1057 = vtanh.pop %v1056
    %1059 = vrot.lane.b32.xlu0 %v1057, 64
    %v1060 = vpop.permute.xlu0 %1059
    %v1062 = vmul.f32 %v1044, %v1060
    %1064 = vrot.lane.b32.xlu0 %v1062, 32
    %v1065 = vpop.permute.xlu0 %1064
    %1067 = vst.msk [vmem:[#allocation2 + $0x4] sm:$0x3] %vm524, %v1065
    %1068 = vmatprep.subr.mxu0 0.0
    %1069 = vmatpush1.msra.mxu0 %v226
    %1070 = vmatprep.subr.mxu0 0.0
    %1071 = vmatpush1.msra.mxu0 %v227
    %1072 = vmatprep.subr.mxu0 0.0
    %1073 = vmatpush1.msra.mxu0 %v228
    %1074 = vmatprep.subr.mxu0 0.0
    %1075 = vmatpush1.msra.mxu0 %v229
    %1076 = vmatprep.subr.mxu0 0.0
    %1077 = vmatpush1.msra.mxu0 0.0
    %1078 = vmatprep.subr.mxu0 0.0
    %1079 = vmatpush1.msra.mxu0 0.0
    %1080 = vmatprep.subr.mxu0 0.0
    %1081 = vmatpush1.msra.mxu0 0.0
    %1082 = vmatprep.subr.mxu0 0.0
    %1083 = vmatpush1.msra.mxu0 0.0
    %1084 = vmatprep.subr.mxu0 0.0
    %1085 = vmatpush1.msra.mxu0 0.0
    %1086 = vmatprep.subr.mxu0 0.0
    %1087 = vmatpush1.msra.mxu0 0.0
    %1088 = vmatprep.subr.mxu0 0.0
    %1089 = vmatpush1.msra.mxu0 0.0
    %1090 = vmatprep.subr.mxu0 0.0
    %1091 = vmatpush1.msra.mxu0 0.0
    %1092 = vmatprep.subr.mxu0 0.0
    %1093 = vmatpush1.msra.mxu0 0.0
    %1094 = vmatprep.subr.mxu0 0.0
    %1095 = vmatpush1.msra.mxu0 0.0
    %1096 = vmatprep.subr.mxu0 0.0
    %1097 = vmatpush1.msra.mxu0 0.0
    %1098 = vmatprep.subr.mxu0 0.0
    %1099 = vmatpush1.msra.mxu0 0.0
    %1100 = vmatprep.subr.mxu0 0.0
    %1101 = vmatpush1.msra.mxu0 0.0
    %1102 = vmatprep.subr.mxu0 0.0
    %1103 = vmatpush1.msra.mxu0 0.0
    %1104 = vmatprep.subr.mxu0 0.0
    %1105 = vmatpush1.msra.mxu0 0.0
    %1106 = vmatprep.subr.mxu0 0.0
    %1107 = vmatpush1.msra.mxu0 0.0
    %1108 = vmatprep.subr.mxu0 0.0
    %1109 = vmatpush1.msra.mxu0 0.0
    %1110 = vmatprep.subr.mxu0 0.0
    %1111 = vmatpush1.msra.mxu0 0.0
    %1112 = vmatprep.subr.mxu0 0.0
    %1113 = vmatpush1.msra.mxu0 0.0
    %1114 = vmatprep.subr.mxu0 0.0
    %1115 = vmatpush1.msra.mxu0 0.0
    %1116 = vmatprep.subr.mxu0 0.0
    %1117 = vmatpush1.msra.mxu0 0.0
    %1118 = vmatprep.subr.mxu0 0.0
    %1119 = vmatpush1.msra.mxu0 0.0
    %1120 = vmatprep.subr.mxu0 0.0
    %1121 = vmatpush1.msra.mxu0 0.0
    %1122 = vmatprep.subr.mxu0 0.0
    %1123 = vmatpush1.msra.mxu0 0.0
    %1124 = vmatprep.subr.mxu0 0.0
    %1125 = vmatpush1.msra.mxu0 0.0
    %1126 = vmatprep.subr.mxu0 0.0
    %1127 = vmatpush1.msra.mxu0 0.0
    %1128 = vmatprep.subr.mxu0 0.0
    %1129 = vmatpush1.msra.mxu0 0.0
    %1130 = vmatprep.subr.mxu0 0.0
    %1131 = vmatpush1.msra.mxu0 0.0
    %1132 = vmatprep.mubr.f32.mxu0 0.0
    %1133 = vmatmul.mubr.f32.gmra.mrb[0].mxu0 %v966
    %v1134 = vpop.f32.mrb[0].mxu0
    %v1135 = vadd.f32 %v244, %v1134
    %v1136 = vpop.f32.mrb[0].mxu0
    %1137 = vdwg.mxu0
    %v1138 = vxor.u32 %v1135, 2147483648
    %v1139 = vmul.f32 %v1138, 1.442695
    %v1140 = vpow.pop %v1139
    %v1141 = vadd.f32 %v1140, 1.0
    %v1142 = vrcp.pop %v1141
    %v1143 = vmul.f32 1.0, %v1142
    %v1144 = vtanh.pop %v1135
    %v1145 = vmul.f32 %v1143, %v884
    %1147 = vrot.lane.b32.xlu0 %v1144, 64
    %v1148 = vpop.permute.xlu0 %1147
    %v1150 = vmul.f32 %v1143, %v1148
    %1152 = vrot.lane.b32.xlu0 %v1150, 32
    %v1153 = vpop.permute.xlu0 %1152
    %v1155 = vadd.f32 %v1145, %v1153
    %v1156 = vtanh.pop %v1155
    %1158 = vrot.lane.b32.xlu0 %v1156, 64
    %v1159 = vpop.permute.xlu0 %1158
    %v1161 = vmul.f32 %v1143, %v1159
    %v1162 = vsel %vm246, %v1065, 0
    %1164 = vmatprep.subr.mxu0 0.0
    %1165 = vmatpush1.msra.mxu0 %v234
    %1166 = vmatprep.subr.mxu0 0.0
    %1167 = vmatpush1.msra.mxu0 %v235
    %1168 = vmatprep.subr.mxu0 0.0
    %1169 = vmatpush1.msra.mxu0 %v236
    %1170 = vmatprep.subr.mxu0 0.0
    %1171 = vmatpush1.msra.mxu0 %v237
    %1172 = vmatprep.subr.mxu0 0.0
    %1173 = vmatpush1.msra.mxu0 0.0
    %1174 = vmatprep.subr.mxu0 0.0
    %1175 = vmatpush1.msra.mxu0 0.0
    %1176 = vmatprep.subr.mxu0 0.0
    %1177 = vmatpush1.msra.mxu0 0.0
    %1178 = vmatprep.subr.mxu0 0.0
    %1179 = vmatpush1.msra.mxu0 0.0
    %1180 = vmatprep.subr.mxu0 0.0
    %1181 = vmatpush1.msra.mxu0 0.0
    %1182 = vmatprep.subr.mxu0 0.0
    %1183 = vmatpush1.msra.mxu0 0.0
    %1184 = vmatprep.subr.mxu0 0.0
    %1185 = vmatpush1.msra.mxu0 0.0
    %1186 = vmatprep.subr.mxu0 0.0
    %1187 = vmatpush1.msra.mxu0 0.0
    %1188 = vmatprep.subr.mxu0 0.0
    %1189 = vmatpush1.msra.mxu0 0.0
    %1190 = vmatprep.subr.mxu0 0.0
    %1191 = vmatpush1.msra.mxu0 0.0
    %1192 = vmatprep.subr.mxu0 0.0
    %1193 = vmatpush1.msra.mxu0 0.0
    %1194 = vmatprep.subr.mxu0 0.0
    %1195 = vmatpush1.msra.mxu0 0.0
    %1196 = vmatprep.subr.mxu0 0.0
    %1197 = vmatpush1.msra.mxu0 0.0
    %1198 = vmatprep.subr.mxu0 0.0
    %1199 = vmatpush1.msra.mxu0 0.0
    %1200 = vmatprep.subr.mxu0 0.0
    %1201 = vmatpush1.msra.mxu0 0.0
    %1202 = vmatprep.subr.mxu0 0.0
    %1203 = vmatpush1.msra.mxu0 0.0
    %1204 = vmatprep.subr.mxu0 0.0
    %1205 = vmatpush1.msra.mxu0 0.0
    %1206 = vmatprep.subr.mxu0 0.0
    %1207 = vmatpush1.msra.mxu0 0.0
    %1208 = vmatprep.subr.mxu0 0.0
    %1209 = vmatpush1.msra.mxu0 0.0
    %1210 = vmatprep.subr.mxu0 0.0
    %1211 = vmatpush1.msra.mxu0 0.0
    %1212 = vmatprep.subr.mxu0 0.0
    %1213 = vmatpush1.msra.mxu0 0.0
    %1214 = vmatprep.subr.mxu0 0.0
    %1215 = vmatpush1.msra.mxu0 0.0
    %1216 = vmatprep.subr.mxu0 0.0
    %1217 = vmatpush1.msra.mxu0 0.0
    %1218 = vmatprep.subr.mxu0 0.0
    %1219 = vmatpush1.msra.mxu0 0.0
    %1220 = vmatprep.subr.mxu0 0.0
    %1221 = vmatpush1.msra.mxu0 0.0
    %1222 = vmatprep.subr.mxu0 0.0
    %1223 = vmatpush1.msra.mxu0 0.0
    %1224 = vmatprep.subr.mxu0 0.0
    %1225 = vmatpush1.msra.mxu0 0.0
    %1226 = vmatprep.subr.mxu0 0.0
    %1227 = vmatpush1.msra.mxu0 0.0
    %1228 = vmatprep.mubr.f32.mxu0 0.0
    %1229 = vmatmul.mubr.f32.gmra.mrb[0].mxu0 %v1162
    %v1230 = vpop.f32.mrb[0].mxu0
    %v1231 = vadd.f32 0.0, %v1230
    %v1232 = vpop.f32.mrb[0].mxu0
    %1233 = vdwg.mxu0
    %1235 = vrot.lane.b32.xlu0 %v1161, 32
    %v1236 = vpop.permute.xlu0 %1235
    %v1237 = vsel %vm246, %v1236, 0
    %1239 = vmatprep.subr.mxu0 0.0
    %1240 = vmatpush1.msra.mxu0 %v230
    %1241 = vmatprep.subr.mxu0 0.0
    %1242 = vmatpush1.msra.mxu0 %v231
    %1243 = vmatprep.subr.mxu0 0.0
    %1244 = vmatpush1.msra.mxu0 %v232
    %1245 = vmatprep.subr.mxu0 0.0
    %1246 = vmatpush1.msra.mxu0 %v233
    %1247 = vmatprep.subr.mxu0 0.0
    %1248 = vmatpush1.msra.mxu0 0.0
    %1249 = vmatprep.subr.mxu0 0.0
    %1250 = vmatpush1.msra.mxu0 0.0
    %1251 = vmatprep.subr.mxu0 0.0
    %1252 = vmatpush1.msra.mxu0 0.0
    %1253 = vmatprep.subr.mxu0 0.0
    %1254 = vmatpush1.msra.mxu0 0.0
    %1255 = vmatprep.subr.mxu0 0.0
    %1256 = vmatpush1.msra.mxu0 0.0
    %1257 = vmatprep.subr.mxu0 0.0
    %1258 = vmatpush1.msra.mxu0 0.0
    %1259 = vmatprep.subr.mxu0 0.0
    %1260 = vmatpush1.msra.mxu0 0.0
    %1261 = vmatprep.subr.mxu0 0.0
    %1262 = vmatpush1.msra.mxu0 0.0
    %1263 = vmatprep.subr.mxu0 0.0
    %1264 = vmatpush1.msra.mxu0 0.0
    %1265 = vmatprep.subr.mxu0 0.0
    %1266 = vmatpush1.msra.mxu0 0.0
    %1267 = vmatprep.subr.mxu0 0.0
    %1268 = vmatpush1.msra.mxu0 0.0
    %1269 = vmatprep.subr.mxu0 0.0
    %1270 = vmatpush1.msra.mxu0 0.0
    %1271 = vmatprep.subr.mxu0 0.0
    %1272 = vmatpush1.msra.mxu0 0.0
    %1273 = vmatprep.subr.mxu0 0.0
    %1274 = vmatpush1.msra.mxu0 0.0
    %1275 = vmatprep.subr.mxu0 0.0
    %1276 = vmatpush1.msra.mxu0 0.0
    %1277 = vmatprep.subr.mxu0 0.0
    %1278 = vmatpush1.msra.mxu0 0.0
    %1279 = vmatprep.subr.mxu0 0.0
    %1280 = vmatpush1.msra.mxu0 0.0
    %1281 = vmatprep.subr.mxu0 0.0
    %1282 = vmatpush1.msra.mxu0 0.0
    %1283 = vmatprep.subr.mxu0 0.0
    %1284 = vmatpush1.msra.mxu0 0.0
    %1285 = vmatprep.subr.mxu0 0.0
    %1286 = vmatpush1.msra.mxu0 0.0
    %1287 = vmatprep.subr.mxu0 0.0
    %1288 = vmatpush1.msra.mxu0 0.0
    %1289 = vmatprep.subr.mxu0 0.0
    %1290 = vmatpush1.msra.mxu0 0.0
    %1291 = vmatprep.subr.mxu0 0.0
    %1292 = vmatpush1.msra.mxu0 0.0
    %1293 = vmatprep.subr.mxu0 0.0
    %1294 = vmatpush1.msra.mxu0 0.0
    %1295 = vmatprep.subr.mxu0 0.0
    %1296 = vmatpush1.msra.mxu0 0.0
    %1297 = vmatprep.subr.mxu0 0.0
    %1298 = vmatpush1.msra.mxu0 0.0
    %1299 = vmatprep.subr.mxu0 0.0
    %1300 = vmatpush1.msra.mxu0 0.0
    %1301 = vmatprep.subr.mxu0 0.0
    %1302 = vmatpush1.msra.mxu0 0.0
    %1303 = vmatprep.mubr.f32.mxu0 0.0
    %1304 = vmatmul.mubr.f32.gmra.mrb[0].mxu0 %v1237
    %v1305 = vpop.f32.mrb[0].mxu0
    %v1306 = vadd.f32 %v1231, %v1305
    %v1307 = vpop.f32.mrb[0].mxu0
    %1308 = vdwg.mxu0
    %v1309 = vadd.f32 %v1306, %v493
    %v1310 = vxor.u32 %v1309, 2147483648
    %v1311 = vmul.f32 %v1310, 1.442695
    %v1312 = vpow.pop %v1311
    %v1313 = vadd.f32 %v1312, 1.0
    %v1314 = vrcp.pop %v1313
    %v1315 = vmul.f32 1.0, %v1314
    %v1316 = vtanh.pop %v1309
    %v1317 = vmul.f32 %v1315, %v1056
    %1319 = vrot.lane.b32.xlu0 %v1316, 64
    %v1320 = vpop.permute.xlu0 %1319
    %v1322 = vmul.f32 %v1315, %v1320
    %1324 = vrot.lane.b32.xlu0 %v1322, 32
    %v1325 = vpop.permute.xlu0 %1324
    %v1327 = vadd.f32 %v1317, %v1325
    %v1328 = vtanh.pop %v1327
    %1330 = vrot.lane.b32.xlu0 %v1328, 64
    %v1331 = vpop.permute.xlu0 %1330
    %v1333 = vmul.f32 %v1315, %v1331
    %1335 = vrot.lane.b32.xlu0 %v1333, 32
    %v1336 = vpop.permute.xlu0 %1335
    %1338 = vst.msk [vmem:[#allocation2 + $0x6] sm:$0x3] %vm524, %v1336
    %v1339 = vld [vmem:[#allocation2] sm:$0xff]
    %v1340 = vld [vmem:[#allocation12] sm:$0xff]
    %v1341 = vld [vmem:[#allocation12 + $0x8] sm:$0xff]
    %v1342 = vld [vmem:[#allocation12 + $0x10] sm:$0xff]
    %v1343 = vld [vmem:[#allocation12 + $0x18] sm:$0xff]
    %v1344 = vld [vmem:[%s9] sm:$0x1]
    %v1346 = vlaneseq
    %v1347 = vshrl.u32 %v1346, 7
    %v1348 = vsub.s32 0, %v1347
    %v1349 = vrot.slane %v1344, %v1348
    %v1352 = vsel %vm246, %v1339, 0
    %1354 = vmatprep.subr.mxu0 0.0
    %1355 = vmatpush1.msra.mxu0 %v1340
    %1356 = vmatprep.subr.mxu0 0.0
    %1357 = vmatpush1.msra.mxu0 %v1341
    %1358 = vmatprep.subr.mxu0 0.0
    %1359 = vmatpush1.msra.mxu0 %v1342
    %1360 = vmatprep.subr.mxu0 0.0
    %1361 = vmatpush1.msra.mxu0 %v1343
    %1362 = vmatprep.subr.mxu0 0.0
    %1363 = vmatpush1.msra.mxu0 0.0
    %1364 = vmatprep.subr.mxu0 0.0
    %1365 = vmatpush1.msra.mxu0 0.0
    %1366 = vmatprep.subr.mxu0 0.0
    %1367 = vmatpush1.msra.mxu0 0.0
    %1368 = vmatprep.subr.mxu0 0.0
    %1369 = vmatpush1.msra.mxu0 0.0
    %1370 = vmatprep.subr.mxu0 0.0
    %1371 = vmatpush1.msra.mxu0 0.0
    %1372 = vmatprep.subr.mxu0 0.0
    %1373 = vmatpush1.msra.mxu0 0.0
    %1374 = vmatprep.subr.mxu0 0.0
    %1375 = vmatpush1.msra.mxu0 0.0
    %1376 = vmatprep.subr.mxu0 0.0
    %1377 = vmatpush1.msra.mxu0 0.0
    %1378 = vmatprep.subr.mxu0 0.0
    %1379 = vmatpush1.msra.mxu0 0.0
    %1380 = vmatprep.subr.mxu0 0.0
    %1381 = vmatpush1.msra.mxu0 0.0
    %1382 = vmatprep.subr.mxu0 0.0
    %1383 = vmatpush1.msra.mxu0 0.0
    %1384 = vmatprep.subr.mxu0 0.0
    %1385 = vmatpush1.msra.mxu0 0.0
    %1386 = vmatprep.subr.mxu0 0.0
    %1387 = vmatpush1.msra.mxu0 0.0
    %1388 = vmatprep.subr.mxu0 0.0
    %1389 = vmatpush1.msra.mxu0 0.0
    %1390 = vmatprep.subr.mxu0 0.0
    %1391 = vmatpush1.msra.mxu0 0.0
    %1392 = vmatprep.subr.mxu0 0.0
    %1393 = vmatpush1.msra.mxu0 0.0
    %1394 = vmatprep.subr.mxu0 0.0
    %1395 = vmatpush1.msra.mxu0 0.0
    %1396 = vmatprep.subr.mxu0 0.0
    %1397 = vmatpush1.msra.mxu0 0.0
    %1398 = vmatprep.subr.mxu0 0.0
    %1399 = vmatpush1.msra.mxu0 0.0
    %1400 = vmatprep.subr.mxu0 0.0
    %1401 = vmatpush1.msra.mxu0 0.0
    %1402 = vmatprep.subr.mxu0 0.0
    %1403 = vmatpush1.msra.mxu0 0.0
    %1404 = vmatprep.subr.mxu0 0.0
    %1405 = vmatpush1.msra.mxu0 0.0
    %1406 = vmatprep.subr.mxu0 0.0
    %1407 = vmatpush1.msra.mxu0 0.0
    %1408 = vmatprep.subr.mxu0 0.0
    %1409 = vmatpush1.msra.mxu0 0.0
    %1410 = vmatprep.subr.mxu0 0.0
    %1411 = vmatpush1.msra.mxu0 0.0
    %1412 = vmatprep.subr.mxu0 0.0
    %1413 = vmatpush1.msra.mxu0 0.0
    %1414 = vmatprep.subr.mxu0 0.0
    %1415 = vmatpush1.msra.mxu0 0.0
    %1416 = vmatprep.subr.mxu0 0.0
    %1417 = vmatpush1.msra.mxu0 0.0
    %1418 = vmatprep.mubr.f32.mxu0 0.0
    %1419 = vmatmul.mubr.f32.gmra.mrb[0].mxu0 %v1352
    %v1420 = vpop.f32.mrb[0].mxu0
    %v1421 = vadd.f32 %v1349, %v1420
    %v1422 = vpop.f32.mrb[0].mxu0
    %1423 = vdwg.mxu0
    %v1424 = vld [vmem:[#allocation13] sm:$0xff]
    %v1425 = vld [vmem:[#allocation13 + $0x8] sm:$0xff]
    %v1426 = vld [vmem:[#allocation13 + $0x10] sm:$0xff]
    %v1427 = vld [vmem:[#allocation13 + $0x18] sm:$0xff]
    %v1428 = vld [vmem:[#allocation15] sm:$0xff]
    %v1429 = vld [vmem:[#allocation15 + $0x8] sm:$0xff]
    %v1430 = vld [vmem:[#allocation15 + $0x10] sm:$0xff]
    %v1431 = vld [vmem:[#allocation15 + $0x18] sm:$0xff]
    %v1432 = vld [vmem:[#allocation15 + $0x20] sm:$0xff]
    %v1433 = vld [vmem:[#allocation15 + $0x28] sm:$0xff]
    %v1434 = vld [vmem:[#allocation15 + $0x30] sm:$0xff]
    %v1435 = vld [vmem:[#allocation15 + $0x38] sm:$0xff]
    %v1436 = vld [vmem:[%s11] sm:$0x1]
    %v1438 = vsel %vm246, 0.0, 0
    %1440 = vmatprep.subr.mxu0 0.0
    %1441 = vmatpush1.msra.mxu0 %v1424
    %1442 = vmatprep.subr.mxu0 0.0
    %1443 = vmatpush1.msra.mxu0 %v1425
    %1444 = vmatprep.subr.mxu0 0.0
    %1445 = vmatpush1.msra.mxu0 %v1426
    %1446 = vmatprep.subr.mxu0 0.0
    %1447 = vmatpush1.msra.mxu0 %v1427
    %1448 = vmatprep.subr.mxu0 0.0
    %1449 = vmatpush1.msra.mxu0 0.0
    %1450 = vmatprep.subr.mxu0 0.0
    %1451 = vmatpush1.msra.mxu0 0.0
    %1452 = vmatprep.subr.mxu0 0.0
    %1453 = vmatpush1.msra.mxu0 0.0
    %1454 = vmatprep.subr.mxu0 0.0
    %1455 = vmatpush1.msra.mxu0 0.0
    %1456 = vmatprep.subr.mxu0 0.0
    %1457 = vmatpush1.msra.mxu0 0.0
    %1458 = vmatprep.subr.mxu0 0.0
    %1459 = vmatpush1.msra.mxu0 0.0
    %1460 = vmatprep.subr.mxu0 0.0
    %1461 = vmatpush1.msra.mxu0 0.0
    %1462 = vmatprep.subr.mxu0 0.0
    %1463 = vmatpush1.msra.mxu0 0.0
    %1464 = vmatprep.subr.mxu0 0.0
    %1465 = vmatpush1.msra.mxu0 0.0
    %1466 = vmatprep.subr.mxu0 0.0
    %1467 = vmatpush1.msra.mxu0 0.0
    %1468 = vmatprep.subr.mxu0 0.0
    %1469 = vmatpush1.msra.mxu0 0.0
    %1470 = vmatprep.subr.mxu0 0.0
    %1471 = vmatpush1.msra.mxu0 0.0
    %1472 = vmatprep.subr.mxu0 0.0
    %1473 = vmatpush1.msra.mxu0 0.0
    %1474 = vmatprep.subr.mxu0 0.0
    %1475 = vmatpush1.msra.mxu0 0.0
    %1476 = vmatprep.subr.mxu0 0.0
    %1477 = vmatpush1.msra.mxu0 0.0
    %1478 = vmatprep.subr.mxu0 0.0
    %1479 = vmatpush1.msra.mxu0 0.0
    %1480 = vmatprep.subr.mxu0 0.0
    %1481 = vmatpush1.msra.mxu0 0.0
    %1482 = vmatprep.subr.mxu0 0.0
    %1483 = vmatpush1.msra.mxu0 0.0
    %1484 = vmatprep.subr.mxu0 0.0
    %1485 = vmatpush1.msra.mxu0 0.0
    %1486 = vmatprep.subr.mxu0 0.0
    %1487 = vmatpush1.msra.mxu0 0.0
    %1488 = vmatprep.subr.mxu0 0.0
    %1489 = vmatpush1.msra.mxu0 0.0
    %1490 = vmatprep.subr.mxu0 0.0
    %1491 = vmatpush1.msra.mxu0 0.0
    %1492 = vmatprep.subr.mxu0 0.0
    %1493 = vmatpush1.msra.mxu0 0.0
    %1494 = vmatprep.subr.mxu0 0.0
    %1495 = vmatpush1.msra.mxu0 0.0
    %1496 = vmatprep.subr.mxu0 0.0
    %1497 = vmatpush1.msra.mxu0 0.0
    %1498 = vmatprep.subr.mxu0 0.0
    %1499 = vmatpush1.msra.mxu0 0.0
    %1500 = vmatprep.subr.mxu0 0.0
    %1501 = vmatpush1.msra.mxu0 0.0
    %1502 = vmatprep.subr.mxu0 0.0
    %1503 = vmatpush1.msra.mxu0 0.0
    %1504 = vmatprep.mubr.f32.mxu0 0.0
    %1505 = vmatmul.mubr.f32.gmra.mrb[0].mxu0 %v1438
    %v1506 = vpop.f32.mrb[0].mxu0
    %v1507 = vadd.f32 0.0, %v1506
    %v1508 = vpop.f32.mrb[0].mxu0
    %1509 = vdwg.mxu0
    %v1510 = vadd.f32 %v1421, %v1507
    %v1511 = vxor.u32 %v1510, 2147483648
    %v1512 = vmul.f32 %v1511, 1.442695
    %v1513 = vpow.pop %v1512
    %v1514 = vadd.f32 %v1513, 1.0
    %v1515 = vrcp.pop %v1514
    %v1516 = vmul.f32 1.0, %v1515
    %v1517 = vtanh.pop %v1510
    %v1518 = vmul.f32 %v1516, 0.0
    %1520 = vrot.lane.b32.xlu0 %v1517, 64
    %v1521 = vpop.permute.xlu0 %1520
    %v1523 = vmul.f32 %v1516, %v1521
    %1525 = vrot.lane.b32.xlu0 %v1523, 32
    %v1526 = vpop.permute.xlu0 %1525
    %v1528 = vadd.f32 %v1518, %v1526
    %v1529 = vtanh.pop %v1528
    %1531 = vrot.lane.b32.xlu0 %v1529, 64
    %v1532 = vpop.permute.xlu0 %1531
    %v1534 = vmul.f32 %v1516, %v1532
    %1535 = vmatprep.subr.mxu0 0.0
    %1536 = vmatpush1.msra.mxu0 %v1432
    %1537 = vmatprep.subr.mxu0 0.0
    %1538 = vmatpush1.msra.mxu0 %v1433
    %1539 = vmatprep.subr.mxu0 0.0
    %1540 = vmatpush1.msra.mxu0 %v1434
    %1541 = vmatprep.subr.mxu0 0.0
    %1542 = vmatpush1.msra.mxu0 %v1435
    %1543 = vmatprep.subr.mxu0 0.0
    %1544 = vmatpush1.msra.mxu0 0.0
    %1545 = vmatprep.subr.mxu0 0.0
    %1546 = vmatpush1.msra.mxu0 0.0
    %1547 = vmatprep.subr.mxu0 0.0
    %1548 = vmatpush1.msra.mxu0 0.0
    %1549 = vmatprep.subr.mxu0 0.0
    %1550 = vmatpush1.msra.mxu0 0.0
    %1551 = vmatprep.subr.mxu0 0.0
    %1552 = vmatpush1.msra.mxu0 0.0
    %1553 = vmatprep.subr.mxu0 0.0
    %1554 = vmatpush1.msra.mxu0 0.0
    %1555 = vmatprep.subr.mxu0 0.0
    %1556 = vmatpush1.msra.mxu0 0.0
    %1557 = vmatprep.subr.mxu0 0.0
    %1558 = vmatpush1.msra.mxu0 0.0
    %1559 = vmatprep.subr.mxu0 0.0
    %1560 = vmatpush1.msra.mxu0 0.0
    %1561 = vmatprep.subr.mxu0 0.0
    %1562 = vmatpush1.msra.mxu0 0.0
    %1563 = vmatprep.subr.mxu0 0.0
    %1564 = vmatpush1.msra.mxu0 0.0
    %1565 = vmatprep.subr.mxu0 0.0
    %1566 = vmatpush1.msra.mxu0 0.0
    %1567 = vmatprep.subr.mxu0 0.0
    %1568 = vmatpush1.msra.mxu0 0.0
    %1569 = vmatprep.subr.mxu0 0.0
    %1570 = vmatpush1.msra.mxu0 0.0
    %1571 = vmatprep.subr.mxu0 0.0
    %1572 = vmatpush1.msra.mxu0 0.0
    %1573 = vmatprep.subr.mxu0 0.0
    %1574 = vmatpush1.msra.mxu0 0.0
    %1575 = vmatprep.subr.mxu0 0.0
    %1576 = vmatpush1.msra.mxu0 0.0
    %1577 = vmatprep.subr.mxu0 0.0
    %1578 = vmatpush1.msra.mxu0 0.0
    %1579 = vmatprep.subr.mxu0 0.0
    %1580 = vmatpush1.msra.mxu0 0.0
    %1581 = vmatprep.subr.mxu0 0.0
    %1582 = vmatpush1.msra.mxu0 0.0
    %1583 = vmatprep.subr.mxu0 0.0
    %1584 = vmatpush1.msra.mxu0 0.0
    %1585 = vmatprep.subr.mxu0 0.0
    %1586 = vmatpush1.msra.mxu0 0.0
    %1587 = vmatprep.subr.mxu0 0.0
    %1588 = vmatpush1.msra.mxu0 0.0
    %1589 = vmatprep.subr.mxu0 0.0
    %1590 = vmatpush1.msra.mxu0 0.0
    %1591 = vmatprep.subr.mxu0 0.0
    %1592 = vmatpush1.msra.mxu0 0.0
    %1593 = vmatprep.subr.mxu0 0.0
    %1594 = vmatpush1.msra.mxu0 0.0
    %1595 = vmatprep.subr.mxu0 0.0
    %1596 = vmatpush1.msra.mxu0 0.0
    %1597 = vmatprep.subr.mxu0 0.0
    %1598 = vmatpush1.msra.mxu0 0.0
    %1599 = vmatprep.mubr.f32.mxu0 0.0
    %1600 = vmatmul.mubr.f32.gmra.mrb[0].mxu0 %v1438
    %v1601 = vpop.f32.mrb[0].mxu0
    %v1602 = vadd.f32 0.0, %v1601
    %v1603 = vpop.f32.mrb[0].mxu0
    %1604 = vdwg.mxu0
    %1606 = vrot.lane.b32.xlu0 %v1534, 32
    %v1607 = vpop.permute.xlu0 %1606
    %v1608 = vsel %vm246, %v1607, 0
    %1610 = vmatprep.subr.mxu0 0.0
    %1611 = vmatpush1.msra.mxu0 %v1428
    %1612 = vmatprep.subr.mxu0 0.0
    %1613 = vmatpush1.msra.mxu0 %v1429
    %1614 = vmatprep.subr.mxu0 0.0
    %1615 = vmatpush1.msra.mxu0 %v1430
    %1616 = vmatprep.subr.mxu0 0.0
    %1617 = vmatpush1.msra.mxu0 %v1431
    %1618 = vmatprep.subr.mxu0 0.0
    %1619 = vmatpush1.msra.mxu0 0.0
    %1620 = vmatprep.subr.mxu0 0.0
    %1621 = vmatpush1.msra.mxu0 0.0
    %1622 = vmatprep.subr.mxu0 0.0
    %1623 = vmatpush1.msra.mxu0 0.0
    %1624 = vmatprep.subr.mxu0 0.0
    %1625 = vmatpush1.msra.mxu0 0.0
    %1626 = vmatprep.subr.mxu0 0.0
    %1627 = vmatpush1.msra.mxu0 0.0
    %1628 = vmatprep.subr.mxu0 0.0
    %1629 = vmatpush1.msra.mxu0 0.0
    %1630 = vmatprep.subr.mxu0 0.0
    %1631 = vmatpush1.msra.mxu0 0.0
    %1632 = vmatprep.subr.mxu0 0.0
    %1633 = vmatpush1.msra.mxu0 0.0
    %1634 = vmatprep.subr.mxu0 0.0
    %1635 = vmatpush1.msra.mxu0 0.0
    %1636 = vmatprep.subr.mxu0 0.0
    %1637 = vmatpush1.msra.mxu0 0.0
    %1638 = vmatprep.subr.mxu0 0.0
    %1639 = vmatpush1.msra.mxu0 0.0
    %1640 = vmatprep.subr.mxu0 0.0
    %1641 = vmatpush1.msra.mxu0 0.0
    %1642 = vmatprep.subr.mxu0 0.0
    %1643 = vmatpush1.msra.mxu0 0.0
    %1644 = vmatprep.subr.mxu0 0.0
    %1645 = vmatpush1.msra.mxu0 0.0
    %1646 = vmatprep.subr.mxu0 0.0
    %1647 = vmatpush1.msra.mxu0 0.0
    %1648 = vmatprep.subr.mxu0 0.0
    %1649 = vmatpush1.msra.mxu0 0.0
    %1650 = vmatprep.subr.mxu0 0.0
    %1651 = vmatpush1.msra.mxu0 0.0
    %1652 = vmatprep.subr.mxu0 0.0
    %1653 = vmatpush1.msra.mxu0 0.0
    %1654 = vmatprep.subr.mxu0 0.0
    %1655 = vmatpush1.msra.mxu0 0.0
    %1656 = vmatprep.subr.mxu0 0.0
    %1657 = vmatpush1.msra.mxu0 0.0
    %1658 = vmatprep.subr.mxu0 0.0
    %1659 = vmatpush1.msra.mxu0 0.0
    %1660 = vmatprep.subr.mxu0 0.0
    %1661 = vmatpush1.msra.mxu0 0.0
    %1662 = vmatprep.subr.mxu0 0.0
    %1663 = vmatpush1.msra.mxu0 0.0
    %1664 = vmatprep.subr.mxu0 0.0
    %1665 = vmatpush1.msra.mxu0 0.0
    %1666 = vmatprep.subr.mxu0 0.0
    %1667 = vmatpush1.msra.mxu0 0.0
    %1668 = vmatprep.subr.mxu0 0.0
    %1669 = vmatpush1.msra.mxu0 0.0
    %1670 = vmatprep.subr.mxu0 0.0
    %1671 = vmatpush1.msra.mxu0 0.0
    %1672 = vmatprep.subr.mxu0 0.0
    %1673 = vmatpush1.msra.mxu0 0.0
    %1674 = vmatprep.mubr.f32.mxu0 0.0
    %1675 = vmatmul.mubr.f32.gmra.mrb[0].mxu0 %v1608
    %v1676 = vpop.f32.mrb[0].mxu0
    %v1677 = vadd.f32 %v1602, %v1676
    %v1678 = vpop.f32.mrb[0].mxu0
    %1679 = vdwg.mxu0
    %v1681 = vlaneseq
    %v1682 = vshrl.u32 %v1681, 7
    %v1683 = vsub.s32 0, %v1682
    %v1684 = vrot.slane %v1436, %v1683
    %v1686 = vadd.f32 %v1677, %v1684
    %v1687 = vxor.u32 %v1686, 2147483648
    %v1688 = vmul.f32 %v1687, 1.442695
    %v1689 = vpow.pop %v1688
    %v1690 = vadd.f32 %v1689, 1.0
    %v1691 = vrcp.pop %v1690
    %v1692 = vmul.f32 1.0, %v1691
    %v1693 = vtanh.pop %v1686
    %v1694 = vmul.f32 %v1692, 0.0
    %1696 = vrot.lane.b32.xlu0 %v1693, 64
    %v1697 = vpop.permute.xlu0 %1696
    %v1699 = vmul.f32 %v1692, %v1697
    %1701 = vrot.lane.b32.xlu0 %v1699, 32
    %v1702 = vpop.permute.xlu0 %1701
    %v1704 = vadd.f32 %v1694, %v1702
    %v1705 = vtanh.pop %v1704
    %1707 = vrot.lane.b32.xlu0 %v1705, 64
    %v1708 = vpop.permute.xlu0 %1707
    %v1710 = vmul.f32 %v1692, %v1708
    %1712 = vrot.lane.b32.xlu0 %v1710, 32
    %v1713 = vpop.permute.xlu0 %1712
    %1715 = vst.msk [vmem:[#allocation3] sm:$0xff] %vm246, %v1713
    %1716 = vmatprep.subr.mxu0 0.0
    %1717 = vmatpush1.msra.mxu0 %v1424
    %1718 = vmatprep.subr.mxu0 0.0
    %1719 = vmatpush1.msra.mxu0 %v1425
    %1720 = vmatprep.subr.mxu0 0.0
    %1721 = vmatpush1.msra.mxu0 %v1426
    %1722 = vmatprep.subr.mxu0 0.0
    %1723 = vmatpush1.msra.mxu0 %v1427
    %1724 = vmatprep.subr.mxu0 0.0
    %1725 = vmatpush1.msra.mxu0 0.0
    %1726 = vmatprep.subr.mxu0 0.0
    %1727 = vmatpush1.msra.mxu0 0.0
    %1728 = vmatprep.subr.mxu0 0.0
    %1729 = vmatpush1.msra.mxu0 0.0
    %1730 = vmatprep.subr.mxu0 0.0
    %1731 = vmatpush1.msra.mxu0 0.0
    %1732 = vmatprep.subr.mxu0 0.0
    %1733 = vmatpush1.msra.mxu0 0.0
    %1734 = vmatprep.subr.mxu0 0.0
    %1735 = vmatpush1.msra.mxu0 0.0
    %1736 = vmatprep.subr.mxu0 0.0
    %1737 = vmatpush1.msra.mxu0 0.0
    %1738 = vmatprep.subr.mxu0 0.0
    %1739 = vmatpush1.msra.mxu0 0.0
    %1740 = vmatprep.subr.mxu0 0.0
    %1741 = vmatpush1.msra.mxu0 0.0
    %1742 = vmatprep.subr.mxu0 0.0
    %1743 = vmatpush1.msra.mxu0 0.0
    %1744 = vmatprep.subr.mxu0 0.0
    %1745 = vmatpush1.msra.mxu0 0.0
    %1746 = vmatprep.subr.mxu0 0.0
    %1747 = vmatpush1.msra.mxu0 0.0
    %1748 = vmatprep.subr.mxu0 0.0
    %1749 = vmatpush1.msra.mxu0 0.0
    %1750 = vmatprep.subr.mxu0 0.0
    %1751 = vmatpush1.msra.mxu0 0.0
    %1752 = vmatprep.subr.mxu0 0.0
    %1753 = vmatpush1.msra.mxu0 0.0
    %1754 = vmatprep.subr.mxu0 0.0
    %1755 = vmatpush1.msra.mxu0 0.0
    %1756 = vmatprep.subr.mxu0 0.0
    %1757 = vmatpush1.msra.mxu0 0.0
    %1758 = vmatprep.subr.mxu0 0.0
    %1759 = vmatpush1.msra.mxu0 0.0
    %1760 = vmatprep.subr.mxu0 0.0
    %1761 = vmatpush1.msra.mxu0 0.0
    %1762 = vmatprep.subr.mxu0 0.0
    %1763 = vmatpush1.msra.mxu0 0.0
    %1764 = vmatprep.subr.mxu0 0.0
    %1765 = vmatpush1.msra.mxu0 0.0
    %1766 = vmatprep.subr.mxu0 0.0
    %1767 = vmatpush1.msra.mxu0 0.0
    %1768 = vmatprep.subr.mxu0 0.0
    %1769 = vmatpush1.msra.mxu0 0.0
    %1770 = vmatprep.subr.mxu0 0.0
    %1771 = vmatpush1.msra.mxu0 0.0
    %1772 = vmatprep.subr.mxu0 0.0
    %1773 = vmatpush1.msra.mxu0 0.0
    %1774 = vmatprep.subr.mxu0 0.0
    %1775 = vmatpush1.msra.mxu0 0.0
    %1776 = vmatprep.subr.mxu0 0.0
    %1777 = vmatpush1.msra.mxu0 0.0
    %1778 = vmatprep.subr.mxu0 0.0
    %1779 = vmatpush1.msra.mxu0 0.0
    %1780 = vmatprep.mubr.f32.mxu0 0.0
    %1781 = vmatmul.mubr.f32.gmra.mrb[0].mxu0 %v1608
    %v1782 = vpop.f32.mrb[0].mxu0
    %v1783 = vadd.f32 0.0, %v1782
    %v1784 = vpop.f32.mrb[0].mxu0
    %1785 = vdwg.mxu0
    %v1786 = vadd.f32 %v1421, %v1783
    %v1787 = vxor.u32 %v1786, 2147483648
    %v1788 = vmul.f32 %v1787, 1.442695
    %v1789 = vpow.pop %v1788
    %v1790 = vadd.f32 %v1789, 1.0
    %v1791 = vrcp.pop %v1790
    %v1792 = vmul.f32 1.0, %v1791
    %v1793 = vtanh.pop %v1786
    %v1794 = vmul.f32 %v1792, %v1528
    %1796 = vrot.lane.b32.xlu0 %v1793, 64
    %v1797 = vpop.permute.xlu0 %1796
    %v1799 = vmul.f32 %v1792, %v1797
    %1801 = vrot.lane.b32.xlu0 %v1799, 32
    %v1802 = vpop.permute.xlu0 %1801
    %v1804 = vadd.f32 %v1794, %v1802
    %v1805 = vtanh.pop %v1804
    %1807 = vrot.lane.b32.xlu0 %v1805, 64
    %v1808 = vpop.permute.xlu0 %1807
    %v1810 = vmul.f32 %v1792, %v1808
    %v1811 = vsel %vm246, %v1713, 0
    %1813 = vmatprep.subr.mxu0 0.0
    %1814 = vmatpush1.msra.mxu0 %v1432
    %1815 = vmatprep.subr.mxu0 0.0
    %1816 = vmatpush1.msra.mxu0 %v1433
    %1817 = vmatprep.subr.mxu0 0.0
    %1818 = vmatpush1.msra.mxu0 %v1434
    %1819 = vmatprep.subr.mxu0 0.0
    %1820 = vmatpush1.msra.mxu0 %v1435
    %1821 = vmatprep.subr.mxu0 0.0
    %1822 = vmatpush1.msra.mxu0 0.0
    %1823 = vmatprep.subr.mxu0 0.0
    %1824 = vmatpush1.msra.mxu0 0.0
    %1825 = vmatprep.subr.mxu0 0.0
    %1826 = vmatpush1.msra.mxu0 0.0
    %1827 = vmatprep.subr.mxu0 0.0
    %1828 = vmatpush1.msra.mxu0 0.0
    %1829 = vmatprep.subr.mxu0 0.0
    %1830 = vmatpush1.msra.mxu0 0.0
    %1831 = vmatprep.subr.mxu0 0.0
    %1832 = vmatpush1.msra.mxu0 0.0
    %1833 = vmatprep.subr.mxu0 0.0
    %1834 = vmatpush1.msra.mxu0 0.0
    %1835 = vmatprep.subr.mxu0 0.0
    %1836 = vmatpush1.msra.mxu0 0.0
    %1837 = vmatprep.subr.mxu0 0.0
    %1838 = vmatpush1.msra.mxu0 0.0
    %1839 = vmatprep.subr.mxu0 0.0
    %1840 = vmatpush1.msra.mxu0 0.0
    %1841 = vmatprep.subr.mxu0 0.0
    %1842 = vmatpush1.msra.mxu0 0.0
    %1843 = vmatprep.subr.mxu0 0.0
    %1844 = vmatpush1.msra.mxu0 0.0
    %1845 = vmatprep.subr.mxu0 0.0
    %1846 = vmatpush1.msra.mxu0 0.0
    %1847 = vmatprep.subr.mxu0 0.0
    %1848 = vmatpush1.msra.mxu0 0.0
    %1849 = vmatprep.subr.mxu0 0.0
    %1850 = vmatpush1.msra.mxu0 0.0
    %1851 = vmatprep.subr.mxu0 0.0
    %1852 = vmatpush1.msra.mxu0 0.0
    %1853 = vmatprep.subr.mxu0 0.0
    %1854 = vmatpush1.msra.mxu0 0.0
    %1855 = vmatprep.subr.mxu0 0.0
    %1856 = vmatpush1.msra.mxu0 0.0
    %1857 = vmatprep.subr.mxu0 0.0
    %1858 = vmatpush1.msra.mxu0 0.0
    %1859 = vmatprep.subr.mxu0 0.0
    %1860 = vmatpush1.msra.mxu0 0.0
    %1861 = vmatprep.subr.mxu0 0.0
    %1862 = vmatpush1.msra.mxu0 0.0
    %1863 = vmatprep.subr.mxu0 0.0
    %1864 = vmatpush1.msra.mxu0 0.0
    %1865 = vmatprep.subr.mxu0 0.0
    %1866 = vmatpush1.msra.mxu0 0.0
    %1867 = vmatprep.subr.mxu0 0.0
    %1868 = vmatpush1.msra.mxu0 0.0
    %1869 = vmatprep.subr.mxu0 0.0
    %1870 = vmatpush1.msra.mxu0 0.0
    %1871 = vmatprep.subr.mxu0 0.0
    %1872 = vmatpush1.msra.mxu0 0.0
    %1873 = vmatprep.subr.mxu0 0.0
    %1874 = vmatpush1.msra.mxu0 0.0
    %1875 = vmatprep.subr.mxu0 0.0
    %1876 = vmatpush1.msra.mxu0 0.0
    %1877 = vmatprep.mubr.f32.mxu0 0.0
    %1878 = vmatmul.mubr.f32.gmra.mrb[0].mxu0 %v1811
    %v1879 = vpop.f32.mrb[0].mxu0
    %v1880 = vadd.f32 0.0, %v1879
    %v1881 = vpop.f32.mrb[0].mxu0
    %1882 = vdwg.mxu0
    %1884 = vrot.lane.b32.xlu0 %v1810, 32
    %v1885 = vpop.permute.xlu0 %1884
    %v1886 = vsel %vm246, %v1885, 0
    %1888 = vmatprep.subr.mxu0 0.0
    %1889 = vmatpush1.msra.mxu0 %v1428
    %1890 = vmatprep.subr.mxu0 0.0
    %1891 = vmatpush1.msra.mxu0 %v1429
    %1892 = vmatprep.subr.mxu0 0.0
    %1893 = vmatpush1.msra.mxu0 %v1430
    %1894 = vmatprep.subr.mxu0 0.0
    %1895 = vmatpush1.msra.mxu0 %v1431
    %1896 = vmatprep.subr.mxu0 0.0
    %1897 = vmatpush1.msra.mxu0 0.0
    %1898 = vmatprep.subr.mxu0 0.0
    %1899 = vmatpush1.msra.mxu0 0.0
    %1900 = vmatprep.subr.mxu0 0.0
    %1901 = vmatpush1.msra.mxu0 0.0
    %1902 = vmatprep.subr.mxu0 0.0
    %1903 = vmatpush1.msra.mxu0 0.0
    %1904 = vmatprep.subr.mxu0 0.0
    %1905 = vmatpush1.msra.mxu0 0.0
    %1906 = vmatprep.subr.mxu0 0.0
    %1907 = vmatpush1.msra.mxu0 0.0
    %1908 = vmatprep.subr.mxu0 0.0
    %1909 = vmatpush1.msra.mxu0 0.0
    %1910 = vmatprep.subr.mxu0 0.0
    %1911 = vmatpush1.msra.mxu0 0.0
    %1912 = vmatprep.subr.mxu0 0.0
    %1913 = vmatpush1.msra.mxu0 0.0
    %1914 = vmatprep.subr.mxu0 0.0
    %1915 = vmatpush1.msra.mxu0 0.0
    %1916 = vmatprep.subr.mxu0 0.0
    %1917 = vmatpush1.msra.mxu0 0.0
    %1918 = vmatprep.subr.mxu0 0.0
    %1919 = vmatpush1.msra.mxu0 0.0
    %1920 = vmatprep.subr.mxu0 0.0
    %1921 = vmatpush1.msra.mxu0 0.0
    %1922 = vmatprep.subr.mxu0 0.0
    %1923 = vmatpush1.msra.mxu0 0.0
    %1924 = vmatprep.subr.mxu0 0.0
    %1925 = vmatpush1.msra.mxu0 0.0
    %1926 = vmatprep.subr.mxu0 0.0
    %1927 = vmatpush1.msra.mxu0 0.0
    %1928 = vmatprep.subr.mxu0 0.0
    %1929 = vmatpush1.msra.mxu0 0.0
    %1930 = vmatprep.subr.mxu0 0.0
    %1931 = vmatpush1.msra.mxu0 0.0
    %1932 = vmatprep.subr.mxu0 0.0
    %1933 = vmatpush1.msra.mxu0 0.0
    %1934 = vmatprep.subr.mxu0 0.0
    %1935 = vmatpush1.msra.mxu0 0.0
    %1936 = vmatprep.subr.mxu0 0.0
    %1937 = vmatpush1.msra.mxu0 0.0
    %1938 = vmatprep.subr.mxu0 0.0
    %1939 = vmatpush1.msra.mxu0 0.0
    %1940 = vmatprep.subr.mxu0 0.0
    %1941 = vmatpush1.msra.mxu0 0.0
    %1942 = vmatprep.subr.mxu0 0.0
    %1943 = vmatpush1.msra.mxu0 0.0
    %1944 = vmatprep.subr.mxu0 0.0
    %1945 = vmatpush1.msra.mxu0 0.0
    %1946 = vmatprep.subr.mxu0 0.0
    %1947 = vmatpush1.msra.mxu0 0.0
    %1948 = vmatprep.subr.mxu0 0.0
    %1949 = vmatpush1.msra.mxu0 0.0
    %1950 = vmatprep.subr.mxu0 0.0
    %1951 = vmatpush1.msra.mxu0 0.0
    %1952 = vmatprep.mubr.f32.mxu0 0.0
    %1953 = vmatmul.mubr.f32.gmra.mrb[0].mxu0 %v1886
    %v1954 = vpop.f32.mrb[0].mxu0
    %v1955 = vadd.f32 %v1880, %v1954
    %v1956 = vpop.f32.mrb[0].mxu0
    %1957 = vdwg.mxu0
    %v1958 = vadd.f32 %v1955, %v1684
    %v1959 = vxor.u32 %v1958, 2147483648
    %v1960 = vmul.f32 %v1959, 1.442695
    %v1961 = vpow.pop %v1960
    %v1962 = vadd.f32 %v1961, 1.0
    %v1963 = vrcp.pop %v1962
    %v1964 = vmul.f32 1.0, %v1963
    %v1965 = vtanh.pop %v1958
    %v1966 = vmul.f32 %v1964, %v1704
    %1968 = vrot.lane.b32.xlu0 %v1965, 64
    %v1969 = vpop.permute.xlu0 %1968
    %v1971 = vmul.f32 %v1964, %v1969
    %1973 = vrot.lane.b32.xlu0 %v1971, 32
    %v1974 = vpop.permute.xlu0 %1973
    %v1976 = vadd.f32 %v1966, %v1974
    %v1977 = vtanh.pop %v1976
    %1979 = vrot.lane.b32.xlu0 %v1977, 64
    %v1980 = vpop.permute.xlu0 %1979
    %v1982 = vmul.f32 %v1964, %v1980
    %1984 = vrot.lane.b32.xlu0 %v1982, 32
    %v1985 = vpop.permute.xlu0 %1984
    %1987 = vst.msk [vmem:[#allocation3 + $0x8] sm:$0xff] %vm246, %v1985
    %1988 = vmatprep.subr.mxu0 0.0
    %1989 = vmatpush1.msra.mxu0 %v1424
    %1990 = vmatprep.subr.mxu0 0.0
    %1991 = vmatpush1.msra.mxu0 %v1425
    %1992 = vmatprep.subr.mxu0 0.0
    %1993 = vmatpush1.msra.mxu0 %v1426
    %1994 = vmatprep.subr.mxu0 0.0
    %1995 = vmatpush1.msra.mxu0 %v1427
    %1996 = vmatprep.subr.mxu0 0.0
    %1997 = vmatpush1.msra.mxu0 0.0
    %1998 = vmatprep.subr.mxu0 0.0
    %1999 = vmatpush1.msra.mxu0 0.0
    %2000 = vmatprep.subr.mxu0 0.0
    %2001 = vmatpush1.msra.mxu0 0.0
    %2002 = vmatprep.subr.mxu0 0.0
    %2003 = vmatpush1.msra.mxu0 0.0
    %2004 = vmatprep.subr.mxu0 0.0
    %2005 = vmatpush1.msra.mxu0 0.0
    %2006 = vmatprep.subr.mxu0 0.0
    %2007 = vmatpush1.msra.mxu0 0.0
    %2008 = vmatprep.subr.mxu0 0.0
    %2009 = vmatpush1.msra.mxu0 0.0
    %2010 = vmatprep.subr.mxu0 0.0
    %2011 = vmatpush1.msra.mxu0 0.0
    %2012 = vmatprep.subr.mxu0 0.0
    %2013 = vmatpush1.msra.mxu0 0.0
    %2014 = vmatprep.subr.mxu0 0.0
    %2015 = vmatpush1.msra.mxu0 0.0
    %2016 = vmatprep.subr.mxu0 0.0
    %2017 = vmatpush1.msra.mxu0 0.0
    %2018 = vmatprep.subr.mxu0 0.0
    %2019 = vmatpush1.msra.mxu0 0.0
    %2020 = vmatprep.subr.mxu0 0.0
    %2021 = vmatpush1.msra.mxu0 0.0
    %2022 = vmatprep.subr.mxu0 0.0
    %2023 = vmatpush1.msra.mxu0 0.0
    %2024 = vmatprep.subr.mxu0 0.0
    %2025 = vmatpush1.msra.mxu0 0.0
    %2026 = vmatprep.subr.mxu0 0.0
    %2027 = vmatpush1.msra.mxu0 0.0
    %2028 = vmatprep.subr.mxu0 0.0
    %2029 = vmatpush1.msra.mxu0 0.0
    %2030 = vmatprep.subr.mxu0 0.0
    %2031 = vmatpush1.msra.mxu0 0.0
    %2032 = vmatprep.subr.mxu0 0.0
    %2033 = vmatpush1.msra.mxu0 0.0
    %2034 = vmatprep.subr.mxu0 0.0
    %2035 = vmatpush1.msra.mxu0 0.0
    %2036 = vmatprep.subr.mxu0 0.0
    %2037 = vmatpush1.msra.mxu0 0.0
    %2038 = vmatprep.subr.mxu0 0.0
    %2039 = vmatpush1.msra.mxu0 0.0
    %2040 = vmatprep.subr.mxu0 0.0
    %2041 = vmatpush1.msra.mxu0 0.0
    %2042 = vmatprep.subr.mxu0 0.0
    %2043 = vmatpush1.msra.mxu0 0.0
    %2044 = vmatprep.subr.mxu0 0.0
    %2045 = vmatpush1.msra.mxu0 0.0
    %2046 = vmatprep.subr.mxu0 0.0
    %2047 = vmatpush1.msra.mxu0 0.0
    %2048 = vmatprep.subr.mxu0 0.0
    %2049 = vmatpush1.msra.mxu0 0.0
    %2050 = vmatprep.subr.mxu0 0.0
    %2051 = vmatpush1.msra.mxu0 0.0
    %2052 = vmatprep.mubr.f32.mxu0 0.0
    %2053 = vmatmul.mubr.f32.gmra.mrb[0].mxu0 %v1886
    %v2054 = vpop.f32.mrb[0].mxu0
    %v2055 = vadd.f32 0.0, %v2054
    %v2056 = vpop.f32.mrb[0].mxu0
    %2057 = vdwg.mxu0
    %v2058 = vadd.f32 %v1421, %v2055
    %v2059 = vxor.u32 %v2058, 2147483648
    %v2060 = vmul.f32 %v2059, 1.442695
    %v2061 = vpow.pop %v2060
    %v2062 = vadd.f32 %v2061, 1.0
    %v2063 = vrcp.pop %v2062
    %v2064 = vmul.f32 1.0, %v2063
    %v2065 = vtanh.pop %v2058
    %v2066 = vmul.f32 %v2064, %v1804
    %2068 = vrot.lane.b32.xlu0 %v2065, 64
    %v2069 = vpop.permute.xlu0 %2068
    %v2071 = vmul.f32 %v2064, %v2069
    %2073 = vrot.lane.b32.xlu0 %v2071, 32
    %v2074 = vpop.permute.xlu0 %2073
    %v2076 = vadd.f32 %v2066, %v2074
    %v2077 = vtanh.pop %v2076
    %2079 = vrot.lane.b32.xlu0 %v2077, 64
    %v2080 = vpop.permute.xlu0 %2079
    %v2082 = vmul.f32 %v2064, %v2080
    %v2083 = vsel %vm246, %v1985, 0
    %2085 = vmatprep.subr.mxu0 0.0
    %2086 = vmatpush1.msra.mxu0 %v1432
    %2087 = vmatprep.subr.mxu0 0.0
    %2088 = vmatpush1.msra.mxu0 %v1433
    %2089 = vmatprep.subr.mxu0 0.0
    %2090 = vmatpush1.msra.mxu0 %v1434
    %2091 = vmatprep.subr.mxu0 0.0
    %2092 = vmatpush1.msra.mxu0 %v1435
    %2093 = vmatprep.subr.mxu0 0.0
    %2094 = vmatpush1.msra.mxu0 0.0
    %2095 = vmatprep.subr.mxu0 0.0
    %2096 = vmatpush1.msra.mxu0 0.0
    %2097 = vmatprep.subr.mxu0 0.0
    %2098 = vmatpush1.msra.mxu0 0.0
    %2099 = vmatprep.subr.mxu0 0.0
    %2100 = vmatpush1.msra.mxu0 0.0
    %2101 = vmatprep.subr.mxu0 0.0
    %2102 = vmatpush1.msra.mxu0 0.0
    %2103 = vmatprep.subr.mxu0 0.0
    %2104 = vmatpush1.msra.mxu0 0.0
    %2105 = vmatprep.subr.mxu0 0.0
    %2106 = vmatpush1.msra.mxu0 0.0
    %2107 = vmatprep.subr.mxu0 0.0
    %2108 = vmatpush1.msra.mxu0 0.0
    %2109 = vmatprep.subr.mxu0 0.0
    %2110 = vmatpush1.msra.mxu0 0.0
    %2111 = vmatprep.subr.mxu0 0.0
    %2112 = vmatpush1.msra.mxu0 0.0
    %2113 = vmatprep.subr.mxu0 0.0
    %2114 = vmatpush1.msra.mxu0 0.0
    %2115 = vmatprep.subr.mxu0 0.0
    %2116 = vmatpush1.msra.mxu0 0.0
    %2117 = vmatprep.subr.mxu0 0.0
    %2118 = vmatpush1.msra.mxu0 0.0
    %2119 = vmatprep.subr.mxu0 0.0
    %2120 = vmatpush1.msra.mxu0 0.0
    %2121 = vmatprep.subr.mxu0 0.0
    %2122 = vmatpush1.msra.mxu0 0.0
    %2123 = vmatprep.subr.mxu0 0.0
    %2124 = vmatpush1.msra.mxu0 0.0
    %2125 = vmatprep.subr.mxu0 0.0
    %2126 = vmatpush1.msra.mxu0 0.0
    %2127 = vmatprep.subr.mxu0 0.0
    %2128 = vmatpush1.msra.mxu0 0.0
    %2129 = vmatprep.subr.mxu0 0.0
    %2130 = vmatpush1.msra.mxu0 0.0
    %2131 = vmatprep.subr.mxu0 0.0
    %2132 = vmatpush1.msra.mxu0 0.0
    %2133 = vmatprep.subr.mxu0 0.0
    %2134 = vmatpush1.msra.mxu0 0.0
    %2135 = vmatprep.subr.mxu0 0.0
    %2136 = vmatpush1.msra.mxu0 0.0
    %2137 = vmatprep.subr.mxu0 0.0
    %2138 = vmatpush1.msra.mxu0 0.0
    %2139 = vmatprep.subr.mxu0 0.0
    %2140 = vmatpush1.msra.mxu0 0.0
    %2141 = vmatprep.subr.mxu0 0.0
    %2142 = vmatpush1.msra.mxu0 0.0
    %2143 = vmatprep.subr.mxu0 0.0
    %2144 = vmatpush1.msra.mxu0 0.0
    %2145 = vmatprep.subr.mxu0 0.0
    %2146 = vmatpush1.msra.mxu0 0.0
    %2147 = vmatprep.subr.mxu0 0.0
    %2148 = vmatpush1.msra.mxu0 0.0
    %2149 = vmatprep.mubr.f32.mxu0 0.0
    %2150 = vmatmul.mubr.f32.gmra.mrb[0].mxu0 %v2083
    %v2151 = vpop.f32.mrb[0].mxu0
    %v2152 = vadd.f32 0.0, %v2151
    %v2153 = vpop.f32.mrb[0].mxu0
    %2154 = vdwg.mxu0
    %2156 = vrot.lane.b32.xlu0 %v2082, 32
    %v2157 = vpop.permute.xlu0 %2156
    %v2158 = vsel %vm246, %v2157, 0
    %2160 = vmatprep.subr.mxu0 0.0
    %2161 = vmatpush1.msra.mxu0 %v1428
    %2162 = vmatprep.subr.mxu0 0.0
    %2163 = vmatpush1.msra.mxu0 %v1429
    %2164 = vmatprep.subr.mxu0 0.0
    %2165 = vmatpush1.msra.mxu0 %v1430
    %2166 = vmatprep.subr.mxu0 0.0
    %2167 = vmatpush1.msra.mxu0 %v1431
    %2168 = vmatprep.subr.mxu0 0.0
    %2169 = vmatpush1.msra.mxu0 0.0
    %2170 = vmatprep.subr.mxu0 0.0
    %2171 = vmatpush1.msra.mxu0 0.0
    %2172 = vmatprep.subr.mxu0 0.0
    %2173 = vmatpush1.msra.mxu0 0.0
    %2174 = vmatprep.subr.mxu0 0.0
    %2175 = vmatpush1.msra.mxu0 0.0
    %2176 = vmatprep.subr.mxu0 0.0
    %2177 = vmatpush1.msra.mxu0 0.0
    %2178 = vmatprep.subr.mxu0 0.0
    %2179 = vmatpush1.msra.mxu0 0.0
    %2180 = vmatprep.subr.mxu0 0.0
    %2181 = vmatpush1.msra.mxu0 0.0
    %2182 = vmatprep.subr.mxu0 0.0
    %2183 = vmatpush1.msra.mxu0 0.0
    %2184 = vmatprep.subr.mxu0 0.0
    %2185 = vmatpush1.msra.mxu0 0.0
    %2186 = vmatprep.subr.mxu0 0.0
    %2187 = vmatpush1.msra.mxu0 0.0
    %2188 = vmatprep.subr.mxu0 0.0
    %2189 = vmatpush1.msra.mxu0 0.0
    %2190 = vmatprep.subr.mxu0 0.0
    %2191 = vmatpush1.msra.mxu0 0.0
    %2192 = vmatprep.subr.mxu0 0.0
    %2193 = vmatpush1.msra.mxu0 0.0
    %2194 = vmatprep.subr.mxu0 0.0
    %2195 = vmatpush1.msra.mxu0 0.0
    %2196 = vmatprep.subr.mxu0 0.0
    %2197 = vmatpush1.msra.mxu0 0.0
    %2198 = vmatprep.subr.mxu0 0.0
    %2199 = vmatpush1.msra.mxu0 0.0
    %2200 = vmatprep.subr.mxu0 0.0
    %2201 = vmatpush1.msra.mxu0 0.0
    %2202 = vmatprep.subr.mxu0 0.0
    %2203 = vmatpush1.msra.mxu0 0.0
    %2204 = vmatprep.subr.mxu0 0.0
    %2205 = vmatpush1.msra.mxu0 0.0
    %2206 = vmatprep.subr.mxu0 0.0
    %2207 = vmatpush1.msra.mxu0 0.0
    %2208 = vmatprep.subr.mxu0 0.0
    %2209 = vmatpush1.msra.mxu0 0.0
    %2210 = vmatprep.subr.mxu0 0.0
    %2211 = vmatpush1.msra.mxu0 0.0
    %2212 = vmatprep.subr.mxu0 0.0
    %2213 = vmatpush1.msra.mxu0 0.0
    %2214 = vmatprep.subr.mxu0 0.0
    %2215 = vmatpush1.msra.mxu0 0.0
    %2216 = vmatprep.subr.mxu0 0.0
    %2217 = vmatpush1.msra.mxu0 0.0
    %2218 = vmatprep.subr.mxu0 0.0
    %2219 = vmatpush1.msra.mxu0 0.0
    %2220 = vmatprep.subr.mxu0 0.0
    %2221 = vmatpush1.msra.mxu0 0.0
    %2222 = vmatprep.subr.mxu0 0.0
    %2223 = vmatpush1.msra.mxu0 0.0
    %2224 = vmatprep.mubr.f32.mxu0 0.0
    %2225 = vmatmul.mubr.f32.gmra.mrb[0].mxu0 %v2158
    %v2226 = vpop.f32.mrb[0].mxu0
    %v2227 = vadd.f32 %v2152, %v2226
    %v2228 = vpop.f32.mrb[0].mxu0
    %2229 = vdwg.mxu0
    %v2230 = vadd.f32 %v2227, %v1684
    %v2231 = vxor.u32 %v2230, 2147483648
    %v2232 = vmul.f32 %v2231, 1.442695
    %v2233 = vpow.pop %v2232
    %v2234 = vadd.f32 %v2233, 1.0
    %v2235 = vrcp.pop %v2234
    %v2236 = vmul.f32 1.0, %v2235
    %v2237 = vtanh.pop %v2230
    %v2238 = vmul.f32 %v2236, %v1976
    %2240 = vrot.lane.b32.xlu0 %v2237, 64
    %v2241 = vpop.permute.xlu0 %2240
    %v2243 = vmul.f32 %v2236, %v2241
    %2245 = vrot.lane.b32.xlu0 %v2243, 32
    %v2246 = vpop.permute.xlu0 %2245
    %v2248 = vadd.f32 %v2238, %v2246
    %v2249 = vtanh.pop %v2248
    %2251 = vrot.lane.b32.xlu0 %v2249, 64
    %v2252 = vpop.permute.xlu0 %2251
    %v2254 = vmul.f32 %v2236, %v2252
    %2256 = vrot.lane.b32.xlu0 %v2254, 32
    %v2257 = vpop.permute.xlu0 %2256
    %2259 = vst.msk [vmem:[#allocation3 + $0x10] sm:$0xff] %vm246, %v2257
    %2260 = vmatprep.subr.mxu0 0.0
    %2261 = vmatpush1.msra.mxu0 %v1424
    %2262 = vmatprep.subr.mxu0 0.0
    %2263 = vmatpush1.msra.mxu0 %v1425
    %2264 = vmatprep.subr.mxu0 0.0
    %2265 = vmatpush1.msra.mxu0 %v1426
    %2266 = vmatprep.subr.mxu0 0.0
    %2267 = vmatpush1.msra.mxu0 %v1427
    %2268 = vmatprep.subr.mxu0 0.0
    %2269 = vmatpush1.msra.mxu0 0.0
    %2270 = vmatprep.subr.mxu0 0.0
    %2271 = vmatpush1.msra.mxu0 0.0
    %2272 = vmatprep.subr.mxu0 0.0
    %2273 = vmatpush1.msra.mxu0 0.0
    %2274 = vmatprep.subr.mxu0 0.0
    %2275 = vmatpush1.msra.mxu0 0.0
    %2276 = vmatprep.subr.mxu0 0.0
    %2277 = vmatpush1.msra.mxu0 0.0
    %2278 = vmatprep.subr.mxu0 0.0
    %2279 = vmatpush1.msra.mxu0 0.0
    %2280 = vmatprep.subr.mxu0 0.0
    %2281 = vmatpush1.msra.mxu0 0.0
    %2282 = vmatprep.subr.mxu0 0.0
    %2283 = vmatpush1.msra.mxu0 0.0
    %2284 = vmatprep.subr.mxu0 0.0
    %2285 = vmatpush1.msra.mxu0 0.0
    %2286 = vmatprep.subr.mxu0 0.0
    %2287 = vmatpush1.msra.mxu0 0.0
    %2288 = vmatprep.subr.mxu0 0.0
    %2289 = vmatpush1.msra.mxu0 0.0
    %2290 = vmatprep.subr.mxu0 0.0
    %2291 = vmatpush1.msra.mxu0 0.0
    %2292 = vmatprep.subr.mxu0 0.0
    %2293 = vmatpush1.msra.mxu0 0.0
    %2294 = vmatprep.subr.mxu0 0.0
    %2295 = vmatpush1.msra.mxu0 0.0
    %2296 = vmatprep.subr.mxu0 0.0
    %2297 = vmatpush1.msra.mxu0 0.0
    %2298 = vmatprep.subr.mxu0 0.0
    %2299 = vmatpush1.msra.mxu0 0.0
    %2300 = vmatprep.subr.mxu0 0.0
    %2301 = vmatpush1.msra.mxu0 0.0
    %2302 = vmatprep.subr.mxu0 0.0
    %2303 = vmatpush1.msra.mxu0 0.0
    %2304 = vmatprep.subr.mxu0 0.0
    %2305 = vmatpush1.msra.mxu0 0.0
    %2306 = vmatprep.subr.mxu0 0.0
    %2307 = vmatpush1.msra.mxu0 0.0
    %2308 = vmatprep.subr.mxu0 0.0
    %2309 = vmatpush1.msra.mxu0 0.0
    %2310 = vmatprep.subr.mxu0 0.0
    %2311 = vmatpush1.msra.mxu0 0.0
    %2312 = vmatprep.subr.mxu0 0.0
    %2313 = vmatpush1.msra.mxu0 0.0
    %2314 = vmatprep.subr.mxu0 0.0
    %2315 = vmatpush1.msra.mxu0 0.0
    %2316 = vmatprep.subr.mxu0 0.0
    %2317 = vmatpush1.msra.mxu0 0.0
    %2318 = vmatprep.subr.mxu0 0.0
    %2319 = vmatpush1.msra.mxu0 0.0
    %2320 = vmatprep.subr.mxu0 0.0
    %2321 = vmatpush1.msra.mxu0 0.0
    %2322 = vmatprep.subr.mxu0 0.0
    %2323 = vmatpush1.msra.mxu0 0.0
    %2324 = vmatprep.mubr.f32.mxu0 0.0
    %2325 = vmatmul.mubr.f32.gmra.mrb[0].mxu0 %v2158
    %v2326 = vpop.f32.mrb[0].mxu0
    %v2327 = vadd.f32 0.0, %v2326
    %v2328 = vpop.f32.mrb[0].mxu0
    %2329 = vdwg.mxu0
    %v2330 = vadd.f32 %v1421, %v2327
    %v2331 = vxor.u32 %v2330, 2147483648
    %v2332 = vmul.f32 %v2331, 1.442695
    %v2333 = vpow.pop %v2332
    %v2334 = vadd.f32 %v2333, 1.0
    %v2335 = vrcp.pop %v2334
    %v2336 = vmul.f32 1.0, %v2335
    %v2337 = vtanh.pop %v2330
    %v2338 = vmul.f32 %v2336, %v2076
    %2340 = vrot.lane.b32.xlu0 %v2337, 64
    %v2341 = vpop.permute.xlu0 %2340
    %v2343 = vmul.f32 %v2336, %v2341
    %2345 = vrot.lane.b32.xlu0 %v2343, 32
    %v2346 = vpop.permute.xlu0 %2345
    %v2348 = vadd.f32 %v2338, %v2346
    %v2349 = vtanh.pop %v2348
    %2351 = vrot.lane.b32.xlu0 %v2349, 64
    %v2352 = vpop.permute.xlu0 %2351
    %v2354 = vmul.f32 %v2336, %v2352
    %v2355 = vsel %vm246, %v2257, 0
    %2357 = vmatprep.subr.mxu0 0.0
    %2358 = vmatpush1.msra.mxu0 %v1432
    %2359 = vmatprep.subr.mxu0 0.0
    %2360 = vmatpush1.msra.mxu0 %v1433
    %2361 = vmatprep.subr.mxu0 0.0
    %2362 = vmatpush1.msra.mxu0 %v1434
    %2363 = vmatprep.subr.mxu0 0.0
    %2364 = vmatpush1.msra.mxu0 %v1435
    %2365 = vmatprep.subr.mxu0 0.0
    %2366 = vmatpush1.msra.mxu0 0.0
    %2367 = vmatprep.subr.mxu0 0.0
    %2368 = vmatpush1.msra.mxu0 0.0
    %2369 = vmatprep.subr.mxu0 0.0
    %2370 = vmatpush1.msra.mxu0 0.0
    %2371 = vmatprep.subr.mxu0 0.0
    %2372 = vmatpush1.msra.mxu0 0.0
    %2373 = vmatprep.subr.mxu0 0.0
    %2374 = vmatpush1.msra.mxu0 0.0
    %2375 = vmatprep.subr.mxu0 0.0
    %2376 = vmatpush1.msra.mxu0 0.0
    %2377 = vmatprep.subr.mxu0 0.0
    %2378 = vmatpush1.msra.mxu0 0.0
    %2379 = vmatprep.subr.mxu0 0.0
    %2380 = vmatpush1.msra.mxu0 0.0
    %2381 = vmatprep.subr.mxu0 0.0
    %2382 = vmatpush1.msra.mxu0 0.0
    %2383 = vmatprep.subr.mxu0 0.0
    %2384 = vmatpush1.msra.mxu0 0.0
    %2385 = vmatprep.subr.mxu0 0.0
    %2386 = vmatpush1.msra.mxu0 0.0
    %2387 = vmatprep.subr.mxu0 0.0
    %2388 = vmatpush1.msra.mxu0 0.0
    %2389 = vmatprep.subr.mxu0 0.0
    %2390 = vmatpush1.msra.mxu0 0.0
    %2391 = vmatprep.subr.mxu0 0.0
    %2392 = vmatpush1.msra.mxu0 0.0
    %2393 = vmatprep.subr.mxu0 0.0
    %2394 = vmatpush1.msra.mxu0 0.0
    %2395 = vmatprep.subr.mxu0 0.0
    %2396 = vmatpush1.msra.mxu0 0.0
    %2397 = vmatprep.subr.mxu0 0.0
    %2398 = vmatpush1.msra.mxu0 0.0
    %2399 = vmatprep.subr.mxu0 0.0
    %2400 = vmatpush1.msra.mxu0 0.0
    %2401 = vmatprep.subr.mxu0 0.0
    %2402 = vmatpush1.msra.mxu0 0.0
    %2403 = vmatprep.subr.mxu0 0.0
    %2404 = vmatpush1.msra.mxu0 0.0
    %2405 = vmatprep.subr.mxu0 0.0
    %2406 = vmatpush1.msra.mxu0 0.0
    %2407 = vmatprep.subr.mxu0 0.0
    %2408 = vmatpush1.msra.mxu0 0.0
    %2409 = vmatprep.subr.mxu0 0.0
    %2410 = vmatpush1.msra.mxu0 0.0
    %2411 = vmatprep.subr.mxu0 0.0
    %2412 = vmatpush1.msra.mxu0 0.0
    %2413 = vmatprep.subr.mxu0 0.0
    %2414 = vmatpush1.msra.mxu0 0.0
    %2415 = vmatprep.subr.mxu0 0.0
    %2416 = vmatpush1.msra.mxu0 0.0
    %2417 = vmatprep.subr.mxu0 0.0
    %2418 = vmatpush1.msra.mxu0 0.0
    %2419 = vmatprep.subr.mxu0 0.0
    %2420 = vmatpush1.msra.mxu0 0.0
    %2421 = vmatprep.mubr.f32.mxu0 0.0
    %2422 = vmatmul.mubr.f32.gmra.mrb[0].mxu0 %v2355
    %v2423 = vpop.f32.mrb[0].mxu0
    %v2424 = vadd.f32 0.0, %v2423
    %v2425 = vpop.f32.mrb[0].mxu0
    %2426 = vdwg.mxu0
    %2428 = vrot.lane.b32.xlu0 %v2354, 32
    %v2429 = vpop.permute.xlu0 %2428
    %v2430 = vsel %vm246, %v2429, 0
    %2432 = vmatprep.subr.mxu0 0.0
    %2433 = vmatpush1.msra.mxu0 %v1428
    %2434 = vmatprep.subr.mxu0 0.0
    %2435 = vmatpush1.msra.mxu0 %v1429
    %2436 = vmatprep.subr.mxu0 0.0
    %2437 = vmatpush1.msra.mxu0 %v1430
    %2438 = vmatprep.subr.mxu0 0.0
    %2439 = vmatpush1.msra.mxu0 %v1431
    %2440 = vmatprep.subr.mxu0 0.0
    %2441 = vmatpush1.msra.mxu0 0.0
    %2442 = vmatprep.subr.mxu0 0.0
    %2443 = vmatpush1.msra.mxu0 0.0
    %2444 = vmatprep.subr.mxu0 0.0
    %2445 = vmatpush1.msra.mxu0 0.0
    %2446 = vmatprep.subr.mxu0 0.0
    %2447 = vmatpush1.msra.mxu0 0.0
    %2448 = vmatprep.subr.mxu0 0.0
    %2449 = vmatpush1.msra.mxu0 0.0
    %2450 = vmatprep.subr.mxu0 0.0
    %2451 = vmatpush1.msra.mxu0 0.0
    %2452 = vmatprep.subr.mxu0 0.0
    %2453 = vmatpush1.msra.mxu0 0.0
    %2454 = vmatprep.subr.mxu0 0.0
    %2455 = vmatpush1.msra.mxu0 0.0
    %2456 = vmatprep.subr.mxu0 0.0
    %2457 = vmatpush1.msra.mxu0 0.0
    %2458 = vmatprep.subr.mxu0 0.0
    %2459 = vmatpush1.msra.mxu0 0.0
    %2460 = vmatprep.subr.mxu0 0.0
    %2461 = vmatpush1.msra.mxu0 0.0
    %2462 = vmatprep.subr.mxu0 0.0
    %2463 = vmatpush1.msra.mxu0 0.0
    %2464 = vmatprep.subr.mxu0 0.0
    %2465 = vmatpush1.msra.mxu0 0.0
    %2466 = vmatprep.subr.mxu0 0.0
    %2467 = vmatpush1.msra.mxu0 0.0
    %2468 = vmatprep.subr.mxu0 0.0
    %2469 = vmatpush1.msra.mxu0 0.0
    %2470 = vmatprep.subr.mxu0 0.0
    %2471 = vmatpush1.msra.mxu0 0.0
    %2472 = vmatprep.subr.mxu0 0.0
    %2473 = vmatpush1.msra.mxu0 0.0
    %2474 = vmatprep.subr.mxu0 0.0
    %2475 = vmatpush1.msra.mxu0 0.0
    %2476 = vmatprep.subr.mxu0 0.0
    %2477 = vmatpush1.msra.mxu0 0.0
    %2478 = vmatprep.subr.mxu0 0.0
    %2479 = vmatpush1.msra.mxu0 0.0
    %2480 = vmatprep.subr.mxu0 0.0
    %2481 = vmatpush1.msra.mxu0 0.0
    %2482 = vmatprep.subr.mxu0 0.0
    %2483 = vmatpush1.msra.mxu0 0.0
    %2484 = vmatprep.subr.mxu0 0.0
    %2485 = vmatpush1.msra.mxu0 0.0
    %2486 = vmatprep.subr.mxu0 0.0
    %2487 = vmatpush1.msra.mxu0 0.0
    %2488 = vmatprep.subr.mxu0 0.0
    %2489 = vmatpush1.msra.mxu0 0.0
    %2490 = vmatprep.subr.mxu0 0.0
    %2491 = vmatpush1.msra.mxu0 0.0
    %2492 = vmatprep.subr.mxu0 0.0
    %2493 = vmatpush1.msra.mxu0 0.0
    %2494 = vmatprep.subr.mxu0 0.0
    %2495 = vmatpush1.msra.mxu0 0.0
    %2496 = vmatprep.mubr.f32.mxu0 0.0
    %2497 = vmatmul.mubr.f32.gmra.mrb[0].mxu0 %v2430
    %v2498 = vpop.f32.mrb[0].mxu0
    %v2499 = vadd.f32 %v2424, %v2498
    %v2500 = vpop.f32.mrb[0].mxu0
    %2501 = vdwg.mxu0
    %v2502 = vadd.f32 %v2499, %v1684
    %v2503 = vxor.u32 %v2502, 2147483648
    %v2504 = vmul.f32 %v2503, 1.442695
    %v2505 = vpow.pop %v2504
    %v2506 = vadd.f32 %v2505, 1.0
    %v2507 = vrcp.pop %v2506
    %v2508 = vmul.f32 1.0, %v2507
    %v2509 = vtanh.pop %v2502
    %v2510 = vmul.f32 %v2508, %v2248
    %2512 = vrot.lane.b32.xlu0 %v2509, 64
    %v2513 = vpop.permute.xlu0 %2512
    %v2515 = vmul.f32 %v2508, %v2513
    %2517 = vrot.lane.b32.xlu0 %v2515, 32
    %v2518 = vpop.permute.xlu0 %2517
    %v2520 = vadd.f32 %v2510, %v2518
    %v2521 = vtanh.pop %v2520
    %2523 = vrot.lane.b32.xlu0 %v2521, 64
    %v2524 = vpop.permute.xlu0 %2523
    %v2526 = vmul.f32 %v2508, %v2524
    %2528 = vrot.lane.b32.xlu0 %v2526, 32
    %v2529 = vpop.permute.xlu0 %2528
    %2531 = vst.msk [vmem:[#allocation3 + $0x18] sm:$0xff] %vm246, %v2529
    %2532 = vmatprep.subr.mxu0 0.0
    %2533 = vmatpush1.msra.mxu0 %v1424
    %2534 = vmatprep.subr.mxu0 0.0
    %2535 = vmatpush1.msra.mxu0 %v1425
    %2536 = vmatprep.subr.mxu0 0.0
    %2537 = vmatpush1.msra.mxu0 %v1426
    %2538 = vmatprep.subr.mxu0 0.0
    %2539 = vmatpush1.msra.mxu0 %v1427
    %2540 = vmatprep.subr.mxu0 0.0
    %2541 = vmatpush1.msra.mxu0 0.0
    %2542 = vmatprep.subr.mxu0 0.0
    %2543 = vmatpush1.msra.mxu0 0.0
    %2544 = vmatprep.subr.mxu0 0.0
    %2545 = vmatpush1.msra.mxu0 0.0
    %2546 = vmatprep.subr.mxu0 0.0
    %2547 = vmatpush1.msra.mxu0 0.0
    %2548 = vmatprep.subr.mxu0 0.0
    %2549 = vmatpush1.msra.mxu0 0.0
    %2550 = vmatprep.subr.mxu0 0.0
    %2551 = vmatpush1.msra.mxu0 0.0
    %2552 = vmatprep.subr.mxu0 0.0
    %2553 = vmatpush1.msra.mxu0 0.0
    %2554 = vmatprep.subr.mxu0 0.0
    %2555 = vmatpush1.msra.mxu0 0.0
    %2556 = vmatprep.subr.mxu0 0.0
    %2557 = vmatpush1.msra.mxu0 0.0
    %2558 = vmatprep.subr.mxu0 0.0
    %2559 = vmatpush1.msra.mxu0 0.0
    %2560 = vmatprep.subr.mxu0 0.0
    %2561 = vmatpush1.msra.mxu0 0.0
    %2562 = vmatprep.subr.mxu0 0.0
    %2563 = vmatpush1.msra.mxu0 0.0
    %2564 = vmatprep.subr.mxu0 0.0
    %2565 = vmatpush1.msra.mxu0 0.0
    %2566 = vmatprep.subr.mxu0 0.0
    %2567 = vmatpush1.msra.mxu0 0.0
    %2568 = vmatprep.subr.mxu0 0.0
    %2569 = vmatpush1.msra.mxu0 0.0
    %2570 = vmatprep.subr.mxu0 0.0
    %2571 = vmatpush1.msra.mxu0 0.0
    %2572 = vmatprep.subr.mxu0 0.0
    %2573 = vmatpush1.msra.mxu0 0.0
    %2574 = vmatprep.subr.mxu0 0.0
    %2575 = vmatpush1.msra.mxu0 0.0
    %2576 = vmatprep.subr.mxu0 0.0
    %2577 = vmatpush1.msra.mxu0 0.0
    %2578 = vmatprep.subr.mxu0 0.0
    %2579 = vmatpush1.msra.mxu0 0.0
    %2580 = vmatprep.subr.mxu0 0.0
    %2581 = vmatpush1.msra.mxu0 0.0
    %2582 = vmatprep.subr.mxu0 0.0
    %2583 = vmatpush1.msra.mxu0 0.0
    %2584 = vmatprep.subr.mxu0 0.0
    %2585 = vmatpush1.msra.mxu0 0.0
    %2586 = vmatprep.subr.mxu0 0.0
    %2587 = vmatpush1.msra.mxu0 0.0
    %2588 = vmatprep.subr.mxu0 0.0
    %2589 = vmatpush1.msra.mxu0 0.0
    %2590 = vmatprep.subr.mxu0 0.0
    %2591 = vmatpush1.msra.mxu0 0.0
    %2592 = vmatprep.subr.mxu0 0.0
    %2593 = vmatpush1.msra.mxu0 0.0
    %2594 = vmatprep.subr.mxu0 0.0
    %2595 = vmatpush1.msra.mxu0 0.0
    %2596 = vmatprep.mubr.f32.mxu0 0.0
    %2597 = vmatmul.mubr.f32.gmra.mrb[0].mxu0 %v2430
    %v2598 = vpop.f32.mrb[0].mxu0
    %v2599 = vadd.f32 0.0, %v2598
    %v2600 = vpop.f32.mrb[0].mxu0
    %2601 = vdwg.mxu0
    %v2602 = vadd.f32 %v1421, %v2599
    %v2603 = vxor.u32 %v2602, 2147483648
    %v2604 = vmul.f32 %v2603, 1.442695
    %v2605 = vpow.pop %v2604
    %v2606 = vadd.f32 %v2605, 1.0
    %v2607 = vrcp.pop %v2606
    %v2608 = vmul.f32 1.0, %v2607
    %v2609 = vtanh.pop %v2602
    %v2610 = vmul.f32 %v2608, %v2348
    %2612 = vrot.lane.b32.xlu0 %v2609, 64
    %v2613 = vpop.permute.xlu0 %2612
    %v2615 = vmul.f32 %v2608, %v2613
    %2617 = vrot.lane.b32.xlu0 %v2615, 32
    %v2618 = vpop.permute.xlu0 %2617
    %v2620 = vadd.f32 %v2610, %v2618
    %v2621 = vtanh.pop %v2620
    %2623 = vrot.lane.b32.xlu0 %v2621, 64
    %v2624 = vpop.permute.xlu0 %2623
    %v2626 = vmul.f32 %v2608, %v2624
    %v2627 = vsel %vm246, %v2529, 0
    %2629 = vmatprep.subr.mxu0 0.0
    %2630 = vmatpush1.msra.mxu0 %v1432
    %2631 = vmatprep.subr.mxu0 0.0
    %2632 = vmatpush1.msra.mxu0 %v1433
    %2633 = vmatprep.subr.mxu0 0.0
    %2634 = vmatpush1.msra.mxu0 %v1434
    %2635 = vmatprep.subr.mxu0 0.0
    %2636 = vmatpush1.msra.mxu0 %v1435
    %2637 = vmatprep.subr.mxu0 0.0
    %2638 = vmatpush1.msra.mxu0 0.0
    %2639 = vmatprep.subr.mxu0 0.0
    %2640 = vmatpush1.msra.mxu0 0.0
    %2641 = vmatprep.subr.mxu0 0.0
    %2642 = vmatpush1.msra.mxu0 0.0
    %2643 = vmatprep.subr.mxu0 0.0
    %2644 = vmatpush1.msra.mxu0 0.0
    %2645 = vmatprep.subr.mxu0 0.0
    %2646 = vmatpush1.msra.mxu0 0.0
    %2647 = vmatprep.subr.mxu0 0.0
    %2648 = vmatpush1.msra.mxu0 0.0
    %2649 = vmatprep.subr.mxu0 0.0
    %2650 = vmatpush1.msra.mxu0 0.0
    %2651 = vmatprep.subr.mxu0 0.0
    %2652 = vmatpush1.msra.mxu0 0.0
    %2653 = vmatprep.subr.mxu0 0.0
    %2654 = vmatpush1.msra.mxu0 0.0
    %2655 = vmatprep.subr.mxu0 0.0
    %2656 = vmatpush1.msra.mxu0 0.0
    %2657 = vmatprep.subr.mxu0 0.0
    %2658 = vmatpush1.msra.mxu0 0.0
    %2659 = vmatprep.subr.mxu0 0.0
    %2660 = vmatpush1.msra.mxu0 0.0
    %2661 = vmatprep.subr.mxu0 0.0
    %2662 = vmatpush1.msra.mxu0 0.0
    %2663 = vmatprep.subr.mxu0 0.0
    %2664 = vmatpush1.msra.mxu0 0.0
    %2665 = vmatprep.subr.mxu0 0.0
    %2666 = vmatpush1.msra.mxu0 0.0
    %2667 = vmatprep.subr.mxu0 0.0
    %2668 = vmatpush1.msra.mxu0 0.0
    %2669 = vmatprep.subr.mxu0 0.0
    %2670 = vmatpush1.msra.mxu0 0.0
    %2671 = vmatprep.subr.mxu0 0.0
    %2672 = vmatpush1.msra.mxu0 0.0
    %2673 = vmatprep.subr.mxu0 0.0
    %2674 = vmatpush1.msra.mxu0 0.0
    %2675 = vmatprep.subr.mxu0 0.0
    %2676 = vmatpush1.msra.mxu0 0.0
    %2677 = vmatprep.subr.mxu0 0.0
    %2678 = vmatpush1.msra.mxu0 0.0
    %2679 = vmatprep.subr.mxu0 0.0
    %2680 = vmatpush1.msra.mxu0 0.0
    %2681 = vmatprep.subr.mxu0 0.0
    %2682 = vmatpush1.msra.mxu0 0.0
    %2683 = vmatprep.subr.mxu0 0.0
    %2684 = vmatpush1.msra.mxu0 0.0
    %2685 = vmatprep.subr.mxu0 0.0
    %2686 = vmatpush1.msra.mxu0 0.0
    %2687 = vmatprep.subr.mxu0 0.0
    %2688 = vmatpush1.msra.mxu0 0.0
    %2689 = vmatprep.subr.mxu0 0.0
    %2690 = vmatpush1.msra.mxu0 0.0
    %2691 = vmatprep.subr.mxu0 0.0
    %2692 = vmatpush1.msra.mxu0 0.0
    %2693 = vmatprep.mubr.f32.mxu0 0.0
    %2694 = vmatmul.mubr.f32.gmra.mrb[0].mxu0 %v2627
    %v2695 = vpop.f32.mrb[0].mxu0
    %v2696 = vadd.f32 0.0, %v2695
    %v2697 = vpop.f32.mrb[0].mxu0
    %2698 = vdwg.mxu0
    %2700 = vrot.lane.b32.xlu0 %v2626, 32
    %v2701 = vpop.permute.xlu0 %2700
    %v2702 = vsel %vm246, %v2701, 0
    %2704 = vmatprep.subr.mxu0 0.0
    %2705 = vmatpush1.msra.mxu0 %v1428
    %2706 = vmatprep.subr.mxu0 0.0
    %2707 = vmatpush1.msra.mxu0 %v1429
    %2708 = vmatprep.subr.mxu0 0.0
    %2709 = vmatpush1.msra.mxu0 %v1430
    %2710 = vmatprep.subr.mxu0 0.0
    %2711 = vmatpush1.msra.mxu0 %v1431
    %2712 = vmatprep.subr.mxu0 0.0
    %2713 = vmatpush1.msra.mxu0 0.0
    %2714 = vmatprep.subr.mxu0 0.0
    %2715 = vmatpush1.msra.mxu0 0.0
    %2716 = vmatprep.subr.mxu0 0.0
    %2717 = vmatpush1.msra.mxu0 0.0
    %2718 = vmatprep.subr.mxu0 0.0
    %2719 = vmatpush1.msra.mxu0 0.0
    %2720 = vmatprep.subr.mxu0 0.0
    %2721 = vmatpush1.msra.mxu0 0.0
    %2722 = vmatprep.subr.mxu0 0.0
    %2723 = vmatpush1.msra.mxu0 0.0
    %2724 = vmatprep.subr.mxu0 0.0
    %2725 = vmatpush1.msra.mxu0 0.0
    %2726 = vmatprep.subr.mxu0 0.0
    %2727 = vmatpush1.msra.mxu0 0.0
    %2728 = vmatprep.subr.mxu0 0.0
    %2729 = vmatpush1.msra.mxu0 0.0
    %2730 = vmatprep.subr.mxu0 0.0
    %2731 = vmatpush1.msra.mxu0 0.0
    %2732 = vmatprep.subr.mxu0 0.0
    %2733 = vmatpush1.msra.mxu0 0.0
    %2734 = vmatprep.subr.mxu0 0.0
    %2735 = vmatpush1.msra.mxu0 0.0
    %2736 = vmatprep.subr.mxu0 0.0
    %2737 = vmatpush1.msra.mxu0 0.0
    %2738 = vmatprep.subr.mxu0 0.0
    %2739 = vmatpush1.msra.mxu0 0.0
    %2740 = vmatprep.subr.mxu0 0.0
    %2741 = vmatpush1.msra.mxu0 0.0
    %2742 = vmatprep.subr.mxu0 0.0
    %2743 = vmatpush1.msra.mxu0 0.0
    %2744 = vmatprep.subr.mxu0 0.0
    %2745 = vmatpush1.msra.mxu0 0.0
    %2746 = vmatprep.subr.mxu0 0.0
    %2747 = vmatpush1.msra.mxu0 0.0
    %2748 = vmatprep.subr.mxu0 0.0
    %2749 = vmatpush1.msra.mxu0 0.0
    %2750 = vmatprep.subr.mxu0 0.0
    %2751 = vmatpush1.msra.mxu0 0.0
    %2752 = vmatprep.subr.mxu0 0.0
    %2753 = vmatpush1.msra.mxu0 0.0
    %2754 = vmatprep.subr.mxu0 0.0
    %2755 = vmatpush1.msra.mxu0 0.0
    %2756 = vmatprep.subr.mxu0 0.0
    %2757 = vmatpush1.msra.mxu0 0.0
    %2758 = vmatprep.subr.mxu0 0.0
    %2759 = vmatpush1.msra.mxu0 0.0
    %2760 = vmatprep.subr.mxu0 0.0
    %2761 = vmatpush1.msra.mxu0 0.0
    %2762 = vmatprep.subr.mxu0 0.0
    %2763 = vmatpush1.msra.mxu0 0.0
    %2764 = vmatprep.subr.mxu0 0.0
    %2765 = vmatpush1.msra.mxu0 0.0
    %2766 = vmatprep.subr.mxu0 0.0
    %2767 = vmatpush1.msra.mxu0 0.0
    %2768 = vmatprep.mubr.f32.mxu0 0.0
    %2769 = vmatmul.mubr.f32.gmra.mrb[0].mxu0 %v2702
    %v2770 = vpop.f32.mrb[0].mxu0
    %v2771 = vadd.f32 %v2696, %v2770
    %v2772 = vpop.f32.mrb[0].mxu0
    %2773 = vdwg.mxu0
    %v2774 = vadd.f32 %v2771, %v1684
    %v2775 = vxor.u32 %v2774, 2147483648
    %v2776 = vmul.f32 %v2775, 1.442695
    %v2777 = vpow.pop %v2776
    %v2778 = vadd.f32 %v2777, 1.0
    %v2779 = vrcp.pop %v2778
    %v2780 = vmul.f32 1.0, %v2779
    %v2781 = vtanh.pop %v2774
    %v2782 = vmul.f32 %v2780, %v2520
    %2784 = vrot.lane.b32.xlu0 %v2781, 64
    %v2785 = vpop.permute.xlu0 %2784
    %v2787 = vmul.f32 %v2780, %v2785
    %2789 = vrot.lane.b32.xlu0 %v2787, 32
    %v2790 = vpop.permute.xlu0 %2789
    %v2792 = vadd.f32 %v2782, %v2790
    %v2793 = vtanh.pop %v2792
    %2795 = vrot.lane.b32.xlu0 %v2793, 64
    %v2796 = vpop.permute.xlu0 %2795
    %v2798 = vmul.f32 %v2780, %v2796
    %2800 = vrot.lane.b32.xlu0 %v2798, 32
    %v2801 = vpop.permute.xlu0 %2800
    %2803 = vst.msk [vmem:[#allocation3 + $0x20] sm:$0xff] %vm246, %v2801
    %2804 = vmatprep.subr.mxu0 0.0
    %2805 = vmatpush1.msra.mxu0 %v1424
    %2806 = vmatprep.subr.mxu0 0.0
    %2807 = vmatpush1.msra.mxu0 %v1425
    %2808 = vmatprep.subr.mxu0 0.0
    %2809 = vmatpush1.msra.mxu0 %v1426
    %2810 = vmatprep.subr.mxu0 0.0
    %2811 = vmatpush1.msra.mxu0 %v1427
    %2812 = vmatprep.subr.mxu0 0.0
    %2813 = vmatpush1.msra.mxu0 0.0
    %2814 = vmatprep.subr.mxu0 0.0
    %2815 = vmatpush1.msra.mxu0 0.0
    %2816 = vmatprep.subr.mxu0 0.0
    %2817 = vmatpush1.msra.mxu0 0.0
    %2818 = vmatprep.subr.mxu0 0.0
    %2819 = vmatpush1.msra.mxu0 0.0
    %2820 = vmatprep.subr.mxu0 0.0
    %2821 = vmatpush1.msra.mxu0 0.0
    %2822 = vmatprep.subr.mxu0 0.0
    %2823 = vmatpush1.msra.mxu0 0.0
    %2824 = vmatprep.subr.mxu0 0.0
    %2825 = vmatpush1.msra.mxu0 0.0
    %2826 = vmatprep.subr.mxu0 0.0
    %2827 = vmatpush1.msra.mxu0 0.0
    %2828 = vmatprep.subr.mxu0 0.0
    %2829 = vmatpush1.msra.mxu0 0.0
    %2830 = vmatprep.subr.mxu0 0.0
    %2831 = vmatpush1.msra.mxu0 0.0
    %2832 = vmatprep.subr.mxu0 0.0
    %2833 = vmatpush1.msra.mxu0 0.0
    %2834 = vmatprep.subr.mxu0 0.0
    %2835 = vmatpush1.msra.mxu0 0.0
    %2836 = vmatprep.subr.mxu0 0.0
    %2837 = vmatpush1.msra.mxu0 0.0
    %2838 = vmatprep.subr.mxu0 0.0
    %2839 = vmatpush1.msra.mxu0 0.0
    %2840 = vmatprep.subr.mxu0 0.0
    %2841 = vmatpush1.msra.mxu0 0.0
    %2842 = vmatprep.subr.mxu0 0.0
    %2843 = vmatpush1.msra.mxu0 0.0
    %2844 = vmatprep.subr.mxu0 0.0
    %2845 = vmatpush1.msra.mxu0 0.0
    %2846 = vmatprep.subr.mxu0 0.0
    %2847 = vmatpush1.msra.mxu0 0.0
    %2848 = vmatprep.subr.mxu0 0.0
    %2849 = vmatpush1.msra.mxu0 0.0
    %2850 = vmatprep.subr.mxu0 0.0
    %2851 = vmatpush1.msra.mxu0 0.0
    %2852 = vmatprep.subr.mxu0 0.0
    %2853 = vmatpush1.msra.mxu0 0.0
    %2854 = vmatprep.subr.mxu0 0.0
    %2855 = vmatpush1.msra.mxu0 0.0
    %2856 = vmatprep.subr.mxu0 0.0
    %2857 = vmatpush1.msra.mxu0 0.0
    %2858 = vmatprep.subr.mxu0 0.0
    %2859 = vmatpush1.msra.mxu0 0.0
    %2860 = vmatprep.subr.mxu0 0.0
    %2861 = vmatpush1.msra.mxu0 0.0
    %2862 = vmatprep.subr.mxu0 0.0
    %2863 = vmatpush1.msra.mxu0 0.0
    %2864 = vmatprep.subr.mxu0 0.0
    %2865 = vmatpush1.msra.mxu0 0.0
    %2866 = vmatprep.subr.mxu0 0.0
    %2867 = vmatpush1.msra.mxu0 0.0
    %2868 = vmatprep.mubr.f32.mxu0 0.0
    %2869 = vmatmul.mubr.f32.gmra.mrb[0].mxu0 %v2702
    %v2870 = vpop.f32.mrb[0].mxu0
    %v2871 = vadd.f32 0.0, %v2870
    %v2872 = vpop.f32.mrb[0].mxu0
    %2873 = vdwg.mxu0
    %v2874 = vadd.f32 %v1421, %v2871
    %v2875 = vxor.u32 %v2874, 2147483648
    %v2876 = vmul.f32 %v2875, 1.442695
    %v2877 = vpow.pop %v2876
    %v2878 = vadd.f32 %v2877, 1.0
    %v2879 = vrcp.pop %v2878
    %v2880 = vmul.f32 1.0, %v2879
    %v2881 = vtanh.pop %v2874
    %v2882 = vmul.f32 %v2880, %v2620
    %2884 = vrot.lane.b32.xlu0 %v2881, 64
    %v2885 = vpop.permute.xlu0 %2884
    %v2887 = vmul.f32 %v2880, %v2885
    %2889 = vrot.lane.b32.xlu0 %v2887, 32
    %v2890 = vpop.permute.xlu0 %2889
    %v2892 = vadd.f32 %v2882, %v2890
    %v2893 = vtanh.pop %v2892
    %2895 = vrot.lane.b32.xlu0 %v2893, 64
    %v2896 = vpop.permute.xlu0 %2895
    %v2898 = vmul.f32 %v2880, %v2896
    %v2899 = vsel %vm246, %v2801, 0
    %2901 = vmatprep.subr.mxu0 0.0
    %2902 = vmatpush1.msra.mxu0 %v1432
    %2903 = vmatprep.subr.mxu0 0.0
    %2904 = vmatpush1.msra.mxu0 %v1433
    %2905 = vmatprep.subr.mxu0 0.0
    %2906 = vmatpush1.msra.mxu0 %v1434
    %2907 = vmatprep.subr.mxu0 0.0
    %2908 = vmatpush1.msra.mxu0 %v1435
    %2909 = vmatprep.subr.mxu0 0.0
    %2910 = vmatpush1.msra.mxu0 0.0
    %2911 = vmatprep.subr.mxu0 0.0
    %2912 = vmatpush1.msra.mxu0 0.0
    %2913 = vmatprep.subr.mxu0 0.0
    %2914 = vmatpush1.msra.mxu0 0.0
    %2915 = vmatprep.subr.mxu0 0.0
    %2916 = vmatpush1.msra.mxu0 0.0
    %2917 = vmatprep.subr.mxu0 0.0
    %2918 = vmatpush1.msra.mxu0 0.0
    %2919 = vmatprep.subr.mxu0 0.0
    %2920 = vmatpush1.msra.mxu0 0.0
    %2921 = vmatprep.subr.mxu0 0.0
    %2922 = vmatpush1.msra.mxu0 0.0
    %2923 = vmatprep.subr.mxu0 0.0
    %2924 = vmatpush1.msra.mxu0 0.0
    %2925 = vmatprep.subr.mxu0 0.0
    %2926 = vmatpush1.msra.mxu0 0.0
    %2927 = vmatprep.subr.mxu0 0.0
    %2928 = vmatpush1.msra.mxu0 0.0
    %2929 = vmatprep.subr.mxu0 0.0
    %2930 = vmatpush1.msra.mxu0 0.0
    %2931 = vmatprep.subr.mxu0 0.0
    %2932 = vmatpush1.msra.mxu0 0.0
    %2933 = vmatprep.subr.mxu0 0.0
    %2934 = vmatpush1.msra.mxu0 0.0
    %2935 = vmatprep.subr.mxu0 0.0
    %2936 = vmatpush1.msra.mxu0 0.0
    %2937 = vmatprep.subr.mxu0 0.0
    %2938 = vmatpush1.msra.mxu0 0.0
    %2939 = vmatprep.subr.mxu0 0.0
    %2940 = vmatpush1.msra.mxu0 0.0
    %2941 = vmatprep.subr.mxu0 0.0
    %2942 = vmatpush1.msra.mxu0 0.0
    %2943 = vmatprep.subr.mxu0 0.0
    %2944 = vmatpush1.msra.mxu0 0.0
    %2945 = vmatprep.subr.mxu0 0.0
    %2946 = vmatpush1.msra.mxu0 0.0
    %2947 = vmatprep.subr.mxu0 0.0
    %2948 = vmatpush1.msra.mxu0 0.0
    %2949 = vmatprep.subr.mxu0 0.0
    %2950 = vmatpush1.msra.mxu0 0.0
    %2951 = vmatprep.subr.mxu0 0.0
    %2952 = vmatpush1.msra.mxu0 0.0
    %2953 = vmatprep.subr.mxu0 0.0
    %2954 = vmatpush1.msra.mxu0 0.0
    %2955 = vmatprep.subr.mxu0 0.0
    %2956 = vmatpush1.msra.mxu0 0.0
    %2957 = vmatprep.subr.mxu0 0.0
    %2958 = vmatpush1.msra.mxu0 0.0
    %2959 = vmatprep.subr.mxu0 0.0
    %2960 = vmatpush1.msra.mxu0 0.0
    %2961 = vmatprep.subr.mxu0 0.0
    %2962 = vmatpush1.msra.mxu0 0.0
    %2963 = vmatprep.subr.mxu0 0.0
    %2964 = vmatpush1.msra.mxu0 0.0
    %2965 = vmatprep.mubr.f32.mxu0 0.0
    %2966 = vmatmul.mubr.f32.gmra.mrb[0].mxu0 %v2899
    %v2967 = vpop.f32.mrb[0].mxu0
    %v2968 = vadd.f32 0.0, %v2967
    %v2969 = vpop.f32.mrb[0].mxu0
    %2970 = vdwg.mxu0
    %2972 = vrot.lane.b32.xlu0 %v2898, 32
    %v2973 = vpop.permute.xlu0 %2972
    %v2974 = vsel %vm246, %v2973, 0
    %2976 = vmatprep.subr.mxu0 0.0
    %2977 = vmatpush1.msra.mxu0 %v1428
    %2978 = vmatprep.subr.mxu0 0.0
    %2979 = vmatpush1.msra.mxu0 %v1429
    %2980 = vmatprep.subr.mxu0 0.0
    %2981 = vmatpush1.msra.mxu0 %v1430
    %2982 = vmatprep.subr.mxu0 0.0
    %2983 = vmatpush1.msra.mxu0 %v1431
    %2984 = vmatprep.subr.mxu0 0.0
    %2985 = vmatpush1.msra.mxu0 0.0
    %2986 = vmatprep.subr.mxu0 0.0
    %2987 = vmatpush1.msra.mxu0 0.0
    %2988 = vmatprep.subr.mxu0 0.0
    %2989 = vmatpush1.msra.mxu0 0.0
    %2990 = vmatprep.subr.mxu0 0.0
    %2991 = vmatpush1.msra.mxu0 0.0
    %2992 = vmatprep.subr.mxu0 0.0
    %2993 = vmatpush1.msra.mxu0 0.0
    %2994 = vmatprep.subr.mxu0 0.0
    %2995 = vmatpush1.msra.mxu0 0.0
    %2996 = vmatprep.subr.mxu0 0.0
    %2997 = vmatpush1.msra.mxu0 0.0
    %2998 = vmatprep.subr.mxu0 0.0
    %2999 = vmatpush1.msra.mxu0 0.0
    %3000 = vmatprep.subr.mxu0 0.0
    %3001 = vmatpush1.msra.mxu0 0.0
    %3002 = vmatprep.subr.mxu0 0.0
    %3003 = vmatpush1.msra.mxu0 0.0
    %3004 = vmatprep.subr.mxu0 0.0
    %3005 = vmatpush1.msra.mxu0 0.0
    %3006 = vmatprep.subr.mxu0 0.0
    %3007 = vmatpush1.msra.mxu0 0.0
    %3008 = vmatprep.subr.mxu0 0.0
    %3009 = vmatpush1.msra.mxu0 0.0
    %3010 = vmatprep.subr.mxu0 0.0
    %3011 = vmatpush1.msra.mxu0 0.0
    %3012 = vmatprep.subr.mxu0 0.0
    %3013 = vmatpush1.msra.mxu0 0.0
    %3014 = vmatprep.subr.mxu0 0.0
    %3015 = vmatpush1.msra.mxu0 0.0
    %3016 = vmatprep.subr.mxu0 0.0
    %3017 = vmatpush1.msra.mxu0 0.0
    %3018 = vmatprep.subr.mxu0 0.0
    %3019 = vmatpush1.msra.mxu0 0.0
    %3020 = vmatprep.subr.mxu0 0.0
    %3021 = vmatpush1.msra.mxu0 0.0
    %3022 = vmatprep.subr.mxu0 0.0
    %3023 = vmatpush1.msra.mxu0 0.0
    %3024 = vmatprep.subr.mxu0 0.0
    %3025 = vmatpush1.msra.mxu0 0.0
    %3026 = vmatprep.subr.mxu0 0.0
    %3027 = vmatpush1.msra.mxu0 0.0
    %3028 = vmatprep.subr.mxu0 0.0
    %3029 = vmatpush1.msra.mxu0 0.0
    %3030 = vmatprep.subr.mxu0 0.0
    %3031 = vmatpush1.msra.mxu0 0.0
    %3032 = vmatprep.subr.mxu0 0.0
    %3033 = vmatpush1.msra.mxu0 0.0
    %3034 = vmatprep.subr.mxu0 0.0
    %3035 = vmatpush1.msra.mxu0 0.0
    %3036 = vmatprep.subr.mxu0 0.0
    %3037 = vmatpush1.msra.mxu0 0.0
    %3038 = vmatprep.subr.mxu0 0.0
    %3039 = vmatpush1.msra.mxu0 0.0
    %3040 = vmatprep.mubr.f32.mxu0 0.0
    %3041 = vmatmul.mubr.f32.gmra.mrb[0].mxu0 %v2974
    %v3042 = vpop.f32.mrb[0].mxu0
    %v3043 = vadd.f32 %v2968, %v3042
    %v3044 = vpop.f32.mrb[0].mxu0
    %3045 = vdwg.mxu0
    %v3046 = vadd.f32 %v3043, %v1684
    %v3047 = vxor.u32 %v3046, 2147483648
    %v3048 = vmul.f32 %v3047, 1.442695
    %v3049 = vpow.pop %v3048
    %v3050 = vadd.f32 %v3049, 1.0
    %v3051 = vrcp.pop %v3050
    %v3052 = vmul.f32 1.0, %v3051
    %v3053 = vtanh.pop %v3046
    %v3054 = vmul.f32 %v3052, %v2792
    %3056 = vrot.lane.b32.xlu0 %v3053, 64
    %v3057 = vpop.permute.xlu0 %3056
    %v3059 = vmul.f32 %v3052, %v3057
    %3061 = vrot.lane.b32.xlu0 %v3059, 32
    %v3062 = vpop.permute.xlu0 %3061
    %v3064 = vadd.f32 %v3054, %v3062
    %v3065 = vtanh.pop %v3064
    %3067 = vrot.lane.b32.xlu0 %v3065, 64
    %v3068 = vpop.permute.xlu0 %3067
    %v3070 = vmul.f32 %v3052, %v3068
    %3072 = vrot.lane.b32.xlu0 %v3070, 32
    %v3073 = vpop.permute.xlu0 %3072
    %3075 = vst.msk [vmem:[#allocation3 + $0x28] sm:$0xff] %vm246, %v3073
    %3076 = vmatprep.subr.mxu0 0.0
    %3077 = vmatpush1.msra.mxu0 %v1424
    %3078 = vmatprep.subr.mxu0 0.0
    %3079 = vmatpush1.msra.mxu0 %v1425
    %3080 = vmatprep.subr.mxu0 0.0
    %3081 = vmatpush1.msra.mxu0 %v1426
    %3082 = vmatprep.subr.mxu0 0.0
    %3083 = vmatpush1.msra.mxu0 %v1427
    %3084 = vmatprep.subr.mxu0 0.0
    %3085 = vmatpush1.msra.mxu0 0.0
    %3086 = vmatprep.subr.mxu0 0.0
    %3087 = vmatpush1.msra.mxu0 0.0
    %3088 = vmatprep.subr.mxu0 0.0
    %3089 = vmatpush1.msra.mxu0 0.0
    %3090 = vmatprep.subr.mxu0 0.0
    %3091 = vmatpush1.msra.mxu0 0.0
    %3092 = vmatprep.subr.mxu0 0.0
    %3093 = vmatpush1.msra.mxu0 0.0
    %3094 = vmatprep.subr.mxu0 0.0
    %3095 = vmatpush1.msra.mxu0 0.0
    %3096 = vmatprep.subr.mxu0 0.0
    %3097 = vmatpush1.msra.mxu0 0.0
    %3098 = vmatprep.subr.mxu0 0.0
    %3099 = vmatpush1.msra.mxu0 0.0
    %3100 = vmatprep.subr.mxu0 0.0
    %3101 = vmatpush1.msra.mxu0 0.0
    %3102 = vmatprep.subr.mxu0 0.0
    %3103 = vmatpush1.msra.mxu0 0.0
    %3104 = vmatprep.subr.mxu0 0.0
    %3105 = vmatpush1.msra.mxu0 0.0
    %3106 = vmatprep.subr.mxu0 0.0
    %3107 = vmatpush1.msra.mxu0 0.0
    %3108 = vmatprep.subr.mxu0 0.0
    %3109 = vmatpush1.msra.mxu0 0.0
    %3110 = vmatprep.subr.mxu0 0.0
    %3111 = vmatpush1.msra.mxu0 0.0
    %3112 = vmatprep.subr.mxu0 0.0
    %3113 = vmatpush1.msra.mxu0 0.0
    %3114 = vmatprep.subr.mxu0 0.0
    %3115 = vmatpush1.msra.mxu0 0.0
    %3116 = vmatprep.subr.mxu0 0.0
    %3117 = vmatpush1.msra.mxu0 0.0
    %3118 = vmatprep.subr.mxu0 0.0
    %3119 = vmatpush1.msra.mxu0 0.0
    %3120 = vmatprep.subr.mxu0 0.0
    %3121 = vmatpush1.msra.mxu0 0.0
    %3122 = vmatprep.subr.mxu0 0.0
    %3123 = vmatpush1.msra.mxu0 0.0
    %3124 = vmatprep.subr.mxu0 0.0
    %3125 = vmatpush1.msra.mxu0 0.0
    %3126 = vmatprep.subr.mxu0 0.0
    %3127 = vmatpush1.msra.mxu0 0.0
    %3128 = vmatprep.subr.mxu0 0.0
    %3129 = vmatpush1.msra.mxu0 0.0
    %3130 = vmatprep.subr.mxu0 0.0
    %3131 = vmatpush1.msra.mxu0 0.0
    %3132 = vmatprep.subr.mxu0 0.0
    %3133 = vmatpush1.msra.mxu0 0.0
    %3134 = vmatprep.subr.mxu0 0.0
    %3135 = vmatpush1.msra.mxu0 0.0
    %3136 = vmatprep.subr.mxu0 0.0
    %3137 = vmatpush1.msra.mxu0 0.0
    %3138 = vmatprep.subr.mxu0 0.0
    %3139 = vmatpush1.msra.mxu0 0.0
    %3140 = vmatprep.mubr.f32.mxu0 0.0
    %3141 = vmatmul.mubr.f32.gmra.mrb[0].mxu0 %v2974
    %v3142 = vpop.f32.mrb[0].mxu0
    %v3143 = vadd.f32 0.0, %v3142
    %v3144 = vpop.f32.mrb[0].mxu0
    %3145 = vdwg.mxu0
    %v3146 = vadd.f32 %v1421, %v3143
    %v3147 = vxor.u32 %v3146, 2147483648
    %v3148 = vmul.f32 %v3147, 1.442695
    %v3149 = vpow.pop %v3148
    %v3150 = vadd.f32 %v3149, 1.0
    %v3151 = vrcp.pop %v3150
    %v3152 = vmul.f32 1.0, %v3151
    %v3153 = vtanh.pop %v3146
    %v3154 = vmul.f32 %v3152, %v2892
    %3156 = vrot.lane.b32.xlu0 %v3153, 64
    %v3157 = vpop.permute.xlu0 %3156
    %v3159 = vmul.f32 %v3152, %v3157
    %3161 = vrot.lane.b32.xlu0 %v3159, 32
    %v3162 = vpop.permute.xlu0 %3161
    %v3164 = vadd.f32 %v3154, %v3162
    %v3165 = vtanh.pop %v3164
    %3167 = vrot.lane.b32.xlu0 %v3165, 64
    %v3168 = vpop.permute.xlu0 %3167
    %v3170 = vmul.f32 %v3152, %v3168
    %v3171 = vsel %vm246, %v3073, 0
    %3173 = vmatprep.subr.mxu0 0.0
    %3174 = vmatpush1.msra.mxu0 %v1432
    %3175 = vmatprep.subr.mxu0 0.0
    %3176 = vmatpush1.msra.mxu0 %v1433
    %3177 = vmatprep.subr.mxu0 0.0
    %3178 = vmatpush1.msra.mxu0 %v1434
    %3179 = vmatprep.subr.mxu0 0.0
    %3180 = vmatpush1.msra.mxu0 %v1435
    %3181 = vmatprep.subr.mxu0 0.0
    %3182 = vmatpush1.msra.mxu0 0.0
    %3183 = vmatprep.subr.mxu0 0.0
    %3184 = vmatpush1.msra.mxu0 0.0
    %3185 = vmatprep.subr.mxu0 0.0
    %3186 = vmatpush1.msra.mxu0 0.0
    %3187 = vmatprep.subr.mxu0 0.0
    %3188 = vmatpush1.msra.mxu0 0.0
    %3189 = vmatprep.subr.mxu0 0.0
    %3190 = vmatpush1.msra.mxu0 0.0
    %3191 = vmatprep.subr.mxu0 0.0
    %3192 = vmatpush1.msra.mxu0 0.0
    %3193 = vmatprep.subr.mxu0 0.0
    %3194 = vmatpush1.msra.mxu0 0.0
    %3195 = vmatprep.subr.mxu0 0.0
    %3196 = vmatpush1.msra.mxu0 0.0
    %3197 = vmatprep.subr.mxu0 0.0
    %3198 = vmatpush1.msra.mxu0 0.0
    %3199 = vmatprep.subr.mxu0 0.0
    %3200 = vmatpush1.msra.mxu0 0.0
    %3201 = vmatprep.subr.mxu0 0.0
    %3202 = vmatpush1.msra.mxu0 0.0
    %3203 = vmatprep.subr.mxu0 0.0
    %3204 = vmatpush1.msra.mxu0 0.0
    %3205 = vmatprep.subr.mxu0 0.0
    %3206 = vmatpush1.msra.mxu0 0.0
    %3207 = vmatprep.subr.mxu0 0.0
    %3208 = vmatpush1.msra.mxu0 0.0
    %3209 = vmatprep.subr.mxu0 0.0
    %3210 = vmatpush1.msra.mxu0 0.0
    %3211 = vmatprep.subr.mxu0 0.0
    %3212 = vmatpush1.msra.mxu0 0.0
    %3213 = vmatprep.subr.mxu0 0.0
    %3214 = vmatpush1.msra.mxu0 0.0
    %3215 = vmatprep.subr.mxu0 0.0
    %3216 = vmatpush1.msra.mxu0 0.0
    %3217 = vmatprep.subr.mxu0 0.0
    %3218 = vmatpush1.msra.mxu0 0.0
    %3219 = vmatprep.subr.mxu0 0.0
    %3220 = vmatpush1.msra.mxu0 0.0
    %3221 = vmatprep.subr.mxu0 0.0
    %3222 = vmatpush1.msra.mxu0 0.0
    %3223 = vmatprep.subr.mxu0 0.0
    %3224 = vmatpush1.msra.mxu0 0.0
    %3225 = vmatprep.subr.mxu0 0.0
    %3226 = vmatpush1.msra.mxu0 0.0
    %3227 = vmatprep.subr.mxu0 0.0
    %3228 = vmatpush1.msra.mxu0 0.0
    %3229 = vmatprep.subr.mxu0 0.0
    %3230 = vmatpush1.msra.mxu0 0.0
    %3231 = vmatprep.subr.mxu0 0.0
    %3232 = vmatpush1.msra.mxu0 0.0
    %3233 = vmatprep.subr.mxu0 0.0
    %3234 = vmatpush1.msra.mxu0 0.0
    %3235 = vmatprep.subr.mxu0 0.0
    %3236 = vmatpush1.msra.mxu0 0.0
    %3237 = vmatprep.mubr.f32.mxu0 0.0
    %3238 = vmatmul.mubr.f32.gmra.mrb[0].mxu0 %v3171
    %v3239 = vpop.f32.mrb[0].mxu0
    %v3240 = vadd.f32 0.0, %v3239
    %v3241 = vpop.f32.mrb[0].mxu0
    %3242 = vdwg.mxu0
    %3244 = vrot.lane.b32.xlu0 %v3170, 32
    %v3245 = vpop.permute.xlu0 %3244
    %v3246 = vsel %vm246, %v3245, 0
    %3248 = vmatprep.subr.mxu0 0.0
    %3249 = vmatpush1.msra.mxu0 %v1428
    %3250 = vmatprep.subr.mxu0 0.0
    %3251 = vmatpush1.msra.mxu0 %v1429
    %3252 = vmatprep.subr.mxu0 0.0
    %3253 = vmatpush1.msra.mxu0 %v1430
    %3254 = vmatprep.subr.mxu0 0.0
    %3255 = vmatpush1.msra.mxu0 %v1431
    %3256 = vmatprep.subr.mxu0 0.0
    %3257 = vmatpush1.msra.mxu0 0.0
    %3258 = vmatprep.subr.mxu0 0.0
    %3259 = vmatpush1.msra.mxu0 0.0
    %3260 = vmatprep.subr.mxu0 0.0
    %3261 = vmatpush1.msra.mxu0 0.0
    %3262 = vmatprep.subr.mxu0 0.0
    %3263 = vmatpush1.msra.mxu0 0.0
    %3264 = vmatprep.subr.mxu0 0.0
    %3265 = vmatpush1.msra.mxu0 0.0
    %3266 = vmatprep.subr.mxu0 0.0
    %3267 = vmatpush1.msra.mxu0 0.0
    %3268 = vmatprep.subr.mxu0 0.0
    %3269 = vmatpush1.msra.mxu0 0.0
    %3270 = vmatprep.subr.mxu0 0.0
    %3271 = vmatpush1.msra.mxu0 0.0
    %3272 = vmatprep.subr.mxu0 0.0
    %3273 = vmatpush1.msra.mxu0 0.0
    %3274 = vmatprep.subr.mxu0 0.0
    %3275 = vmatpush1.msra.mxu0 0.0
    %3276 = vmatprep.subr.mxu0 0.0
    %3277 = vmatpush1.msra.mxu0 0.0
    %3278 = vmatprep.subr.mxu0 0.0
    %3279 = vmatpush1.msra.mxu0 0.0
    %3280 = vmatprep.subr.mxu0 0.0
    %3281 = vmatpush1.msra.mxu0 0.0
    %3282 = vmatprep.subr.mxu0 0.0
    %3283 = vmatpush1.msra.mxu0 0.0
    %3284 = vmatprep.subr.mxu0 0.0
    %3285 = vmatpush1.msra.mxu0 0.0
    %3286 = vmatprep.subr.mxu0 0.0
    %3287 = vmatpush1.msra.mxu0 0.0
    %3288 = vmatprep.subr.mxu0 0.0
    %3289 = vmatpush1.msra.mxu0 0.0
    %3290 = vmatprep.subr.mxu0 0.0
    %3291 = vmatpush1.msra.mxu0 0.0
    %3292 = vmatprep.subr.mxu0 0.0
    %3293 = vmatpush1.msra.mxu0 0.0
    %3294 = vmatprep.subr.mxu0 0.0
    %3295 = vmatpush1.msra.mxu0 0.0
    %3296 = vmatprep.subr.mxu0 0.0
    %3297 = vmatpush1.msra.mxu0 0.0
    %3298 = vmatprep.subr.mxu0 0.0
    %3299 = vmatpush1.msra.mxu0 0.0
    %3300 = vmatprep.subr.mxu0 0.0
    %3301 = vmatpush1.msra.mxu0 0.0
    %3302 = vmatprep.subr.mxu0 0.0
    %3303 = vmatpush1.msra.mxu0 0.0
    %3304 = vmatprep.subr.mxu0 0.0
    %3305 = vmatpush1.msra.mxu0 0.0
    %3306 = vmatprep.subr.mxu0 0.0
    %3307 = vmatpush1.msra.mxu0 0.0
    %3308 = vmatprep.subr.mxu0 0.0
    %3309 = vmatpush1.msra.mxu0 0.0
    %3310 = vmatprep.subr.mxu0 0.0
    %3311 = vmatpush1.msra.mxu0 0.0
    %3312 = vmatprep.mubr.f32.mxu0 0.0
    %3313 = vmatmul.mubr.f32.gmra.mrb[0].mxu0 %v3246
    %v3314 = vpop.f32.mrb[0].mxu0
    %v3315 = vadd.f32 %v3240, %v3314
    %v3316 = vpop.f32.mrb[0].mxu0
    %3317 = vdwg.mxu0
    %v3318 = vadd.f32 %v3315, %v1684
    %v3319 = vxor.u32 %v3318, 2147483648
    %v3320 = vmul.f32 %v3319, 1.442695
    %v3321 = vpow.pop %v3320
    %v3322 = vadd.f32 %v3321, 1.0
    %v3323 = vrcp.pop %v3322
    %v3324 = vmul.f32 1.0, %v3323
    %v3325 = vtanh.pop %v3318
    %v3326 = vmul.f32 %v3324, %v3064
    %3328 = vrot.lane.b32.xlu0 %v3325, 64
    %v3329 = vpop.permute.xlu0 %3328
    %v3331 = vmul.f32 %v3324, %v3329
    %3333 = vrot.lane.b32.xlu0 %v3331, 32
    %v3334 = vpop.permute.xlu0 %3333
    %v3336 = vadd.f32 %v3326, %v3334
    %v3337 = vtanh.pop %v3336
    %3339 = vrot.lane.b32.xlu0 %v3337, 64
    %v3340 = vpop.permute.xlu0 %3339
    %v3342 = vmul.f32 %v3324, %v3340
    %3344 = vrot.lane.b32.xlu0 %v3342, 32
    %v3345 = vpop.permute.xlu0 %3344
    %3347 = vst.msk [vmem:[#allocation3 + $0x30] sm:$0xff] %vm246, %v3345
    %3348 = vmatprep.subr.mxu0 0.0
    %3349 = vmatpush1.msra.mxu0 %v1424
    %3350 = vmatprep.subr.mxu0 0.0
    %3351 = vmatpush1.msra.mxu0 %v1425
    %3352 = vmatprep.subr.mxu0 0.0
    %3353 = vmatpush1.msra.mxu0 %v1426
    %3354 = vmatprep.subr.mxu0 0.0
    %3355 = vmatpush1.msra.mxu0 %v1427
    %3356 = vmatprep.subr.mxu0 0.0
    %3357 = vmatpush1.msra.mxu0 0.0
    %3358 = vmatprep.subr.mxu0 0.0
    %3359 = vmatpush1.msra.mxu0 0.0
    %3360 = vmatprep.subr.mxu0 0.0
    %3361 = vmatpush1.msra.mxu0 0.0
    %3362 = vmatprep.subr.mxu0 0.0
    %3363 = vmatpush1.msra.mxu0 0.0
    %3364 = vmatprep.subr.mxu0 0.0
    %3365 = vmatpush1.msra.mxu0 0.0
    %3366 = vmatprep.subr.mxu0 0.0
    %3367 = vmatpush1.msra.mxu0 0.0
    %3368 = vmatprep.subr.mxu0 0.0
    %3369 = vmatpush1.msra.mxu0 0.0
    %3370 = vmatprep.subr.mxu0 0.0
    %3371 = vmatpush1.msra.mxu0 0.0
    %3372 = vmatprep.subr.mxu0 0.0
    %3373 = vmatpush1.msra.mxu0 0.0
    %3374 = vmatprep.subr.mxu0 0.0
    %3375 = vmatpush1.msra.mxu0 0.0
    %3376 = vmatprep.subr.mxu0 0.0
    %3377 = vmatpush1.msra.mxu0 0.0
    %3378 = vmatprep.subr.mxu0 0.0
    %3379 = vmatpush1.msra.mxu0 0.0
    %3380 = vmatprep.subr.mxu0 0.0
    %3381 = vmatpush1.msra.mxu0 0.0
    %3382 = vmatprep.subr.mxu0 0.0
    %3383 = vmatpush1.msra.mxu0 0.0
    %3384 = vmatprep.subr.mxu0 0.0
    %3385 = vmatpush1.msra.mxu0 0.0
    %3386 = vmatprep.subr.mxu0 0.0
    %3387 = vmatpush1.msra.mxu0 0.0
    %3388 = vmatprep.subr.mxu0 0.0
    %3389 = vmatpush1.msra.mxu0 0.0
    %3390 = vmatprep.subr.mxu0 0.0
    %3391 = vmatpush1.msra.mxu0 0.0
    %3392 = vmatprep.subr.mxu0 0.0
    %3393 = vmatpush1.msra.mxu0 0.0
    %3394 = vmatprep.subr.mxu0 0.0
    %3395 = vmatpush1.msra.mxu0 0.0
    %3396 = vmatprep.subr.mxu0 0.0
    %3397 = vmatpush1.msra.mxu0 0.0
    %3398 = vmatprep.subr.mxu0 0.0
    %3399 = vmatpush1.msra.mxu0 0.0
    %3400 = vmatprep.subr.mxu0 0.0
    %3401 = vmatpush1.msra.mxu0 0.0
    %3402 = vmatprep.subr.mxu0 0.0
    %3403 = vmatpush1.msra.mxu0 0.0
    %3404 = vmatprep.subr.mxu0 0.0
    %3405 = vmatpush1.msra.mxu0 0.0
    %3406 = vmatprep.subr.mxu0 0.0
    %3407 = vmatpush1.msra.mxu0 0.0
    %3408 = vmatprep.subr.mxu0 0.0
    %3409 = vmatpush1.msra.mxu0 0.0
    %3410 = vmatprep.subr.mxu0 0.0
    %3411 = vmatpush1.msra.mxu0 0.0
    %3412 = vmatprep.mubr.f32.mxu0 0.0
    %3413 = vmatmul.mubr.f32.gmra.mrb[0].mxu0 %v3246
    %v3414 = vpop.f32.mrb[0].mxu0
    %v3415 = vadd.f32 0.0, %v3414
    %v3416 = vpop.f32.mrb[0].mxu0
    %3417 = vdwg.mxu0
    %v3418 = vadd.f32 %v1421, %v3415
    %v3419 = vxor.u32 %v3418, 2147483648
    %v3420 = vmul.f32 %v3419, 1.442695
    %v3421 = vpow.pop %v3420
    %v3422 = vadd.f32 %v3421, 1.0
    %v3423 = vrcp.pop %v3422
    %v3424 = vmul.f32 1.0, %v3423
    %v3425 = vtanh.pop %v3418
    %v3426 = vmul.f32 %v3424, %v3164
    %3428 = vrot.lane.b32.xlu0 %v3425, 64
    %v3429 = vpop.permute.xlu0 %3428
    %v3431 = vmul.f32 %v3424, %v3429
    %3433 = vrot.lane.b32.xlu0 %v3431, 32
    %v3434 = vpop.permute.xlu0 %3433
    %v3436 = vadd.f32 %v3426, %v3434
    %v3437 = vtanh.pop %v3436
    %3439 = vrot.lane.b32.xlu0 %v3437, 64
    %v3440 = vpop.permute.xlu0 %3439
    %v3442 = vmul.f32 %v3424, %v3440
    %v3443 = vsel %vm246, %v3345, 0
    %3445 = vmatprep.subr.mxu0 0.0
    %3446 = vmatpush1.msra.mxu0 %v1432
    %3447 = vmatprep.subr.mxu0 0.0
    %3448 = vmatpush1.msra.mxu0 %v1433
    %3449 = vmatprep.subr.mxu0 0.0
    %3450 = vmatpush1.msra.mxu0 %v1434
    %3451 = vmatprep.subr.mxu0 0.0
    %3452 = vmatpush1.msra.mxu0 %v1435
    %3453 = vmatprep.subr.mxu0 0.0
    %3454 = vmatpush1.msra.mxu0 0.0
    %3455 = vmatprep.subr.mxu0 0.0
    %3456 = vmatpush1.msra.mxu0 0.0
    %3457 = vmatprep.subr.mxu0 0.0
    %3458 = vmatpush1.msra.mxu0 0.0
    %3459 = vmatprep.subr.mxu0 0.0
    %3460 = vmatpush1.msra.mxu0 0.0
    %3461 = vmatprep.subr.mxu0 0.0
    %3462 = vmatpush1.msra.mxu0 0.0
    %3463 = vmatprep.subr.mxu0 0.0
    %3464 = vmatpush1.msra.mxu0 0.0
    %3465 = vmatprep.subr.mxu0 0.0
    %3466 = vmatpush1.msra.mxu0 0.0
    %3467 = vmatprep.subr.mxu0 0.0
    %3468 = vmatpush1.msra.mxu0 0.0
    %3469 = vmatprep.subr.mxu0 0.0
    %3470 = vmatpush1.msra.mxu0 0.0
    %3471 = vmatprep.subr.mxu0 0.0
    %3472 = vmatpush1.msra.mxu0 0.0
    %3473 = vmatprep.subr.mxu0 0.0
    %3474 = vmatpush1.msra.mxu0 0.0
    %3475 = vmatprep.subr.mxu0 0.0
    %3476 = vmatpush1.msra.mxu0 0.0
    %3477 = vmatprep.subr.mxu0 0.0
    %3478 = vmatpush1.msra.mxu0 0.0
    %3479 = vmatprep.subr.mxu0 0.0
    %3480 = vmatpush1.msra.mxu0 0.0
    %3481 = vmatprep.subr.mxu0 0.0
    %3482 = vmatpush1.msra.mxu0 0.0
    %3483 = vmatprep.subr.mxu0 0.0
    %3484 = vmatpush1.msra.mxu0 0.0
    %3485 = vmatprep.subr.mxu0 0.0
    %3486 = vmatpush1.msra.mxu0 0.0
    %3487 = vmatprep.subr.mxu0 0.0
    %3488 = vmatpush1.msra.mxu0 0.0
    %3489 = vmatprep.subr.mxu0 0.0
    %3490 = vmatpush1.msra.mxu0 0.0
    %3491 = vmatprep.subr.mxu0 0.0
    %3492 = vmatpush1.msra.mxu0 0.0
    %3493 = vmatprep.subr.mxu0 0.0
    %3494 = vmatpush1.msra.mxu0 0.0
    %3495 = vmatprep.subr.mxu0 0.0
    %3496 = vmatpush1.msra.mxu0 0.0
    %3497 = vmatprep.subr.mxu0 0.0
    %3498 = vmatpush1.msra.mxu0 0.0
    %3499 = vmatprep.subr.mxu0 0.0
    %3500 = vmatpush1.msra.mxu0 0.0
    %3501 = vmatprep.subr.mxu0 0.0
    %3502 = vmatpush1.msra.mxu0 0.0
    %3503 = vmatprep.subr.mxu0 0.0
    %3504 = vmatpush1.msra.mxu0 0.0
    %3505 = vmatprep.subr.mxu0 0.0
    %3506 = vmatpush1.msra.mxu0 0.0
    %3507 = vmatprep.subr.mxu0 0.0
    %3508 = vmatpush1.msra.mxu0 0.0
    %3509 = vmatprep.mubr.f32.mxu0 0.0
    %3510 = vmatmul.mubr.f32.gmra.mrb[0].mxu0 %v3443
    %v3511 = vpop.f32.mrb[0].mxu0
    %v3512 = vadd.f32 0.0, %v3511
    %v3513 = vpop.f32.mrb[0].mxu0
    %3514 = vdwg.mxu0
    %3516 = vrot.lane.b32.xlu0 %v3442, 32
    %v3517 = vpop.permute.xlu0 %3516
    %v3518 = vsel %vm246, %v3517, 0
    %3520 = vmatprep.subr.mxu0 0.0
    %3521 = vmatpush1.msra.mxu0 %v1428
    %3522 = vmatprep.subr.mxu0 0.0
    %3523 = vmatpush1.msra.mxu0 %v1429
    %3524 = vmatprep.subr.mxu0 0.0
    %3525 = vmatpush1.msra.mxu0 %v1430
    %3526 = vmatprep.subr.mxu0 0.0
    %3527 = vmatpush1.msra.mxu0 %v1431
    %3528 = vmatprep.subr.mxu0 0.0
    %3529 = vmatpush1.msra.mxu0 0.0
    %3530 = vmatprep.subr.mxu0 0.0
    %3531 = vmatpush1.msra.mxu0 0.0
    %3532 = vmatprep.subr.mxu0 0.0
    %3533 = vmatpush1.msra.mxu0 0.0
    %3534 = vmatprep.subr.mxu0 0.0
    %3535 = vmatpush1.msra.mxu0 0.0
    %3536 = vmatprep.subr.mxu0 0.0
    %3537 = vmatpush1.msra.mxu0 0.0
    %3538 = vmatprep.subr.mxu0 0.0
    %3539 = vmatpush1.msra.mxu0 0.0
    %3540 = vmatprep.subr.mxu0 0.0
    %3541 = vmatpush1.msra.mxu0 0.0
    %3542 = vmatprep.subr.mxu0 0.0
    %3543 = vmatpush1.msra.mxu0 0.0
    %3544 = vmatprep.subr.mxu0 0.0
    %3545 = vmatpush1.msra.mxu0 0.0
    %3546 = vmatprep.subr.mxu0 0.0
    %3547 = vmatpush1.msra.mxu0 0.0
    %3548 = vmatprep.subr.mxu0 0.0
    %3549 = vmatpush1.msra.mxu0 0.0
    %3550 = vmatprep.subr.mxu0 0.0
    %3551 = vmatpush1.msra.mxu0 0.0
    %3552 = vmatprep.subr.mxu0 0.0
    %3553 = vmatpush1.msra.mxu0 0.0
    %3554 = vmatprep.subr.mxu0 0.0
    %3555 = vmatpush1.msra.mxu0 0.0
    %3556 = vmatprep.subr.mxu0 0.0
    %3557 = vmatpush1.msra.mxu0 0.0
    %3558 = vmatprep.subr.mxu0 0.0
    %3559 = vmatpush1.msra.mxu0 0.0
    %3560 = vmatprep.subr.mxu0 0.0
    %3561 = vmatpush1.msra.mxu0 0.0
    %3562 = vmatprep.subr.mxu0 0.0
    %3563 = vmatpush1.msra.mxu0 0.0
    %3564 = vmatprep.subr.mxu0 0.0
    %3565 = vmatpush1.msra.mxu0 0.0
    %3566 = vmatprep.subr.mxu0 0.0
    %3567 = vmatpush1.msra.mxu0 0.0
    %3568 = vmatprep.subr.mxu0 0.0
    %3569 = vmatpush1.msra.mxu0 0.0
    %3570 = vmatprep.subr.mxu0 0.0
    %3571 = vmatpush1.msra.mxu0 0.0
    %3572 = vmatprep.subr.mxu0 0.0
    %3573 = vmatpush1.msra.mxu0 0.0
    %3574 = vmatprep.subr.mxu0 0.0
    %3575 = vmatpush1.msra.mxu0 0.0
    %3576 = vmatprep.subr.mxu0 0.0
    %3577 = vmatpush1.msra.mxu0 0.0
    %3578 = vmatprep.subr.mxu0 0.0
    %3579 = vmatpush1.msra.mxu0 0.0
    %3580 = vmatprep.subr.mxu0 0.0
    %3581 = vmatpush1.msra.mxu0 0.0
    %3582 = vmatprep.subr.mxu0 0.0
    %3583 = vmatpush1.msra.mxu0 0.0
    %3584 = vmatprep.mubr.f32.mxu0 0.0
    %3585 = vmatmul.mubr.f32.gmra.mrb[0].mxu0 %v3518
    %v3586 = vpop.f32.mrb[0].mxu0
    %v3587 = vadd.f32 %v3512, %v3586
    %v3588 = vpop.f32.mrb[0].mxu0
    %3589 = vdwg.mxu0
    %v3590 = vadd.f32 %v3587, %v1684
    %v3591 = vxor.u32 %v3590, 2147483648
    %v3592 = vmul.f32 %v3591, 1.442695
    %v3593 = vpow.pop %v3592
    %v3594 = vadd.f32 %v3593, 1.0
    %v3595 = vrcp.pop %v3594
    %v3596 = vmul.f32 1.0, %v3595
    %v3597 = vtanh.pop %v3590
    %v3598 = vmul.f32 %v3596, %v3336
    %3600 = vrot.lane.b32.xlu0 %v3597, 64
    %v3601 = vpop.permute.xlu0 %3600
    %v3603 = vmul.f32 %v3596, %v3601
    %3605 = vrot.lane.b32.xlu0 %v3603, 32
    %v3606 = vpop.permute.xlu0 %3605
    %v3608 = vadd.f32 %v3598, %v3606
    %v3609 = vtanh.pop %v3608
    %3611 = vrot.lane.b32.xlu0 %v3609, 64
    %v3612 = vpop.permute.xlu0 %3611
    %v3614 = vmul.f32 %v3596, %v3612
    %3616 = vrot.lane.b32.xlu0 %v3614, 32
    %v3617 = vpop.permute.xlu0 %3616
    %3619 = vst.msk [vmem:[#allocation3 + $0x38] sm:$0xff] %vm246, %v3617
    %v3620 = vld [vmem:[#allocation3] sm:$0xff]
    %v3621 = vld [vmem:[#allocation3 + $0x8] sm:$0xff]
    %v3622 = vld [vmem:[#allocation3 + $0x10] sm:$0xff]
    %v3623 = vld [vmem:[#allocation3 + $0x18] sm:$0xff]
    %v3624 = vld [vmem:[#allocation3 + $0x20] sm:$0xff]
    %v3625 = vld [vmem:[#allocation3 + $0x28] sm:$0xff]
    %v3626 = vld [vmem:[#allocation3 + $0x30] sm:$0xff]
    %v3627 = vld [vmem:[#allocation3 + $0x38] sm:$0xff]
    %v3628 = vld [vmem:[%s12] sm:$0xff]
    %v3629 = vld [vmem:[%s12 + $0x8] sm:$0xff]
    %v3630 = vld [vmem:[%s12 + $0x10] sm:$0xff]
    %v3631 = vld [vmem:[%s12 + $0x18] sm:$0xff]
    %v3632 = vld [vmem:[%s13] sm:$0x1]
    %v3634 = vlaneseq
    %v3635 = vshrl.u32 %v3634, 7
    %v3636 = vsub.s32 0, %v3635
    %v3637 = vrot.slane %v3632, %v3636
    %v3640 = vsel %vm246, %v3620, 0
    %v3643 = vsel %vm246, %v3621, 0
    %v3646 = vsel %vm246, %v3622, 0
    %v3649 = vsel %vm246, %v3623, 0
    %v3652 = vsel %vm246, %v3624, 0
    %v3655 = vsel %vm246, %v3625, 0
    %v3658 = vsel %vm246, %v3626, 0
    %v3661 = vsel %vm246, %v3627, 0
    %3663 = vmatprep.subr.mxu0 0.0
    %3664 = vmatpush1.msra.mxu0 %v3628
    %3665 = vmatprep.subr.mxu0 0.0
    %3666 = vmatpush1.msra.mxu0 %v3629
    %3667 = vmatprep.subr.mxu0 0.0
    %3668 = vmatpush1.msra.mxu0 %v3630
    %3669 = vmatprep.subr.mxu0 0.0
    %3670 = vmatpush1.msra.mxu0 %v3631
    %3671 = vmatprep.subr.mxu0 0.0
    %3672 = vmatpush1.msra.mxu0 0.0
    %3673 = vmatprep.subr.mxu0 0.0
    %3674 = vmatpush1.msra.mxu0 0.0
    %3675 = vmatprep.subr.mxu0 0.0
    %3676 = vmatpush1.msra.mxu0 0.0
    %3677 = vmatprep.subr.mxu0 0.0
    %3678 = vmatpush1.msra.mxu0 0.0
    %3679 = vmatprep.subr.mxu0 0.0
    %3680 = vmatpush1.msra.mxu0 0.0
    %3681 = vmatprep.subr.mxu0 0.0
    %3682 = vmatpush1.msra.mxu0 0.0
    %3683 = vmatprep.subr.mxu0 0.0
    %3684 = vmatpush1.msra.mxu0 0.0
    %3685 = vmatprep.subr.mxu0 0.0
    %3686 = vmatpush1.msra.mxu0 0.0
    %3687 = vmatprep.subr.mxu0 0.0
    %3688 = vmatpush1.msra.mxu0 0.0
    %3689 = vmatprep.subr.mxu0 0.0
    %3690 = vmatpush1.msra.mxu0 0.0
    %3691 = vmatprep.subr.mxu0 0.0
    %3692 = vmatpush1.msra.mxu0 0.0
    %3693 = vmatprep.subr.mxu0 0.0
    %3694 = vmatpush1.msra.mxu0 0.0
    %3695 = vmatprep.subr.mxu0 0.0
    %3696 = vmatpush1.msra.mxu0 0.0
    %3697 = vmatprep.subr.mxu0 0.0
    %3698 = vmatpush1.msra.mxu0 0.0
    %3699 = vmatprep.subr.mxu0 0.0
    %3700 = vmatpush1.msra.mxu0 0.0
    %3701 = vmatprep.subr.mxu0 0.0
    %3702 = vmatpush1.msra.mxu0 0.0
    %3703 = vmatprep.subr.mxu0 0.0
    %3704 = vmatpush1.msra.mxu0 0.0
    %3705 = vmatprep.subr.mxu0 0.0
    %3706 = vmatpush1.msra.mxu0 0.0
    %3707 = vmatprep.subr.mxu0 0.0
    %3708 = vmatpush1.msra.mxu0 0.0
    %3709 = vmatprep.subr.mxu0 0.0
    %3710 = vmatpush1.msra.mxu0 0.0
    %3711 = vmatprep.subr.mxu0 0.0
    %3712 = vmatpush1.msra.mxu0 0.0
    %3713 = vmatprep.subr.mxu0 0.0
    %3714 = vmatpush1.msra.mxu0 0.0
    %3715 = vmatprep.subr.mxu0 0.0
    %3716 = vmatpush1.msra.mxu0 0.0
    %3717 = vmatprep.subr.mxu0 0.0
    %3718 = vmatpush1.msra.mxu0 0.0
    %3719 = vmatprep.subr.mxu0 0.0
    %3720 = vmatpush1.msra.mxu0 0.0
    %3721 = vmatprep.subr.mxu0 0.0
    %3722 = vmatpush1.msra.mxu0 0.0
    %3723 = vmatprep.subr.mxu0 0.0
    %3724 = vmatpush1.msra.mxu0 0.0
    %3725 = vmatprep.subr.mxu0 0.0
    %3726 = vmatpush1.msra.mxu0 0.0
    %3727 = vmatprep.mubr.f32.mxu0 0.0
    %3728 = vmatmul.mubr.f32.gmra.mrb[0].mxu0 %v3640
    %v3729 = vpop.f32.mrb[0].mxu0
    %v3730 = vadd.f32 %v3637, %v3729
    %v3731 = vpop.f32.mrb[0].mxu0
    %3732 = vmatprep.mubr.f32.mxu0 0.0
    %3733 = vmatmul.mubr.f32.gmra.mrb[0].mxu0 %v3643
    %v3734 = vpop.f32.mrb[0].mxu0
    %v3735 = vadd.f32 %v3637, %v3734
    %v3736 = vpop.f32.mrb[0].mxu0
    %3737 = vmatprep.mubr.f32.mxu0 0.0
    %3738 = vmatmul.mubr.f32.gmra.mrb[0].mxu0 %v3646
    %v3739 = vpop.f32.mrb[0].mxu0
    %v3740 = vadd.f32 %v3637, %v3739
    %v3741 = vpop.f32.mrb[0].mxu0
    %3742 = vmatprep.mubr.f32.mxu0 0.0
    %3743 = vmatmul.mubr.f32.gmra.mrb[0].mxu0 %v3649
    %v3744 = vpop.f32.mrb[0].mxu0
    %v3745 = vadd.f32 %v3637, %v3744
    %v3746 = vpop.f32.mrb[0].mxu0
    %3747 = vmatprep.mubr.f32.mxu0 0.0
    %3748 = vmatmul.mubr.f32.gmra.mrb[0].mxu0 %v3652
    %v3749 = vpop.f32.mrb[0].mxu0
    %v3750 = vadd.f32 %v3637, %v3749
    %v3751 = vpop.f32.mrb[0].mxu0
    %3752 = vmatprep.mubr.f32.mxu0 0.0
    %3753 = vmatmul.mubr.f32.gmra.mrb[0].mxu0 %v3655
    %v3754 = vpop.f32.mrb[0].mxu0
    %v3755 = vadd.f32 %v3637, %v3754
    %v3756 = vpop.f32.mrb[0].mxu0
    %3757 = vmatprep.mubr.f32.mxu0 0.0
    %3758 = vmatmul.mubr.f32.gmra.mrb[0].mxu0 %v3658
    %v3759 = vpop.f32.mrb[0].mxu0
    %v3760 = vadd.f32 %v3637, %v3759
    %v3761 = vpop.f32.mrb[0].mxu0
    %3762 = vmatprep.mubr.f32.mxu0 0.0
    %3763 = vmatmul.mubr.f32.gmra.mrb[0].mxu0 %v3661
    %v3764 = vpop.f32.mrb[0].mxu0
    %v3765 = vadd.f32 %v3637, %v3764
    %v3766 = vpop.f32.mrb[0].mxu0
    %3767 = vdwg.mxu0
    %3768 = vst [vmem:[#allocation16] sm:$0xff] %v3730
    %3769 = vst [vmem:[#allocation16 + $0x8] sm:$0xff] %v3735
    %3770 = vst [vmem:[#allocation16 + $0x10] sm:$0xff] %v3740
    %3771 = vst [vmem:[#allocation16 + $0x18] sm:$0xff] %v3745
    %3772 = vst [vmem:[#allocation16 + $0x20] sm:$0xff] %v3750
    %3773 = vst [vmem:[#allocation16 + $0x28] sm:$0xff] %v3755
    %3774 = vst [vmem:[#allocation16 + $0x30] sm:$0xff] %v3760
    %3775 = vst [vmem:[#allocation16 + $0x38] sm:$0xff] %v3765
    // Predicated region
    $region86: #{tpu_custom_call.1} parent=1 // pred_check
      _
    $region87: #{tpu_custom_call.1} parent=1 // pred_check_branch
      %3777 = sbr.rel (0) target = $region89
    $region88: #{tpu_custom_call.1} parent=1 // pred_region
      %s3779 = ssub.s32 1024, 1024
      %3780 = vsyncadd [#allocation6], %s3779
      %s3781 = sshll.u32 [#allocation16], 4
      %s3782 = int_to_ptr.vmem [resolvable:$true] %s3781
      %3787 = dma.vmem_to_hbm [thread:$0]  %s3782, 1024, %s14, [#allocation6], 128, 128, 8
    $region89: #{tpu_custom_call.1} parent=1 // pred_fallthru
      _
    // Predicated region
    $region90: #{tpu_custom_call.1} parent=1 // pred_check
      _
    $region91: #{tpu_custom_call.1} parent=1 // pred_check_branch
      %3789 = sbr.rel (0) target = $region93
    $region92: #{tpu_custom_call.1} parent=1 // pred_region
      %3790 = dma.done [#allocation6], 1024
    $region93: #{tpu_custom_call.1} parent=1 // pred_fallthru
      _
    %3791 = vsyncpa [#allocation5], 1
    %3792 = vsyncpa [#allocation8], 1
    %3793 = vsyncpa [#allocation11], 1
    %3794 = vsyncpa [#allocation14], 1
    %3795 = vsyncpa [#allocation6], 1

</llo_original>
